<compile_context>
chip_gen: v7x
topology: tpu7x:2x2x1
jax: 0.10.0
libtpu: 0.0.40
codegen_flags: <defaults>
</compile_context>

<pallas_src>
import functools

import jax
import jax.numpy as jnp
from jax.experimental import pallas as pl
from jax.experimental.pallas import tpu as pltpu


def _round_up(x, m):
    return ((x + m - 1) // m) * m


def fold_bn(w, b, bn=None, eps=1e-5):
    """Fold eval-mode BatchNorm1d into the preceding conv/linear weight & bias.

    Returns (w_folded, shift) with  BN(op_w(x) + b) == op_{w_folded}(x) + shift.
    Folding is exact in f32; only the MXU operands are later cast to bf16.
    """
    w = w.astype(jnp.float32)
    b = b.astype(jnp.float32)
    if bn is None:
        return w, b
    s = bn["gamma"] * jax.lax.rsqrt(bn["var"] + eps)
    shape = (-1,) + (1,) * (w.ndim - 1)
    return w * s.reshape(shape), bn["beta"] + (b - bn["mean"]) * s


# ---------------------------------------------------------------------------
# Kernel 1: fused conv stack (conv1 .. conv4 + BN + ReLU + MaxPool1d(3))
#
# Phase algebra (per sample, x zero-padded to 27*Tq, Tq = Lp + 2):
#   x_ph27[q][t]       = x[27 t + q]                         (done once in the wrapper)
#   h1_ph9[q]          = W1 @ x_ph27[3q .. 3q+2]             (conv1, stride 3: no offsets)
#   c2_ph9[p]          = sum_k W2[k] @ h1_ph9[(p+k)%9][(p+k)//9 :]   (conv2: offsets 0/1)
#   c3_ph3[m]          = sum_k W3[k] @ c2_ph9[3m+k]          (conv3, stride 3: no offsets)
#   window_j           = sum_k W4[k] @ c3_ph3[(j+k)%3][(j+k)//3 :]   (conv4: offsets 0/1)
#   pooled             = relu(max_j window_j + shift)        (MaxPool1d(3) fused)
# Tail positions beyond the valid lengths hold garbage but are never consumed.
# ---------------------------------------------------------------------------
def _conv_stack_kernel(x_ref, w1_ref, b1_ref, w2_ref, s2_ref, w3_ref, b3_ref,
                       w4_ref, s4_ref, o_ref, *, lp):
    t1 = lp + 1
    xp = x_ref[0]                        # (9, 8, Tq) bf16 (conv1 tap dim zero-padded 3->8)
    w1 = w1_ref[...]                     # (16, 8) bf16
    b1 = b1_ref[...]                     # (16, 1) f32

    # conv1 (kernel=3, stride=3), no activation -> 9 phase slabs (16, Tq)
    h1 = []
    for q in range(9):
        v = jnp.dot(w1, xp[q], preferred_element_type=jnp.float32)
        h1.append((v + b1).astype(jnp.bfloat16))

    # conv2 (kernel=3, stride=1) + BN1 + ReLU -> 9 phase slabs (16, lp+1)
    w2 = w2_ref[...]                     # (3, 16, 16) bf16
    s2 = s2_ref[...]                     # (16, 1) f32
    c2 = []
    for p in range(9):
        acc = None
        for k in range(3):
            ph, d = (p + k) % 9, (p + k) // 9
            t = jnp.dot(w2[k], h1[ph][:, d:d + t1], preferred_element_type=jnp.float32)
            acc = t if acc is None else acc + t
        c2.append(jnp.maximum(acc + s2, 0.0).astype(jnp.bfloat16))

    # conv3 (kernel=3, stride=3), no activation -> 3 phase slabs (64, lp+1)
    w3 = w3_ref[...]                     # (3, 64, 16) bf16
    b3 = b3_ref[...]                     # (64, 1) f32
    c3 = []
    for m in range(3):
        acc = None
        for k in range(3):
            t = jnp.dot(w3[k], c2[3 * m + k], preferred_element_type=jnp.float32)
            acc = t if acc is None else acc + t
        c3.append((acc + b3).astype(jnp.bfloat16))

    # conv4 (kernel=3, stride=1) + BN2 + ReLU + MaxPool1d(3)
    # (per-channel shift and ReLU are monotone, so they commute with the window max)
    w4 = w4_ref[...]                     # (3, 64, 64) bf16
    s4 = s4_ref[...]                     # (64, 1) f32
    best = None
    for j in range(3):
        acc = None
        for k in range(3):
            ph, d = (j + k) % 3, (j + k) // 3
            t = jnp.dot(w4[k], c3[ph][:, d:d + lp], preferred_element_type=jnp.float32)
            acc = t if acc is None else acc + t
        best = acc if best is None else jnp.maximum(best, acc)
    o_ref[0] = jnp.maximum(best + s4, 0.0).astype(o_ref.dtype)


def conv_stack_fused(x, params):
    """Full conv stack of the module as one Pallas kernel per sample."""
    B, Cin, L0 = x.shape
    assert Cin == 1
    L1 = L0 // 3          # Conv1d(1,16,3,stride=3)
    L2 = L1 - 2           # Conv1d(16,16,3)
    L3 = L2 // 3          # Conv1d(16,64,3,stride=3)
    L4 = L3 - 2           # Conv1d(64,64,3)
    Lp = L4 // 3          # MaxPool1d(3)
    assert Lp >= 1, "input too short for this network"
    Tq = Lp + 2
    total = 27 * Tq       # consumed positions never exceed min(L0, total)

    w1, b1 = fold_bn(*params["conv1"], None)
    w2, s2 = fold_bn(*params["conv2"], params["bn1"])
    w3, b3 = fold_bn(*params["conv3"], None)
    w4, s4 = fold_bn(*params["conv4"], params["bn2"])

    # 27-phase de-interleave of the input (single wrapper-side permutation).
    x2 = x[:, 0, :]
    if L0 >= total:
        x2 = x2[:, :total]
    else:
        x2 = jnp.pad(x2, ((0, 0), (0, total - L0)))
    xr = x2.reshape(B, Tq, 9, 3).transpose(0, 2, 3, 1)            # (B, 9, 3, Tq)
    xr = jnp.pad(xr, ((0, 0), (0, 0), (0, 5), (0, 0)))            # tap dim 3 -> 8
    xr = xr.astype(jnp.bfloat16)

    w1p = jnp.pad(w1[:, 0, :], ((0, 0), (0, 5))).astype(jnp.bfloat16)    # (16, 8)
    w2t = jnp.transpose(w2, (2, 0, 1)).astype(jnp.bfloat16)              # (3, 16, 16)
    w3t = jnp.transpose(w3, (2, 0, 1)).astype(jnp.bfloat16)              # (3, 64, 16)
    w4t = jnp.transpose(w4, (2, 0, 1)).astype(jnp.bfloat16)              # (3, 64, 64)
    b1c = b1.reshape(16, 1).astype(jnp.float32)
    s2c = s2.reshape(16, 1).astype(jnp.float32)
    b3c = b3.reshape(64, 1).astype(jnp.float32)
    s4c = s4.reshape(64, 1).astype(jnp.float32)

    return pl.pallas_call(
        functools.partial(_conv_stack_kernel, lp=Lp),
        out_shape=jax.ShapeDtypeStruct((B, 64, Lp), jnp.bfloat16),
        grid=(B,),
        in_specs=[
            pl.BlockSpec((1, 9, 8, Tq), lambda b: (b, 0, 0, 0)),
            pl.BlockSpec((16, 8), lambda b: (0, 0)),
            pl.BlockSpec((16, 1), lambda b: (0, 0)),
            pl.BlockSpec((3, 16, 16), lambda b: (0, 0, 0)),
            pl.BlockSpec((16, 1), lambda b: (0, 0)),
            pl.BlockSpec((3, 64, 16), lambda b: (0, 0, 0)),
            pl.BlockSpec((64, 1), lambda b: (0, 0)),
            pl.BlockSpec((3, 64, 64), lambda b: (0, 0, 0)),
            pl.BlockSpec((64, 1), lambda b: (0, 0)),
        ],
        out_specs=pl.BlockSpec((1, 64, Lp), lambda b: (b, 0, 0)),
        compiler_params=pltpu.CompilerParams(dimension_semantics=("parallel",)),
    )(xr, w1p, b1c, w2t, s2c, w3t, b3c, w4t, s4c)


# ---------------------------------------------------------------------------
# Kernel 2: fused FC stack (fc1+BN+ReLU -> fc2+BN+ReLU -> fc3), fc1 K-tiled
# ---------------------------------------------------------------------------
def _fc_stack_kernel(a_ref, w1_ref, s1_ref, w2_ref, s2_ref, w3_ref, s3_ref,
                     o_ref, acc_ref):
    k = pl.program_id(1)

    @pl.when(k == 0)
    def _():
        acc_ref[...] = jnp.zeros_like(acc_ref)

    acc_ref[...] += jnp.dot(a_ref[...], w1_ref[...], preferred_element_type=jnp.float32)

    @pl.when(k == pl.num_programs(1) - 1)
    def _():
        h = jnp.maximum(acc_ref[...] + s1_ref[...], 0.0).astype(jnp.bfloat16)
        h = jnp.dot(h, w2_ref[...], preferred_element_type=jnp.float32) + s2_ref[...]
        h = jnp.maximum(h, 0.0).astype(jnp.bfloat16)
        y = jnp.dot(h, w3_ref[...], preferred_element_type=jnp.float32) + s3_ref[...]
        o_ref[...] = y.astype(o_ref.dtype)


def fc_stack_fused(h, params, *, tm=8, tk_max=8192):
    """fc1+BN3+ReLU -> fc2+BN4+ReLU -> fc3 as one kernel (Dropout = identity in eval)."""
    M, K = h.shape
    w1, s1 = fold_bn(*params["fc1"], params["bn3"])
    w2, s2 = fold_bn(*params["fc2"], params["bn4"])
    w3, s3 = fold_bn(*params["fc3"], None)
    N1, N2, N3 = w1.shape[0], w2.shape[0], w3.shape[0]   # 128, 64, 1

    a = h.astype(jnp.bfloat16)
    b1 = w1.T.astype(jnp.bfloat16)                       # (K, 128)  weight-streaming
    b2 = w2.T.astype(jnp.bfloat16)                       # (128, 64)
    b3 = w3.T.astype(jnp.bfloat16)                       # (64, 1)
    s1c = s1.reshape(1, N1).astype(jnp.float32)
    s2c = s2.reshape(1, N2).astype(jnp.float32)
    s3c = s3.reshape(1, N3).astype(jnp.float32)

    tm = min(tm, _round_up(M, 8))
    Mp = _round_up(M, tm)
    a = jnp.pad(a, ((0, Mp - M), (0, 0)))

    tk = K if K <= tk_max else tk_max
    Kp = _round_up(K, tk)
    if Kp != K:
        a = jnp.pad(a, ((0, 0), (0, Kp - K)))
        b1 = jnp.pad(b1, ((0, Kp - K), (0, 0)))

    out = pl.pallas_call(
        _fc_stack_kernel,
        out_shape=jax.ShapeDtypeStruct((Mp, N3), jnp.float32),
        grid=(Mp // tm, Kp // tk),
        in_specs=[
            pl.BlockSpec((tm, tk), lambda i, k: (i, k)),
            pl.BlockSpec((tk, N1), lambda i, k: (k, 0)),
            pl.BlockSpec((1, N1), lambda i, k: (0, 0)),
            pl.BlockSpec((N1, N2), lambda i, k: (0, 0)),
            pl.BlockSpec((1, N2), lambda i, k: (0, 0)),
            pl.BlockSpec((N2, N3), lambda i, k: (0, 0)),
            pl.BlockSpec((1, N3), lambda i, k: (0, 0)),
        ],
        out_specs=pl.BlockSpec((tm, N3), lambda i, k: (i, 0)),
        scratch_shapes=[pltpu.VMEM((tm, N1), jnp.float32)],
        compiler_params=pltpu.CompilerParams(
            dimension_semantics=("parallel", "arbitrary")),
    )(a, b1, s1c, b2, s2c, b3, s3c)
    return out[:M]


# ---------------------------------------------------------------------------
# Parameter init (PyTorch defaults; BN stats randomized so folding is tested)
# ---------------------------------------------------------------------------
def init_params(key, fc1_in):
    def conv_init(k, cout, cin, ks):
        k1, k2 = jax.random.split(k)
        bound = 1.0 / (cin * ks) ** 0.5
        w = jax.random.uniform(k1, (cout, cin, ks), jnp.float32, -bound, bound)
        b = jax.random.uniform(k2, (cout,), jnp.float32, -bound, bound)
        return w, b

    def linear_init(k, fout, fin):
        k1, k2 = jax.random.split(k)
        bound = 1.0 / fin ** 0.5
        w = jax.random.uniform(k1, (fout, fin), jnp.float32, -bound, bound)
        b = jax.random.uniform(k2, (fout,), jnp.float32, -bound, bound)
        return w, b

    def bn_init(k, c):
        k1, k2, k3, k4 = jax.random.split(k, 4)
        return dict(
            gamma=jax.random.uniform(k1, (c,), jnp.float32, 0.5, 1.5),
            beta=0.1 * jax.random.normal(k2, (c,), jnp.float32),
            mean=0.1 * jax.random.normal(k3, (c,), jnp.float32),
            var=jax.random.uniform(k4, (c,), jnp.float32, 0.5, 1.5),
        )

    ks = jax.random.split(key, 11)
    return {
        "conv1": conv_init(ks[0], 16, 1, 3),
        "conv2": conv_init(ks[1], 16, 16, 3),
        "bn1": bn_init(ks[2], 16),
        "conv3": conv_init(ks[3], 64, 16, 3),
        "conv4": conv_init(ks[4], 64, 64, 3),
        "bn2": bn_init(ks[5], 64),
        "fc1": linear_init(ks[6], 128, fc1_in),
        "bn3": bn_init(ks[7], 128),
        "fc2": linear_init(ks[8], 64, 128),
        "bn4": bn_init(ks[9], 64),
        "fc3": linear_init(ks[10], 1, 64),
    }


# ---------------------------------------------------------------------------
# Full forward pass (eval mode: Dropout = identity, BN uses running stats)
# ---------------------------------------------------------------------------
def cnn_forward(params, x):
    pooled = conv_stack_fused(x, params)          # (B, 64, Lp) bf16
    B = pooled.shape[0]
    h = pooled.reshape(B, -1)                     # Flatten (channel-major, like torch)
    return fc_stack_fused(h, params)              # (B, 1) f32


# ---------------------------------------------------------------------------
# Pure-JAX reference mirroring the kernel math (bf16 operands, f32 accumulation,
# f32 epilogue, bf16 activations) for a tight correctness check.
# ---------------------------------------------------------------------------
def cnn_forward_ref(params, x):
    def mm(a, b):
        return jnp.dot(a.astype(jnp.bfloat16), b.astype(jnp.bfloat16),
                       preferred_element_type=jnp.float32)

    def conv(x, wf, shift, stride, relu):
        B, Cin, L = x.shape
        Cout, _, K = wf.shape
        Lout = (L - K) // stride + 1
        taps = [x[:, :, kk: kk + stride * (Lout - 1) + 1: stride] for kk in range(K)]
        a = jnp.stack(taps, -1).transpose(0, 2, 1, 3).reshape(B * Lout, Cin * K)
        y = mm(a, wf.reshape(Cout, Cin * K).T) + shift[None, :].astype(jnp.float32)
        if relu:
            y = jnp.maximum(y, 0.0)
        return y.reshape(B, Lout, Cout).transpose(0, 2, 1).astype(jnp.bfloat16)

    def lin(h, w, s, relu, out_dtype):
        y = mm(h, w.T) + s[None, :].astype(jnp.float32)
        if relu:
            y = jnp.maximum(y, 0.0)
        return y.astype(out_dtype)

    p = params
    w, s = fold_bn(*p["conv1"], None)
    h = conv(x, w, s, 3, False)
    w, s = fold_bn(*p["conv2"], p["bn1"])
    h = conv(h, w, s, 1, True)
    w, s = fold_bn(*p["conv3"], None)
    h = conv(h, w, s, 3, False)
    w, s = fold_bn(*p["conv4"], p["bn2"])
    h = conv(h, w, s, 1, True)
    B, C, L = h.shape
    Lp = L // 3
    h = h[:, :, :Lp * 3].reshape(B, C, Lp, 3).max(-1)        # MaxPool1d(3)
    h = h.reshape(B, -1)
    w, s = fold_bn(*p["fc1"], p["bn3"])
    h = lin(h, w, s, True, jnp.bfloat16)
    w, s = fold_bn(*p["fc2"], p["bn4"])
    h = lin(h, w, s, True, jnp.bfloat16)
    w, s = fold_bn(*p["fc3"], None)
    return lin(h, w, s, False, jnp.float32)


if __name__ == "__main__":
    B = 2
    L0 = 1000  # small demo length (original module's Linear(211392,128) implies L0 ~ 89205)

    # derive intermediate lengths exactly as the PyTorch layers would
    L1 = L0 // 3          # Conv1d(1,16,3,stride=3)
    L2 = L1 - 2           # Conv1d(16,16,3)
    L3 = L2 // 3          # Conv1d(16,64,3,stride=3)
    L4 = L3 - 2           # Conv1d(64,64,3)
    Lp = L4 // 3          # MaxPool1d(3)
    fc1_in = 64 * Lp      # Flatten -> first Linear in-features

    key = jax.random.PRNGKey(0)
    kx, kp = jax.random.split(key)
    x = jax.random.normal(kx, (B, 1, L0), jnp.float32)
    params = init_params(kp, fc1_in)

    out = jax.block_until_ready(jax.jit(cnn_forward)(params, x))
    assert out.shape == (B, 1), out.shape

    ref = jax.block_until_ready(jax.jit(cnn_forward_ref)(params, x))
    # Both paths use identical bf16-operand / f32-accumulation math; only
    # accumulation-order / intermediate-rounding differences remain.
    assert jnp.allclose(out, ref, rtol=3e-3, atol=3e-3), (out, ref)

    print("KERNEL_OK")
</pallas_src>

<mosaic_0001>
module attributes {stable_mosaic.version = 11 : i64} {
  func.func @_conv_stack_kernel(%arg0: i32, %arg1: memref<1x9x8x38xbf16, #tpu.memory_space<vmem>>, %arg2: memref<16x8xbf16, #tpu.memory_space<vmem>>, %arg3: memref<16x1xf32, #tpu.memory_space<vmem>>, %arg4: memref<3x16x16xbf16, #tpu.memory_space<vmem>>, %arg5: memref<16x1xf32, #tpu.memory_space<vmem>>, %arg6: memref<3x64x16xbf16, #tpu.memory_space<vmem>>, %arg7: memref<64x1xf32, #tpu.memory_space<vmem>>, %arg8: memref<3x64x64xbf16, #tpu.memory_space<vmem>>, %arg9: memref<64x1xf32, #tpu.memory_space<vmem>>, %arg10: memref<1x64x36xbf16, #tpu.memory_space<vmem>>) attributes {dimension_semantics = [#tpu.dimension_semantics<parallel>], iteration_bounds = array<i64: 2>, scalar_prefetch = 0 : i64, scratch_operands = 0 : i64, tpu.core_type = #tpu.core_type<tc>, window_params = [{transform_indices = @transform_0, window_bounds = array<i64: 1, 9, 8, 38>}, {pipeline_mode = #tpu.pipeline_mode<synchronous>, transform_indices = @transform_1, window_bounds = array<i64: 16, 8>}, {pipeline_mode = #tpu.pipeline_mode<synchronous>, transform_indices = @transform_2, window_bounds = array<i64: 16, 1>}, {pipeline_mode = #tpu.pipeline_mode<synchronous>, transform_indices = @transform_3, window_bounds = array<i64: 3, 16, 16>}, {pipeline_mode = #tpu.pipeline_mode<synchronous>, transform_indices = @transform_4, window_bounds = array<i64: 16, 1>}, {pipeline_mode = #tpu.pipeline_mode<synchronous>, transform_indices = @transform_5, window_bounds = array<i64: 3, 64, 16>}, {pipeline_mode = #tpu.pipeline_mode<synchronous>, transform_indices = @transform_6, window_bounds = array<i64: 64, 1>}, {pipeline_mode = #tpu.pipeline_mode<synchronous>, transform_indices = @transform_7, window_bounds = array<i64: 3, 64, 64>}, {pipeline_mode = #tpu.pipeline_mode<synchronous>, transform_indices = @transform_8, window_bounds = array<i64: 64, 1>}, {transform_indices = @transform_9, window_bounds = array<i64: 1, 64, 36>}]} {
    %c0 = arith.constant 0 : index
    %c0_0 = arith.constant 0 : index
    %c0_1 = arith.constant 0 : index
    %c0_2 = arith.constant 0 : index
    %0 = vector.load %arg1[%c0, %c0_0, %c0_1, %c0_2] : memref<1x9x8x38xbf16, #tpu.memory_space<vmem>>, vector<1x9x8x38xbf16>
    %1 = vector.shape_cast %0 : vector<1x9x8x38xbf16> to vector<9x8x38xbf16>
    %c0_3 = arith.constant 0 : index
    %c0_4 = arith.constant 0 : index
    %2 = vector.load %arg2[%c0_3, %c0_4] : memref<16x8xbf16, #tpu.memory_space<vmem>>, vector<16x8xbf16>
    %c0_5 = arith.constant 0 : index
    %c0_6 = arith.constant 0 : index
    %3 = vector.load %arg3[%c0_5, %c0_6] : memref<16x1xf32, #tpu.memory_space<vmem>>, vector<16x1xf32>
    %4 = vector.extract_strided_slice %1 {offsets = [0, 0, 0], sizes = [1, 8, 38], strides = [1, 1, 1]} : vector<9x8x38xbf16> to vector<1x8x38xbf16>
    %5 = vector.shape_cast %4 : vector<1x8x38xbf16> to vector<8x38xbf16>
    %cst = arith.constant dense<0.000000e+00> : vector<16x38xf32>
    %6 = tpu.matmul %2, %5, %cst {dimension_numbers = #tpu.dot_dimension_numbers<[1], [0], [0], [1], [0, 0, 1, 1], [], []>} : vector<16x8xbf16>, vector<8x38xbf16>, vector<16x38xf32> -> vector<16x38xf32>
    %7 = vector.broadcast %3 : vector<16x1xf32> to vector<16x38xf32>
    %8 = arith.addf %6, %7 : vector<16x38xf32>
    %9 = arith.truncf %8 : vector<16x38xf32> to vector<16x38xbf16>
    %10 = vector.extract_strided_slice %1 {offsets = [1, 0, 0], sizes = [1, 8, 38], strides = [1, 1, 1]} : vector<9x8x38xbf16> to vector<1x8x38xbf16>
    %11 = vector.shape_cast %10 : vector<1x8x38xbf16> to vector<8x38xbf16>
    %cst_7 = arith.constant dense<0.000000e+00> : vector<16x38xf32>
    %12 = tpu.matmul %2, %11, %cst_7 {dimension_numbers = #tpu.dot_dimension_numbers<[1], [0], [0], [1], [0, 0, 1, 1], [], []>} : vector<16x8xbf16>, vector<8x38xbf16>, vector<16x38xf32> -> vector<16x38xf32>
    %13 = vector.broadcast %3 : vector<16x1xf32> to vector<16x38xf32>
    %14 = arith.addf %12, %13 : vector<16x38xf32>
    %15 = arith.truncf %14 : vector<16x38xf32> to vector<16x38xbf16>
    %16 = vector.extract_strided_slice %1 {offsets = [2, 0, 0], sizes = [1, 8, 38], strides = [1, 1, 1]} : vector<9x8x38xbf16> to vector<1x8x38xbf16>
    %17 = vector.shape_cast %16 : vector<1x8x38xbf16> to vector<8x38xbf16>
    %cst_8 = arith.constant dense<0.000000e+00> : vector<16x38xf32>
    %18 = tpu.matmul %2, %17, %cst_8 {dimension_numbers = #tpu.dot_dimension_numbers<[1], [0], [0], [1], [0, 0, 1, 1], [], []>} : vector<16x8xbf16>, vector<8x38xbf16>, vector<16x38xf32> -> vector<16x38xf32>
    %19 = vector.broadcast %3 : vector<16x1xf32> to vector<16x38xf32>
    %20 = arith.addf %18, %19 : vector<16x38xf32>
    %21 = arith.truncf %20 : vector<16x38xf32> to vector<16x38xbf16>
    %22 = vector.extract_strided_slice %1 {offsets = [3, 0, 0], sizes = [1, 8, 38], strides = [1, 1, 1]} : vector<9x8x38xbf16> to vector<1x8x38xbf16>
    %23 = vector.shape_cast %22 : vector<1x8x38xbf16> to vector<8x38xbf16>
    %cst_9 = arith.constant dense<0.000000e+00> : vector<16x38xf32>
    %24 = tpu.matmul %2, %23, %cst_9 {dimension_numbers = #tpu.dot_dimension_numbers<[1], [0], [0], [1], [0, 0, 1, 1], [], []>} : vector<16x8xbf16>, vector<8x38xbf16>, vector<16x38xf32> -> vector<16x38xf32>
    %25 = vector.broadcast %3 : vector<16x1xf32> to vector<16x38xf32>
    %26 = arith.addf %24, %25 : vector<16x38xf32>
    %27 = arith.truncf %26 : vector<16x38xf32> to vector<16x38xbf16>
    %28 = vector.extract_strided_slice %1 {offsets = [4, 0, 0], sizes = [1, 8, 38], strides = [1, 1, 1]} : vector<9x8x38xbf16> to vector<1x8x38xbf16>
    %29 = vector.shape_cast %28 : vector<1x8x38xbf16> to vector<8x38xbf16>
    %cst_10 = arith.constant dense<0.000000e+00> : vector<16x38xf32>
    %30 = tpu.matmul %2, %29, %cst_10 {dimension_numbers = #tpu.dot_dimension_numbers<[1], [0], [0], [1], [0, 0, 1, 1], [], []>} : vector<16x8xbf16>, vector<8x38xbf16>, vector<16x38xf32> -> vector<16x38xf32>
    %31 = vector.broadcast %3 : vector<16x1xf32> to vector<16x38xf32>
    %32 = arith.addf %30, %31 : vector<16x38xf32>
    %33 = arith.truncf %32 : vector<16x38xf32> to vector<16x38xbf16>
    %34 = vector.extract_strided_slice %1 {offsets = [5, 0, 0], sizes = [1, 8, 38], strides = [1, 1, 1]} : vector<9x8x38xbf16> to vector<1x8x38xbf16>
    %35 = vector.shape_cast %34 : vector<1x8x38xbf16> to vector<8x38xbf16>
    %cst_11 = arith.constant dense<0.000000e+00> : vector<16x38xf32>
    %36 = tpu.matmul %2, %35, %cst_11 {dimension_numbers = #tpu.dot_dimension_numbers<[1], [0], [0], [1], [0, 0, 1, 1], [], []>} : vector<16x8xbf16>, vector<8x38xbf16>, vector<16x38xf32> -> vector<16x38xf32>
    %37 = vector.broadcast %3 : vector<16x1xf32> to vector<16x38xf32>
    %38 = arith.addf %36, %37 : vector<16x38xf32>
    %39 = arith.truncf %38 : vector<16x38xf32> to vector<16x38xbf16>
    %40 = vector.extract_strided_slice %1 {offsets = [6, 0, 0], sizes = [1, 8, 38], strides = [1, 1, 1]} : vector<9x8x38xbf16> to vector<1x8x38xbf16>
    %41 = vector.shape_cast %40 : vector<1x8x38xbf16> to vector<8x38xbf16>
    %cst_12 = arith.constant dense<0.000000e+00> : vector<16x38xf32>
    %42 = tpu.matmul %2, %41, %cst_12 {dimension_numbers = #tpu.dot_dimension_numbers<[1], [0], [0], [1], [0, 0, 1, 1], [], []>} : vector<16x8xbf16>, vector<8x38xbf16>, vector<16x38xf32> -> vector<16x38xf32>
    %43 = vector.broadcast %3 : vector<16x1xf32> to vector<16x38xf32>
    %44 = arith.addf %42, %43 : vector<16x38xf32>
    %45 = arith.truncf %44 : vector<16x38xf32> to vector<16x38xbf16>
    %46 = vector.extract_strided_slice %1 {offsets = [7, 0, 0], sizes = [1, 8, 38], strides = [1, 1, 1]} : vector<9x8x38xbf16> to vector<1x8x38xbf16>
    %47 = vector.shape_cast %46 : vector<1x8x38xbf16> to vector<8x38xbf16>
    %cst_13 = arith.constant dense<0.000000e+00> : vector<16x38xf32>
    %48 = tpu.matmul %2, %47, %cst_13 {dimension_numbers = #tpu.dot_dimension_numbers<[1], [0], [0], [1], [0, 0, 1, 1], [], []>} : vector<16x8xbf16>, vector<8x38xbf16>, vector<16x38xf32> -> vector<16x38xf32>
    %49 = vector.broadcast %3 : vector<16x1xf32> to vector<16x38xf32>
    %50 = arith.addf %48, %49 : vector<16x38xf32>
    %51 = arith.truncf %50 : vector<16x38xf32> to vector<16x38xbf16>
    %52 = vector.extract_strided_slice %1 {offsets = [8, 0, 0], sizes = [1, 8, 38], strides = [1, 1, 1]} : vector<9x8x38xbf16> to vector<1x8x38xbf16>
    %53 = vector.shape_cast %52 : vector<1x8x38xbf16> to vector<8x38xbf16>
    %cst_14 = arith.constant dense<0.000000e+00> : vector<16x38xf32>
    %54 = tpu.matmul %2, %53, %cst_14 {dimension_numbers = #tpu.dot_dimension_numbers<[1], [0], [0], [1], [0, 0, 1, 1], [], []>} : vector<16x8xbf16>, vector<8x38xbf16>, vector<16x38xf32> -> vector<16x38xf32>
    %55 = vector.broadcast %3 : vector<16x1xf32> to vector<16x38xf32>
    %56 = arith.addf %54, %55 : vector<16x38xf32>
    %57 = arith.truncf %56 : vector<16x38xf32> to vector<16x38xbf16>
    %c0_15 = arith.constant 0 : index
    %c0_16 = arith.constant 0 : index
    %c0_17 = arith.constant 0 : index
    %58 = vector.load %arg4[%c0_15, %c0_16, %c0_17] : memref<3x16x16xbf16, #tpu.memory_space<vmem>>, vector<3x16x16xbf16>
    %c0_18 = arith.constant 0 : index
    %c0_19 = arith.constant 0 : index
    %59 = vector.load %arg5[%c0_18, %c0_19] : memref<16x1xf32, #tpu.memory_space<vmem>>, vector<16x1xf32>
    %60 = vector.extract_strided_slice %58 {offsets = [0, 0, 0], sizes = [1, 16, 16], strides = [1, 1, 1]} : vector<3x16x16xbf16> to vector<1x16x16xbf16>
    %61 = vector.shape_cast %60 : vector<1x16x16xbf16> to vector<16x16xbf16>
    %62 = vector.extract_strided_slice %9 {offsets = [0, 0], sizes = [16, 37], strides = [1, 1]} : vector<16x38xbf16> to vector<16x37xbf16>
    %cst_20 = arith.constant dense<0.000000e+00> : vector<16x37xf32>
    %63 = tpu.matmul %61, %62, %cst_20 {dimension_numbers = #tpu.dot_dimension_numbers<[1], [0], [0], [1], [0, 0, 1, 1], [], []>} : vector<16x16xbf16>, vector<16x37xbf16>, vector<16x37xf32> -> vector<16x37xf32>
    %64 = vector.extract_strided_slice %58 {offsets = [1, 0, 0], sizes = [1, 16, 16], strides = [1, 1, 1]} : vector<3x16x16xbf16> to vector<1x16x16xbf16>
    %65 = vector.shape_cast %64 : vector<1x16x16xbf16> to vector<16x16xbf16>
    %66 = vector.extract_strided_slice %15 {offsets = [0, 0], sizes = [16, 37], strides = [1, 1]} : vector<16x38xbf16> to vector<16x37xbf16>
    %cst_21 = arith.constant dense<0.000000e+00> : vector<16x37xf32>
    %67 = tpu.matmul %65, %66, %cst_21 {dimension_numbers = #tpu.dot_dimension_numbers<[1], [0], [0], [1], [0, 0, 1, 1], [], []>} : vector<16x16xbf16>, vector<16x37xbf16>, vector<16x37xf32> -> vector<16x37xf32>
    %68 = arith.addf %63, %67 : vector<16x37xf32>
    %69 = vector.extract_strided_slice %58 {offsets = [2, 0, 0], sizes = [1, 16, 16], strides = [1, 1, 1]} : vector<3x16x16xbf16> to vector<1x16x16xbf16>
    %70 = vector.shape_cast %69 : vector<1x16x16xbf16> to vector<16x16xbf16>
    %71 = vector.extract_strided_slice %21 {offsets = [0, 0], sizes = [16, 37], strides = [1, 1]} : vector<16x38xbf16> to vector<16x37xbf16>
    %cst_22 = arith.constant dense<0.000000e+00> : vector<16x37xf32>
    %72 = tpu.matmul %70, %71, %cst_22 {dimension_numbers = #tpu.dot_dimension_numbers<[1], [0], [0], [1], [0, 0, 1, 1], [], []>} : vector<16x16xbf16>, vector<16x37xbf16>, vector<16x37xf32> -> vector<16x37xf32>
    %73 = arith.addf %68, %72 : vector<16x37xf32>
    %74 = vector.broadcast %59 : vector<16x1xf32> to vector<16x37xf32>
    %75 = arith.addf %73, %74 : vector<16x37xf32>
    %cst_23 = arith.constant 0.000000e+00 : f32
    %76 = vector.broadcast %cst_23 : f32 to vector<16x37xf32>
    %77 = arith.maximumf %75, %76 : vector<16x37xf32>
    %78 = arith.truncf %77 : vector<16x37xf32> to vector<16x37xbf16>
    %79 = vector.extract_strided_slice %58 {offsets = [0, 0, 0], sizes = [1, 16, 16], strides = [1, 1, 1]} : vector<3x16x16xbf16> to vector<1x16x16xbf16>
    %80 = vector.shape_cast %79 : vector<1x16x16xbf16> to vector<16x16xbf16>
    %81 = vector.extract_strided_slice %15 {offsets = [0, 0], sizes = [16, 37], strides = [1, 1]} : vector<16x38xbf16> to vector<16x37xbf16>
    %cst_24 = arith.constant dense<0.000000e+00> : vector<16x37xf32>
    %82 = tpu.matmul %80, %81, %cst_24 {dimension_numbers = #tpu.dot_dimension_numbers<[1], [0], [0], [1], [0, 0, 1, 1], [], []>} : vector<16x16xbf16>, vector<16x37xbf16>, vector<16x37xf32> -> vector<16x37xf32>
    %83 = vector.extract_strided_slice %58 {offsets = [1, 0, 0], sizes = [1, 16, 16], strides = [1, 1, 1]} : vector<3x16x16xbf16> to vector<1x16x16xbf16>
    %84 = vector.shape_cast %83 : vector<1x16x16xbf16> to vector<16x16xbf16>
    %85 = vector.extract_strided_slice %21 {offsets = [0, 0], sizes = [16, 37], strides = [1, 1]} : vector<16x38xbf16> to vector<16x37xbf16>
    %cst_25 = arith.constant dense<0.000000e+00> : vector<16x37xf32>
    %86 = tpu.matmul %84, %85, %cst_25 {dimension_numbers = #tpu.dot_dimension_numbers<[1], [0], [0], [1], [0, 0, 1, 1], [], []>} : vector<16x16xbf16>, vector<16x37xbf16>, vector<16x37xf32> -> vector<16x37xf32>
    %87 = arith.addf %82, %86 : vector<16x37xf32>
    %88 = vector.extract_strided_slice %58 {offsets = [2, 0, 0], sizes = [1, 16, 16], strides = [1, 1, 1]} : vector<3x16x16xbf16> to vector<1x16x16xbf16>
    %89 = vector.shape_cast %88 : vector<1x16x16xbf16> to vector<16x16xbf16>
    %90 = vector.extract_strided_slice %27 {offsets = [0, 0], sizes = [16, 37], strides = [1, 1]} : vector<16x38xbf16> to vector<16x37xbf16>
    %cst_26 = arith.constant dense<0.000000e+00> : vector<16x37xf32>
    %91 = tpu.matmul %89, %90, %cst_26 {dimension_numbers = #tpu.dot_dimension_numbers<[1], [0], [0], [1], [0, 0, 1, 1], [], []>} : vector<16x16xbf16>, vector<16x37xbf16>, vector<16x37xf32> -> vector<16x37xf32>
    %92 = arith.addf %87, %91 : vector<16x37xf32>
    %93 = vector.broadcast %59 : vector<16x1xf32> to vector<16x37xf32>
    %94 = arith.addf %92, %93 : vector<16x37xf32>
    %cst_27 = arith.constant 0.000000e+00 : f32
    %95 = vector.broadcast %cst_27 : f32 to vector<16x37xf32>
    %96 = arith.maximumf %94, %95 : vector<16x37xf32>
    %97 = arith.truncf %96 : vector<16x37xf32> to vector<16x37xbf16>
    %98 = vector.extract_strided_slice %58 {offsets = [0, 0, 0], sizes = [1, 16, 16], strides = [1, 1, 1]} : vector<3x16x16xbf16> to vector<1x16x16xbf16>
    %99 = vector.shape_cast %98 : vector<1x16x16xbf16> to vector<16x16xbf16>
    %100 = vector.extract_strided_slice %21 {offsets = [0, 0], sizes = [16, 37], strides = [1, 1]} : vector<16x38xbf16> to vector<16x37xbf16>
    %cst_28 = arith.constant dense<0.000000e+00> : vector<16x37xf32>
    %101 = tpu.matmul %99, %100, %cst_28 {dimension_numbers = #tpu.dot_dimension_numbers<[1], [0], [0], [1], [0, 0, 1, 1], [], []>} : vector<16x16xbf16>, vector<16x37xbf16>, vector<16x37xf32> -> vector<16x37xf32>
    %102 = vector.extract_strided_slice %58 {offsets = [1, 0, 0], sizes = [1, 16, 16], strides = [1, 1, 1]} : vector<3x16x16xbf16> to vector<1x16x16xbf16>
    %103 = vector.shape_cast %102 : vector<1x16x16xbf16> to vector<16x16xbf16>
    %104 = vector.extract_strided_slice %27 {offsets = [0, 0], sizes = [16, 37], strides = [1, 1]} : vector<16x38xbf16> to vector<16x37xbf16>
    %cst_29 = arith.constant dense<0.000000e+00> : vector<16x37xf32>
    %105 = tpu.matmul %103, %104, %cst_29 {dimension_numbers = #tpu.dot_dimension_numbers<[1], [0], [0], [1], [0, 0, 1, 1], [], []>} : vector<16x16xbf16>, vector<16x37xbf16>, vector<16x37xf32> -> vector<16x37xf32>
    %106 = arith.addf %101, %105 : vector<16x37xf32>
    %107 = vector.extract_strided_slice %58 {offsets = [2, 0, 0], sizes = [1, 16, 16], strides = [1, 1, 1]} : vector<3x16x16xbf16> to vector<1x16x16xbf16>
    %108 = vector.shape_cast %107 : vector<1x16x16xbf16> to vector<16x16xbf16>
    %109 = vector.extract_strided_slice %33 {offsets = [0, 0], sizes = [16, 37], strides = [1, 1]} : vector<16x38xbf16> to vector<16x37xbf16>
    %cst_30 = arith.constant dense<0.000000e+00> : vector<16x37xf32>
    %110 = tpu.matmul %108, %109, %cst_30 {dimension_numbers = #tpu.dot_dimension_numbers<[1], [0], [0], [1], [0, 0, 1, 1], [], []>} : vector<16x16xbf16>, vector<16x37xbf16>, vector<16x37xf32> -> vector<16x37xf32>
    %111 = arith.addf %106, %110 : vector<16x37xf32>
    %112 = vector.broadcast %59 : vector<16x1xf32> to vector<16x37xf32>
    %113 = arith.addf %111, %112 : vector<16x37xf32>
    %cst_31 = arith.constant 0.000000e+00 : f32
    %114 = vector.broadcast %cst_31 : f32 to vector<16x37xf32>
    %115 = arith.maximumf %113, %114 : vector<16x37xf32>
    %116 = arith.truncf %115 : vector<16x37xf32> to vector<16x37xbf16>
    %117 = vector.extract_strided_slice %58 {offsets = [0, 0, 0], sizes = [1, 16, 16], strides = [1, 1, 1]} : vector<3x16x16xbf16> to vector<1x16x16xbf16>
    %118 = vector.shape_cast %117 : vector<1x16x16xbf16> to vector<16x16xbf16>
    %119 = vector.extract_strided_slice %27 {offsets = [0, 0], sizes = [16, 37], strides = [1, 1]} : vector<16x38xbf16> to vector<16x37xbf16>
    %cst_32 = arith.constant dense<0.000000e+00> : vector<16x37xf32>
    %120 = tpu.matmul %118, %119, %cst_32 {dimension_numbers = #tpu.dot_dimension_numbers<[1], [0], [0], [1], [0, 0, 1, 1], [], []>} : vector<16x16xbf16>, vector<16x37xbf16>, vector<16x37xf32> -> vector<16x37xf32>
    %121 = vector.extract_strided_slice %58 {offsets = [1, 0, 0], sizes = [1, 16, 16], strides = [1, 1, 1]} : vector<3x16x16xbf16> to vector<1x16x16xbf16>
    %122 = vector.shape_cast %121 : vector<1x16x16xbf16> to vector<16x16xbf16>
    %123 = vector.extract_strided_slice %33 {offsets = [0, 0], sizes = [16, 37], strides = [1, 1]} : vector<16x38xbf16> to vector<16x37xbf16>
    %cst_33 = arith.constant dense<0.000000e+00> : vector<16x37xf32>
    %124 = tpu.matmul %122, %123, %cst_33 {dimension_numbers = #tpu.dot_dimension_numbers<[1], [0], [0], [1], [0, 0, 1, 1], [], []>} : vector<16x16xbf16>, vector<16x37xbf16>, vector<16x37xf32> -> vector<16x37xf32>
    %125 = arith.addf %120, %124 : vector<16x37xf32>
    %126 = vector.extract_strided_slice %58 {offsets = [2, 0, 0], sizes = [1, 16, 16], strides = [1, 1, 1]} : vector<3x16x16xbf16> to vector<1x16x16xbf16>
    %127 = vector.shape_cast %126 : vector<1x16x16xbf16> to vector<16x16xbf16>
    %128 = vector.extract_strided_slice %39 {offsets = [0, 0], sizes = [16, 37], strides = [1, 1]} : vector<16x38xbf16> to vector<16x37xbf16>
    %cst_34 = arith.constant dense<0.000000e+00> : vector<16x37xf32>
    %129 = tpu.matmul %127, %128, %cst_34 {dimension_numbers = #tpu.dot_dimension_numbers<[1], [0], [0], [1], [0, 0, 1, 1], [], []>} : vector<16x16xbf16>, vector<16x37xbf16>, vector<16x37xf32> -> vector<16x37xf32>
    %130 = arith.addf %125, %129 : vector<16x37xf32>
    %131 = vector.broadcast %59 : vector<16x1xf32> to vector<16x37xf32>
    %132 = arith.addf %130, %131 : vector<16x37xf32>
    %cst_35 = arith.constant 0.000000e+00 : f32
    %133 = vector.broadcast %cst_35 : f32 to vector<16x37xf32>
    %134 = arith.maximumf %132, %133 : vector<16x37xf32>
    %135 = arith.truncf %134 : vector<16x37xf32> to vector<16x37xbf16>
    %136 = vector.extract_strided_slice %58 {offsets = [0, 0, 0], sizes = [1, 16, 16], strides = [1, 1, 1]} : vector<3x16x16xbf16> to vector<1x16x16xbf16>
    %137 = vector.shape_cast %136 : vector<1x16x16xbf16> to vector<16x16xbf16>
    %138 = vector.extract_strided_slice %33 {offsets = [0, 0], sizes = [16, 37], strides = [1, 1]} : vector<16x38xbf16> to vector<16x37xbf16>
    %cst_36 = arith.constant dense<0.000000e+00> : vector<16x37xf32>
    %139 = tpu.matmul %137, %138, %cst_36 {dimension_numbers = #tpu.dot_dimension_numbers<[1], [0], [0], [1], [0, 0, 1, 1], [], []>} : vector<16x16xbf16>, vector<16x37xbf16>, vector<16x37xf32> -> vector<16x37xf32>
    %140 = vector.extract_strided_slice %58 {offsets = [1, 0, 0], sizes = [1, 16, 16], strides = [1, 1, 1]} : vector<3x16x16xbf16> to vector<1x16x16xbf16>
    %141 = vector.shape_cast %140 : vector<1x16x16xbf16> to vector<16x16xbf16>
    %142 = vector.extract_strided_slice %39 {offsets = [0, 0], sizes = [16, 37], strides = [1, 1]} : vector<16x38xbf16> to vector<16x37xbf16>
    %cst_37 = arith.constant dense<0.000000e+00> : vector<16x37xf32>
    %143 = tpu.matmul %141, %142, %cst_37 {dimension_numbers = #tpu.dot_dimension_numbers<[1], [0], [0], [1], [0, 0, 1, 1], [], []>} : vector<16x16xbf16>, vector<16x37xbf16>, vector<16x37xf32> -> vector<16x37xf32>
    %144 = arith.addf %139, %143 : vector<16x37xf32>
    %145 = vector.extract_strided_slice %58 {offsets = [2, 0, 0], sizes = [1, 16, 16], strides = [1, 1, 1]} : vector<3x16x16xbf16> to vector<1x16x16xbf16>
    %146 = vector.shape_cast %145 : vector<1x16x16xbf16> to vector<16x16xbf16>
    %147 = vector.extract_strided_slice %45 {offsets = [0, 0], sizes = [16, 37], strides = [1, 1]} : vector<16x38xbf16> to vector<16x37xbf16>
    %cst_38 = arith.constant dense<0.000000e+00> : vector<16x37xf32>
    %148 = tpu.matmul %146, %147, %cst_38 {dimension_numbers = #tpu.dot_dimension_numbers<[1], [0], [0], [1], [0, 0, 1, 1], [], []>} : vector<16x16xbf16>, vector<16x37xbf16>, vector<16x37xf32> -> vector<16x37xf32>
    %149 = arith.addf %144, %148 : vector<16x37xf32>
    %150 = vector.broadcast %59 : vector<16x1xf32> to vector<16x37xf32>
    %151 = arith.addf %149, %150 : vector<16x37xf32>
    %cst_39 = arith.constant 0.000000e+00 : f32
    %152 = vector.broadcast %cst_39 : f32 to vector<16x37xf32>
    %153 = arith.maximumf %151, %152 : vector<16x37xf32>
    %154 = arith.truncf %153 : vector<16x37xf32> to vector<16x37xbf16>
    %155 = vector.extract_strided_slice %58 {offsets = [0, 0, 0], sizes = [1, 16, 16], strides = [1, 1, 1]} : vector<3x16x16xbf16> to vector<1x16x16xbf16>
    %156 = vector.shape_cast %155 : vector<1x16x16xbf16> to vector<16x16xbf16>
    %157 = vector.extract_strided_slice %39 {offsets = [0, 0], sizes = [16, 37], strides = [1, 1]} : vector<16x38xbf16> to vector<16x37xbf16>
    %cst_40 = arith.constant dense<0.000000e+00> : vector<16x37xf32>
    %158 = tpu.matmul %156, %157, %cst_40 {dimension_numbers = #tpu.dot_dimension_numbers<[1], [0], [0], [1], [0, 0, 1, 1], [], []>} : vector<16x16xbf16>, vector<16x37xbf16>, vector<16x37xf32> -> vector<16x37xf32>
    %159 = vector.extract_strided_slice %58 {offsets = [1, 0, 0], sizes = [1, 16, 16], strides = [1, 1, 1]} : vector<3x16x16xbf16> to vector<1x16x16xbf16>
    %160 = vector.shape_cast %159 : vector<1x16x16xbf16> to vector<16x16xbf16>
    %161 = vector.extract_strided_slice %45 {offsets = [0, 0], sizes = [16, 37], strides = [1, 1]} : vector<16x38xbf16> to vector<16x37xbf16>
    %cst_41 = arith.constant dense<0.000000e+00> : vector<16x37xf32>
    %162 = tpu.matmul %160, %161, %cst_41 {dimension_numbers = #tpu.dot_dimension_numbers<[1], [0], [0], [1], [0, 0, 1, 1], [], []>} : vector<16x16xbf16>, vector<16x37xbf16>, vector<16x37xf32> -> vector<16x37xf32>
    %163 = arith.addf %158, %162 : vector<16x37xf32>
    %164 = vector.extract_strided_slice %58 {offsets = [2, 0, 0], sizes = [1, 16, 16], strides = [1, 1, 1]} : vector<3x16x16xbf16> to vector<1x16x16xbf16>
    %165 = vector.shape_cast %164 : vector<1x16x16xbf16> to vector<16x16xbf16>
    %166 = vector.extract_strided_slice %51 {offsets = [0, 0], sizes = [16, 37], strides = [1, 1]} : vector<16x38xbf16> to vector<16x37xbf16>
    %cst_42 = arith.constant dense<0.000000e+00> : vector<16x37xf32>
    %167 = tpu.matmul %165, %166, %cst_42 {dimension_numbers = #tpu.dot_dimension_numbers<[1], [0], [0], [1], [0, 0, 1, 1], [], []>} : vector<16x16xbf16>, vector<16x37xbf16>, vector<16x37xf32> -> vector<16x37xf32>
    %168 = arith.addf %163, %167 : vector<16x37xf32>
    %169 = vector.broadcast %59 : vector<16x1xf32> to vector<16x37xf32>
    %170 = arith.addf %168, %169 : vector<16x37xf32>
    %cst_43 = arith.constant 0.000000e+00 : f32
    %171 = vector.broadcast %cst_43 : f32 to vector<16x37xf32>
    %172 = arith.maximumf %170, %171 : vector<16x37xf32>
    %173 = arith.truncf %172 : vector<16x37xf32> to vector<16x37xbf16>
    %174 = vector.extract_strided_slice %58 {offsets = [0, 0, 0], sizes = [1, 16, 16], strides = [1, 1, 1]} : vector<3x16x16xbf16> to vector<1x16x16xbf16>
    %175 = vector.shape_cast %174 : vector<1x16x16xbf16> to vector<16x16xbf16>
    %176 = vector.extract_strided_slice %45 {offsets = [0, 0], sizes = [16, 37], strides = [1, 1]} : vector<16x38xbf16> to vector<16x37xbf16>
    %cst_44 = arith.constant dense<0.000000e+00> : vector<16x37xf32>
    %177 = tpu.matmul %175, %176, %cst_44 {dimension_numbers = #tpu.dot_dimension_numbers<[1], [0], [0], [1], [0, 0, 1, 1], [], []>} : vector<16x16xbf16>, vector<16x37xbf16>, vector<16x37xf32> -> vector<16x37xf32>
    %178 = vector.extract_strided_slice %58 {offsets = [1, 0, 0], sizes = [1, 16, 16], strides = [1, 1, 1]} : vector<3x16x16xbf16> to vector<1x16x16xbf16>
    %179 = vector.shape_cast %178 : vector<1x16x16xbf16> to vector<16x16xbf16>
    %180 = vector.extract_strided_slice %51 {offsets = [0, 0], sizes = [16, 37], strides = [1, 1]} : vector<16x38xbf16> to vector<16x37xbf16>
    %cst_45 = arith.constant dense<0.000000e+00> : vector<16x37xf32>
    %181 = tpu.matmul %179, %180, %cst_45 {dimension_numbers = #tpu.dot_dimension_numbers<[1], [0], [0], [1], [0, 0, 1, 1], [], []>} : vector<16x16xbf16>, vector<16x37xbf16>, vector<16x37xf32> -> vector<16x37xf32>
    %182 = arith.addf %177, %181 : vector<16x37xf32>
    %183 = vector.extract_strided_slice %58 {offsets = [2, 0, 0], sizes = [1, 16, 16], strides = [1, 1, 1]} : vector<3x16x16xbf16> to vector<1x16x16xbf16>
    %184 = vector.shape_cast %183 : vector<1x16x16xbf16> to vector<16x16xbf16>
    %185 = vector.extract_strided_slice %57 {offsets = [0, 0], sizes = [16, 37], strides = [1, 1]} : vector<16x38xbf16> to vector<16x37xbf16>
    %cst_46 = arith.constant dense<0.000000e+00> : vector<16x37xf32>
    %186 = tpu.matmul %184, %185, %cst_46 {dimension_numbers = #tpu.dot_dimension_numbers<[1], [0], [0], [1], [0, 0, 1, 1], [], []>} : vector<16x16xbf16>, vector<16x37xbf16>, vector<16x37xf32> -> vector<16x37xf32>
    %187 = arith.addf %182, %186 : vector<16x37xf32>
    %188 = vector.broadcast %59 : vector<16x1xf32> to vector<16x37xf32>
    %189 = arith.addf %187, %188 : vector<16x37xf32>
    %cst_47 = arith.constant 0.000000e+00 : f32
    %190 = vector.broadcast %cst_47 : f32 to vector<16x37xf32>
    %191 = arith.maximumf %189, %190 : vector<16x37xf32>
    %192 = arith.truncf %191 : vector<16x37xf32> to vector<16x37xbf16>
    %193 = vector.extract_strided_slice %58 {offsets = [0, 0, 0], sizes = [1, 16, 16], strides = [1, 1, 1]} : vector<3x16x16xbf16> to vector<1x16x16xbf16>
    %194 = vector.shape_cast %193 : vector<1x16x16xbf16> to vector<16x16xbf16>
    %195 = vector.extract_strided_slice %51 {offsets = [0, 0], sizes = [16, 37], strides = [1, 1]} : vector<16x38xbf16> to vector<16x37xbf16>
    %cst_48 = arith.constant dense<0.000000e+00> : vector<16x37xf32>
    %196 = tpu.matmul %194, %195, %cst_48 {dimension_numbers = #tpu.dot_dimension_numbers<[1], [0], [0], [1], [0, 0, 1, 1], [], []>} : vector<16x16xbf16>, vector<16x37xbf16>, vector<16x37xf32> -> vector<16x37xf32>
    %197 = vector.extract_strided_slice %58 {offsets = [1, 0, 0], sizes = [1, 16, 16], strides = [1, 1, 1]} : vector<3x16x16xbf16> to vector<1x16x16xbf16>
    %198 = vector.shape_cast %197 : vector<1x16x16xbf16> to vector<16x16xbf16>
    %199 = vector.extract_strided_slice %57 {offsets = [0, 0], sizes = [16, 37], strides = [1, 1]} : vector<16x38xbf16> to vector<16x37xbf16>
    %cst_49 = arith.constant dense<0.000000e+00> : vector<16x37xf32>
    %200 = tpu.matmul %198, %199, %cst_49 {dimension_numbers = #tpu.dot_dimension_numbers<[1], [0], [0], [1], [0, 0, 1, 1], [], []>} : vector<16x16xbf16>, vector<16x37xbf16>, vector<16x37xf32> -> vector<16x37xf32>
    %201 = arith.addf %196, %200 : vector<16x37xf32>
    %202 = vector.extract_strided_slice %58 {offsets = [2, 0, 0], sizes = [1, 16, 16], strides = [1, 1, 1]} : vector<3x16x16xbf16> to vector<1x16x16xbf16>
    %203 = vector.shape_cast %202 : vector<1x16x16xbf16> to vector<16x16xbf16>
    %204 = vector.extract_strided_slice %9 {offsets = [0, 1], sizes = [16, 37], strides = [1, 1]} : vector<16x38xbf16> to vector<16x37xbf16>
    %cst_50 = arith.constant dense<0.000000e+00> : vector<16x37xf32>
    %205 = tpu.matmul %203, %204, %cst_50 {dimension_numbers = #tpu.dot_dimension_numbers<[1], [0], [0], [1], [0, 0, 1, 1], [], []>} : vector<16x16xbf16>, vector<16x37xbf16>, vector<16x37xf32> -> vector<16x37xf32>
    %206 = arith.addf %201, %205 : vector<16x37xf32>
    %207 = vector.broadcast %59 : vector<16x1xf32> to vector<16x37xf32>
    %208 = arith.addf %206, %207 : vector<16x37xf32>
    %cst_51 = arith.constant 0.000000e+00 : f32
    %209 = vector.broadcast %cst_51 : f32 to vector<16x37xf32>
    %210 = arith.maximumf %208, %209 : vector<16x37xf32>
    %211 = arith.truncf %210 : vector<16x37xf32> to vector<16x37xbf16>
    %212 = vector.extract_strided_slice %58 {offsets = [0, 0, 0], sizes = [1, 16, 16], strides = [1, 1, 1]} : vector<3x16x16xbf16> to vector<1x16x16xbf16>
    %213 = vector.shape_cast %212 : vector<1x16x16xbf16> to vector<16x16xbf16>
    %214 = vector.extract_strided_slice %57 {offsets = [0, 0], sizes = [16, 37], strides = [1, 1]} : vector<16x38xbf16> to vector<16x37xbf16>
    %cst_52 = arith.constant dense<0.000000e+00> : vector<16x37xf32>
    %215 = tpu.matmul %213, %214, %cst_52 {dimension_numbers = #tpu.dot_dimension_numbers<[1], [0], [0], [1], [0, 0, 1, 1], [], []>} : vector<16x16xbf16>, vector<16x37xbf16>, vector<16x37xf32> -> vector<16x37xf32>
    %216 = vector.extract_strided_slice %58 {offsets = [1, 0, 0], sizes = [1, 16, 16], strides = [1, 1, 1]} : vector<3x16x16xbf16> to vector<1x16x16xbf16>
    %217 = vector.shape_cast %216 : vector<1x16x16xbf16> to vector<16x16xbf16>
    %218 = vector.extract_strided_slice %9 {offsets = [0, 1], sizes = [16, 37], strides = [1, 1]} : vector<16x38xbf16> to vector<16x37xbf16>
    %cst_53 = arith.constant dense<0.000000e+00> : vector<16x37xf32>
    %219 = tpu.matmul %217, %218, %cst_53 {dimension_numbers = #tpu.dot_dimension_numbers<[1], [0], [0], [1], [0, 0, 1, 1], [], []>} : vector<16x16xbf16>, vector<16x37xbf16>, vector<16x37xf32> -> vector<16x37xf32>
    %220 = arith.addf %215, %219 : vector<16x37xf32>
    %221 = vector.extract_strided_slice %58 {offsets = [2, 0, 0], sizes = [1, 16, 16], strides = [1, 1, 1]} : vector<3x16x16xbf16> to vector<1x16x16xbf16>
    %222 = vector.shape_cast %221 : vector<1x16x16xbf16> to vector<16x16xbf16>
    %223 = vector.extract_strided_slice %15 {offsets = [0, 1], sizes = [16, 37], strides = [1, 1]} : vector<16x38xbf16> to vector<16x37xbf16>
    %cst_54 = arith.constant dense<0.000000e+00> : vector<16x37xf32>
    %224 = tpu.matmul %222, %223, %cst_54 {dimension_numbers = #tpu.dot_dimension_numbers<[1], [0], [0], [1], [0, 0, 1, 1], [], []>} : vector<16x16xbf16>, vector<16x37xbf16>, vector<16x37xf32> -> vector<16x37xf32>
    %225 = arith.addf %220, %224 : vector<16x37xf32>
    %226 = vector.broadcast %59 : vector<16x1xf32> to vector<16x37xf32>
    %227 = arith.addf %225, %226 : vector<16x37xf32>
    %cst_55 = arith.constant 0.000000e+00 : f32
    %228 = vector.broadcast %cst_55 : f32 to vector<16x37xf32>
    %229 = arith.maximumf %227, %228 : vector<16x37xf32>
    %230 = arith.truncf %229 : vector<16x37xf32> to vector<16x37xbf16>
    %c0_56 = arith.constant 0 : index
    %c0_57 = arith.constant 0 : index
    %c0_58 = arith.constant 0 : index
    %231 = vector.load %arg6[%c0_56, %c0_57, %c0_58] : memref<3x64x16xbf16, #tpu.memory_space<vmem>>, vector<3x64x16xbf16>
    %c0_59 = arith.constant 0 : index
    %c0_60 = arith.constant 0 : index
    %232 = vector.load %arg7[%c0_59, %c0_60] : memref<64x1xf32, #tpu.memory_space<vmem>>, vector<64x1xf32>
    %233 = vector.extract_strided_slice %231 {offsets = [0, 0, 0], sizes = [1, 64, 16], strides = [1, 1, 1]} : vector<3x64x16xbf16> to vector<1x64x16xbf16>
    %234 = vector.shape_cast %233 : vector<1x64x16xbf16> to vector<64x16xbf16>
    %cst_61 = arith.constant dense<0.000000e+00> : vector<64x37xf32>
    %235 = tpu.matmul %234, %78, %cst_61 {dimension_numbers = #tpu.dot_dimension_numbers<[1], [0], [0], [1], [0, 0, 1, 1], [], []>} : vector<64x16xbf16>, vector<16x37xbf16>, vector<64x37xf32> -> vector<64x37xf32>
    %236 = vector.extract_strided_slice %231 {offsets = [1, 0, 0], sizes = [1, 64, 16], strides = [1, 1, 1]} : vector<3x64x16xbf16> to vector<1x64x16xbf16>
    %237 = vector.shape_cast %236 : vector<1x64x16xbf16> to vector<64x16xbf16>
    %cst_62 = arith.constant dense<0.000000e+00> : vector<64x37xf32>
    %238 = tpu.matmul %237, %97, %cst_62 {dimension_numbers = #tpu.dot_dimension_numbers<[1], [0], [0], [1], [0, 0, 1, 1], [], []>} : vector<64x16xbf16>, vector<16x37xbf16>, vector<64x37xf32> -> vector<64x37xf32>
    %239 = arith.addf %235, %238 : vector<64x37xf32>
    %240 = vector.extract_strided_slice %231 {offsets = [2, 0, 0], sizes = [1, 64, 16], strides = [1, 1, 1]} : vector<3x64x16xbf16> to vector<1x64x16xbf16>
    %241 = vector.shape_cast %240 : vector<1x64x16xbf16> to vector<64x16xbf16>
    %cst_63 = arith.constant dense<0.000000e+00> : vector<64x37xf32>
    %242 = tpu.matmul %241, %116, %cst_63 {dimension_numbers = #tpu.dot_dimension_numbers<[1], [0], [0], [1], [0, 0, 1, 1], [], []>} : vector<64x16xbf16>, vector<16x37xbf16>, vector<64x37xf32> -> vector<64x37xf32>
    %243 = arith.addf %239, %242 : vector<64x37xf32>
    %244 = vector.broadcast %232 : vector<64x1xf32> to vector<64x37xf32>
    %245 = arith.addf %243, %244 : vector<64x37xf32>
    %246 = arith.truncf %245 : vector<64x37xf32> to vector<64x37xbf16>
    %247 = vector.extract_strided_slice %231 {offsets = [0, 0, 0], sizes = [1, 64, 16], strides = [1, 1, 1]} : vector<3x64x16xbf16> to vector<1x64x16xbf16>
    %248 = vector.shape_cast %247 : vector<1x64x16xbf16> to vector<64x16xbf16>
    %cst_64 = arith.constant dense<0.000000e+00> : vector<64x37xf32>
    %249 = tpu.matmul %248, %135, %cst_64 {dimension_numbers = #tpu.dot_dimension_numbers<[1], [0], [0], [1], [0, 0, 1, 1], [], []>} : vector<64x16xbf16>, vector<16x37xbf16>, vector<64x37xf32> -> vector<64x37xf32>
    %250 = vector.extract_strided_slice %231 {offsets = [1, 0, 0], sizes = [1, 64, 16], strides = [1, 1, 1]} : vector<3x64x16xbf16> to vector<1x64x16xbf16>
    %251 = vector.shape_cast %250 : vector<1x64x16xbf16> to vector<64x16xbf16>
    %cst_65 = arith.constant dense<0.000000e+00> : vector<64x37xf32>
    %252 = tpu.matmul %251, %154, %cst_65 {dimension_numbers = #tpu.dot_dimension_numbers<[1], [0], [0], [1], [0, 0, 1, 1], [], []>} : vector<64x16xbf16>, vector<16x37xbf16>, vector<64x37xf32> -> vector<64x37xf32>
    %253 = arith.addf %249, %252 : vector<64x37xf32>
    %254 = vector.extract_strided_slice %231 {offsets = [2, 0, 0], sizes = [1, 64, 16], strides = [1, 1, 1]} : vector<3x64x16xbf16> to vector<1x64x16xbf16>
    %255 = vector.shape_cast %254 : vector<1x64x16xbf16> to vector<64x16xbf16>
    %cst_66 = arith.constant dense<0.000000e+00> : vector<64x37xf32>
    %256 = tpu.matmul %255, %173, %cst_66 {dimension_numbers = #tpu.dot_dimension_numbers<[1], [0], [0], [1], [0, 0, 1, 1], [], []>} : vector<64x16xbf16>, vector<16x37xbf16>, vector<64x37xf32> -> vector<64x37xf32>
    %257 = arith.addf %253, %256 : vector<64x37xf32>
    %258 = vector.broadcast %232 : vector<64x1xf32> to vector<64x37xf32>
    %259 = arith.addf %257, %258 : vector<64x37xf32>
    %260 = arith.truncf %259 : vector<64x37xf32> to vector<64x37xbf16>
    %261 = vector.extract_strided_slice %231 {offsets = [0, 0, 0], sizes = [1, 64, 16], strides = [1, 1, 1]} : vector<3x64x16xbf16> to vector<1x64x16xbf16>
    %262 = vector.shape_cast %261 : vector<1x64x16xbf16> to vector<64x16xbf16>
    %cst_67 = arith.constant dense<0.000000e+00> : vector<64x37xf32>
    %263 = tpu.matmul %262, %192, %cst_67 {dimension_numbers = #tpu.dot_dimension_numbers<[1], [0], [0], [1], [0, 0, 1, 1], [], []>} : vector<64x16xbf16>, vector<16x37xbf16>, vector<64x37xf32> -> vector<64x37xf32>
    %264 = vector.extract_strided_slice %231 {offsets = [1, 0, 0], sizes = [1, 64, 16], strides = [1, 1, 1]} : vector<3x64x16xbf16> to vector<1x64x16xbf16>
    %265 = vector.shape_cast %264 : vector<1x64x16xbf16> to vector<64x16xbf16>
    %cst_68 = arith.constant dense<0.000000e+00> : vector<64x37xf32>
    %266 = tpu.matmul %265, %211, %cst_68 {dimension_numbers = #tpu.dot_dimension_numbers<[1], [0], [0], [1], [0, 0, 1, 1], [], []>} : vector<64x16xbf16>, vector<16x37xbf16>, vector<64x37xf32> -> vector<64x37xf32>
    %267 = arith.addf %263, %266 : vector<64x37xf32>
    %268 = vector.extract_strided_slice %231 {offsets = [2, 0, 0], sizes = [1, 64, 16], strides = [1, 1, 1]} : vector<3x64x16xbf16> to vector<1x64x16xbf16>
    %269 = vector.shape_cast %268 : vector<1x64x16xbf16> to vector<64x16xbf16>
    %cst_69 = arith.constant dense<0.000000e+00> : vector<64x37xf32>
    %270 = tpu.matmul %269, %230, %cst_69 {dimension_numbers = #tpu.dot_dimension_numbers<[1], [0], [0], [1], [0, 0, 1, 1], [], []>} : vector<64x16xbf16>, vector<16x37xbf16>, vector<64x37xf32> -> vector<64x37xf32>
    %271 = arith.addf %267, %270 : vector<64x37xf32>
    %272 = vector.broadcast %232 : vector<64x1xf32> to vector<64x37xf32>
    %273 = arith.addf %271, %272 : vector<64x37xf32>
    %274 = arith.truncf %273 : vector<64x37xf32> to vector<64x37xbf16>
    %c0_70 = arith.constant 0 : index
    %c0_71 = arith.constant 0 : index
    %c0_72 = arith.constant 0 : index
    %275 = vector.load %arg8[%c0_70, %c0_71, %c0_72] : memref<3x64x64xbf16, #tpu.memory_space<vmem>>, vector<3x64x64xbf16>
    %c0_73 = arith.constant 0 : index
    %c0_74 = arith.constant 0 : index
    %276 = vector.load %arg9[%c0_73, %c0_74] : memref<64x1xf32, #tpu.memory_space<vmem>>, vector<64x1xf32>
    %277 = vector.extract_strided_slice %275 {offsets = [0, 0, 0], sizes = [1, 64, 64], strides = [1, 1, 1]} : vector<3x64x64xbf16> to vector<1x64x64xbf16>
    %278 = vector.shape_cast %277 : vector<1x64x64xbf16> to vector<64x64xbf16>
    %279 = vector.extract_strided_slice %246 {offsets = [0, 0], sizes = [64, 36], strides = [1, 1]} : vector<64x37xbf16> to vector<64x36xbf16>
    %cst_75 = arith.constant dense<0.000000e+00> : vector<64x36xf32>
    %280 = tpu.matmul %278, %279, %cst_75 {dimension_numbers = #tpu.dot_dimension_numbers<[1], [0], [0], [1], [0, 0, 1, 1], [], []>} : vector<64x64xbf16>, vector<64x36xbf16>, vector<64x36xf32> -> vector<64x36xf32>
    %281 = vector.extract_strided_slice %275 {offsets = [1, 0, 0], sizes = [1, 64, 64], strides = [1, 1, 1]} : vector<3x64x64xbf16> to vector<1x64x64xbf16>
    %282 = vector.shape_cast %281 : vector<1x64x64xbf16> to vector<64x64xbf16>
    %283 = vector.extract_strided_slice %260 {offsets = [0, 0], sizes = [64, 36], strides = [1, 1]} : vector<64x37xbf16> to vector<64x36xbf16>
    %cst_76 = arith.constant dense<0.000000e+00> : vector<64x36xf32>
    %284 = tpu.matmul %282, %283, %cst_76 {dimension_numbers = #tpu.dot_dimension_numbers<[1], [0], [0], [1], [0, 0, 1, 1], [], []>} : vector<64x64xbf16>, vector<64x36xbf16>, vector<64x36xf32> -> vector<64x36xf32>
    %285 = arith.addf %280, %284 : vector<64x36xf32>
    %286 = vector.extract_strided_slice %275 {offsets = [2, 0, 0], sizes = [1, 64, 64], strides = [1, 1, 1]} : vector<3x64x64xbf16> to vector<1x64x64xbf16>
    %287 = vector.shape_cast %286 : vector<1x64x64xbf16> to vector<64x64xbf16>
    %288 = vector.extract_strided_slice %274 {offsets = [0, 0], sizes = [64, 36], strides = [1, 1]} : vector<64x37xbf16> to vector<64x36xbf16>
    %cst_77 = arith.constant dense<0.000000e+00> : vector<64x36xf32>
    %289 = tpu.matmul %287, %288, %cst_77 {dimension_numbers = #tpu.dot_dimension_numbers<[1], [0], [0], [1], [0, 0, 1, 1], [], []>} : vector<64x64xbf16>, vector<64x36xbf16>, vector<64x36xf32> -> vector<64x36xf32>
    %290 = arith.addf %285, %289 : vector<64x36xf32>
    %291 = vector.extract_strided_slice %275 {offsets = [0, 0, 0], sizes = [1, 64, 64], strides = [1, 1, 1]} : vector<3x64x64xbf16> to vector<1x64x64xbf16>
    %292 = vector.shape_cast %291 : vector<1x64x64xbf16> to vector<64x64xbf16>
    %293 = vector.extract_strided_slice %260 {offsets = [0, 0], sizes = [64, 36], strides = [1, 1]} : vector<64x37xbf16> to vector<64x36xbf16>
    %cst_78 = arith.constant dense<0.000000e+00> : vector<64x36xf32>
    %294 = tpu.matmul %292, %293, %cst_78 {dimension_numbers = #tpu.dot_dimension_numbers<[1], [0], [0], [1], [0, 0, 1, 1], [], []>} : vector<64x64xbf16>, vector<64x36xbf16>, vector<64x36xf32> -> vector<64x36xf32>
    %295 = vector.extract_strided_slice %275 {offsets = [1, 0, 0], sizes = [1, 64, 64], strides = [1, 1, 1]} : vector<3x64x64xbf16> to vector<1x64x64xbf16>
    %296 = vector.shape_cast %295 : vector<1x64x64xbf16> to vector<64x64xbf16>
    %297 = vector.extract_strided_slice %274 {offsets = [0, 0], sizes = [64, 36], strides = [1, 1]} : vector<64x37xbf16> to vector<64x36xbf16>
    %cst_79 = arith.constant dense<0.000000e+00> : vector<64x36xf32>
    %298 = tpu.matmul %296, %297, %cst_79 {dimension_numbers = #tpu.dot_dimension_numbers<[1], [0], [0], [1], [0, 0, 1, 1], [], []>} : vector<64x64xbf16>, vector<64x36xbf16>, vector<64x36xf32> -> vector<64x36xf32>
    %299 = arith.addf %294, %298 : vector<64x36xf32>
    %300 = vector.extract_strided_slice %275 {offsets = [2, 0, 0], sizes = [1, 64, 64], strides = [1, 1, 1]} : vector<3x64x64xbf16> to vector<1x64x64xbf16>
    %301 = vector.shape_cast %300 : vector<1x64x64xbf16> to vector<64x64xbf16>
    %302 = vector.extract_strided_slice %246 {offsets = [0, 1], sizes = [64, 36], strides = [1, 1]} : vector<64x37xbf16> to vector<64x36xbf16>
    %cst_80 = arith.constant dense<0.000000e+00> : vector<64x36xf32>
    %303 = tpu.matmul %301, %302, %cst_80 {dimension_numbers = #tpu.dot_dimension_numbers<[1], [0], [0], [1], [0, 0, 1, 1], [], []>} : vector<64x64xbf16>, vector<64x36xbf16>, vector<64x36xf32> -> vector<64x36xf32>
    %304 = arith.addf %299, %303 : vector<64x36xf32>
    %305 = arith.maximumf %290, %304 : vector<64x36xf32>
    %306 = vector.extract_strided_slice %275 {offsets = [0, 0, 0], sizes = [1, 64, 64], strides = [1, 1, 1]} : vector<3x64x64xbf16> to vector<1x64x64xbf16>
    %307 = vector.shape_cast %306 : vector<1x64x64xbf16> to vector<64x64xbf16>
    %308 = vector.extract_strided_slice %274 {offsets = [0, 0], sizes = [64, 36], strides = [1, 1]} : vector<64x37xbf16> to vector<64x36xbf16>
    %cst_81 = arith.constant dense<0.000000e+00> : vector<64x36xf32>
    %309 = tpu.matmul %307, %308, %cst_81 {dimension_numbers = #tpu.dot_dimension_numbers<[1], [0], [0], [1], [0, 0, 1, 1], [], []>} : vector<64x64xbf16>, vector<64x36xbf16>, vector<64x36xf32> -> vector<64x36xf32>
    %310 = vector.extract_strided_slice %275 {offsets = [1, 0, 0], sizes = [1, 64, 64], strides = [1, 1, 1]} : vector<3x64x64xbf16> to vector<1x64x64xbf16>
    %311 = vector.shape_cast %310 : vector<1x64x64xbf16> to vector<64x64xbf16>
    %312 = vector.extract_strided_slice %246 {offsets = [0, 1], sizes = [64, 36], strides = [1, 1]} : vector<64x37xbf16> to vector<64x36xbf16>
    %cst_82 = arith.constant dense<0.000000e+00> : vector<64x36xf32>
    %313 = tpu.matmul %311, %312, %cst_82 {dimension_numbers = #tpu.dot_dimension_numbers<[1], [0], [0], [1], [0, 0, 1, 1], [], []>} : vector<64x64xbf16>, vector<64x36xbf16>, vector<64x36xf32> -> vector<64x36xf32>
    %314 = arith.addf %309, %313 : vector<64x36xf32>
    %315 = vector.extract_strided_slice %275 {offsets = [2, 0, 0], sizes = [1, 64, 64], strides = [1, 1, 1]} : vector<3x64x64xbf16> to vector<1x64x64xbf16>
    %316 = vector.shape_cast %315 : vector<1x64x64xbf16> to vector<64x64xbf16>
    %317 = vector.extract_strided_slice %260 {offsets = [0, 1], sizes = [64, 36], strides = [1, 1]} : vector<64x37xbf16> to vector<64x36xbf16>
    %cst_83 = arith.constant dense<0.000000e+00> : vector<64x36xf32>
    %318 = tpu.matmul %316, %317, %cst_83 {dimension_numbers = #tpu.dot_dimension_numbers<[1], [0], [0], [1], [0, 0, 1, 1], [], []>} : vector<64x64xbf16>, vector<64x36xbf16>, vector<64x36xf32> -> vector<64x36xf32>
    %319 = arith.addf %314, %318 : vector<64x36xf32>
    %320 = arith.maximumf %305, %319 : vector<64x36xf32>
    %321 = vector.broadcast %276 : vector<64x1xf32> to vector<64x36xf32>
    %322 = arith.addf %320, %321 : vector<64x36xf32>
    %cst_84 = arith.constant 0.000000e+00 : f32
    %323 = vector.broadcast %cst_84 : f32 to vector<64x36xf32>
    %324 = arith.maximumf %322, %323 : vector<64x36xf32>
    %325 = arith.truncf %324 : vector<64x36xf32> to vector<64x36xbf16>
    %c0_85 = arith.constant 0 : index
    %c0_86 = arith.constant 0 : index
    %c0_87 = arith.constant 0 : index
    %326 = vector.load %arg10[%c0_85, %c0_86, %c0_87] : memref<1x64x36xbf16, #tpu.memory_space<vmem>>, vector<1x64x36xbf16>
    %327 = vector.shape_cast %326 : vector<1x64x36xbf16> to vector<64x36xbf16>
    %328 = vector.shape_cast %325 : vector<64x36xbf16> to vector<1x64x36xbf16>
    tpu.vector_store %arg10[%c0_85, %c0_86, %c0_87], %328 {strides = array<i32>} : memref<1x64x36xbf16, #tpu.memory_space<vmem>>, vector<1x64x36xbf16>,
    return
  }
  func.func @transform_0(%arg0: i32) -> (i32, i32, i32, i32) {
    %c0_i32 = arith.constant 0 : i32
    %c0_i32_0 = arith.constant 0 : i32
    %c0_i32_1 = arith.constant 0 : i32
    %c0_i32_2 = arith.constant 0 : i32
    return %arg0, %c0_i32, %c0_i32_0, %c0_i32_1 : i32, i32, i32, i32
  }
  func.func @transform_1(%arg0: i32) -> (i32, i32) {
    %c0_i32 = arith.constant 0 : i32
    %c0_i32_0 = arith.constant 0 : i32
    %c0_i32_1 = arith.constant 0 : i32
    return %c0_i32, %c0_i32_0 : i32, i32
  }
  func.func @transform_2(%arg0: i32) -> (i32, i32) {
    %c0_i32 = arith.constant 0 : i32
    %c0_i32_0 = arith.constant 0 : i32
    %c0_i32_1 = arith.constant 0 : i32
    return %c0_i32, %c0_i32_0 : i32, i32
  }
  func.func @transform_3(%arg0: i32) -> (i32, i32, i32) {
    %c0_i32 = arith.constant 0 : i32
    %c0_i32_0 = arith.constant 0 : i32
    %c0_i32_1 = arith.constant 0 : i32
    %c0_i32_2 = arith.constant 0 : i32
    return %c0_i32, %c0_i32_0, %c0_i32_1 : i32, i32, i32
  }
  func.func @transform_4(%arg0: i32) -> (i32, i32) {
    %c0_i32 = arith.constant 0 : i32
    %c0_i32_0 = arith.constant 0 : i32
    %c0_i32_1 = arith.constant 0 : i32
    return %c0_i32, %c0_i32_0 : i32, i32
  }
  func.func @transform_5(%arg0: i32) -> (i32, i32, i32) {
    %c0_i32 = arith.constant 0 : i32
    %c0_i32_0 = arith.constant 0 : i32
    %c0_i32_1 = arith.constant 0 : i32
    %c0_i32_2 = arith.constant 0 : i32
    return %c0_i32, %c0_i32_0, %c0_i32_1 : i32, i32, i32
  }
  func.func @transform_6(%arg0: i32) -> (i32, i32) {
    %c0_i32 = arith.constant 0 : i32
    %c0_i32_0 = arith.constant 0 : i32
    %c0_i32_1 = arith.constant 0 : i32
    return %c0_i32, %c0_i32_0 : i32, i32
  }
  func.func @transform_7(%arg0: i32) -> (i32, i32, i32) {
    %c0_i32 = arith.constant 0 : i32
    %c0_i32_0 = arith.constant 0 : i32
    %c0_i32_1 = arith.constant 0 : i32
    %c0_i32_2 = arith.constant 0 : i32
    return %c0_i32, %c0_i32_0, %c0_i32_1 : i32, i32, i32
  }
  func.func @transform_8(%arg0: i32) -> (i32, i32) {
    %c0_i32 = arith.constant 0 : i32
    %c0_i32_0 = arith.constant 0 : i32
    %c0_i32_1 = arith.constant 0 : i32
    return %c0_i32, %c0_i32_0 : i32, i32
  }
  func.func @transform_9(%arg0: i32) -> (i32, i32, i32) {
    %c0_i32 = arith.constant 0 : i32
    %c0_i32_0 = arith.constant 0 : i32
    %c0_i32_1 = arith.constant 0 : i32
    return %arg0, %c0_i32, %c0_i32_0 : i32, i32, i32
  }
}

module attributes {stable_mosaic.version = 11 : i64} {
  func.func @_fc_stack_kernel(%arg0: i32, %arg1: i32, %arg2: memref<8x2304xbf16, #tpu.memory_space<vmem>>, %arg3: memref<2304x128xbf16, #tpu.memory_space<vmem>>, %arg4: memref<1x128xf32, #tpu.memory_space<vmem>>, %arg5: memref<128x64xbf16, #tpu.memory_space<vmem>>, %arg6: memref<1x64xf32, #tpu.memory_space<vmem>>, %arg7: memref<64x1xbf16, #tpu.memory_space<vmem>>, %arg8: memref<1x1xf32, #tpu.memory_space<vmem>>, %arg9: memref<8x1xf32, #tpu.memory_space<vmem>>, %arg10: memref<8x128xf32, #tpu.memory_space<vmem>>) attributes {dimension_semantics = [#tpu.dimension_semantics<parallel>, #tpu.dimension_semantics<arbitrary>], iteration_bounds = array<i64: 1, 1>, scalar_prefetch = 0 : i64, scratch_operands = 1 : i64, tpu.core_type = #tpu.core_type<tc>, window_params = [{transform_indices = @transform_0, window_bounds = array<i64: 8, 2304>}, {transform_indices = @transform_1, window_bounds = array<i64: 2304, 128>}, {pipeline_mode = #tpu.pipeline_mode<synchronous>, transform_indices = @transform_2, window_bounds = array<i64: 1, 128>}, {pipeline_mode = #tpu.pipeline_mode<synchronous>, transform_indices = @transform_3, window_bounds = array<i64: 128, 64>}, {pipeline_mode = #tpu.pipeline_mode<synchronous>, transform_indices = @transform_4, window_bounds = array<i64: 1, 64>}, {pipeline_mode = #tpu.pipeline_mode<synchronous>, transform_indices = @transform_5, window_bounds = array<i64: 64, 1>}, {pipeline_mode = #tpu.pipeline_mode<synchronous>, transform_indices = @transform_6, window_bounds = array<i64: 1, 1>}, {transform_indices = @transform_7, window_bounds = array<i64: 8, 1>}]} {
    %c0_i32 = arith.constant 0 : i32
    %0 = arith.cmpi eq, %arg1, %c0_i32 : i32
    %1 = arith.extui %0 : i1 to i32
    %c0_i32_0 = arith.constant 0 : i32
    %2 = arith.cmpi ne, %1, %c0_i32_0 : i32
    scf.if %2 {
      %cst_10 = arith.constant 0.000000e+00 : f32
      %12 = vector.broadcast %cst_10 : f32 to vector<8x128xf32>
      %c0_11 = arith.constant 0 : index
      %c0_12 = arith.constant 0 : index
      %13 = vector.load %arg10[%c0_11, %c0_12] : memref<8x128xf32, #tpu.memory_space<vmem>>, vector<8x128xf32>
      tpu.vector_store %arg10[%c0_11, %c0_12], %12 {strides = array<i32>} : memref<8x128xf32, #tpu.memory_space<vmem>>, vector<8x128xf32>,
    } else {
    }
    %c0 = arith.constant 0 : index
    %c0_1 = arith.constant 0 : index
    %3 = vector.load %arg10[%c0, %c0_1] : memref<8x128xf32, #tpu.memory_space<vmem>>, vector<8x128xf32>
    %c0_2 = arith.constant 0 : index
    %c0_3 = arith.constant 0 : index
    %4 = vector.load %arg2[%c0_2, %c0_3] : memref<8x2304xbf16, #tpu.memory_space<vmem>>, vector<8x2304xbf16>
    %c0_4 = arith.constant 0 : index
    %c0_5 = arith.constant 0 : index
    %5 = vector.load %arg3[%c0_4, %c0_5] : memref<2304x128xbf16, #tpu.memory_space<vmem>>, vector<2304x128xbf16>
    %cst = arith.constant dense<0.000000e+00> : vector<8x128xf32>
    %6 = tpu.matmul %4, %5, %cst {dimension_numbers = #tpu.dot_dimension_numbers<[1], [0], [0], [1], [0, 0, 1, 1], [], []>} : vector<8x2304xbf16>, vector<2304x128xbf16>, vector<8x128xf32> -> vector<8x128xf32>
    %7 = arith.addf %3, %6 : vector<8x128xf32>
    %c0_6 = arith.constant 0 : index
    %c0_7 = arith.constant 0 : index
    %8 = vector.load %arg10[%c0_6, %c0_7] : memref<8x128xf32, #tpu.memory_space<vmem>>, vector<8x128xf32>
    tpu.vector_store %arg10[%c0_6, %c0_7], %7 {strides = array<i32>} : memref<8x128xf32, #tpu.memory_space<vmem>>, vector<8x128xf32>,
    %c0_i32_8 = arith.constant 0 : i32
    %9 = arith.cmpi eq, %arg1, %c0_i32_8 : i32
    %10 = arith.extui %9 : i1 to i32
    %c0_i32_9 = arith.constant 0 : i32
    %11 = arith.cmpi ne, %10, %c0_i32_9 : i32
    scf.if %11 {
      %c0_10 = arith.constant 0 : index
      %c0_11 = arith.constant 0 : index
      %12 = vector.load %arg10[%c0_10, %c0_11] : memref<8x128xf32, #tpu.memory_space<vmem>>, vector<8x128xf32>
      %c0_12 = arith.constant 0 : index
      %c0_13 = arith.constant 0 : index
      %13 = vector.load %arg4[%c0_12, %c0_13] : memref<1x128xf32, #tpu.memory_space<vmem>>, vector<1x128xf32>
      %14 = vector.broadcast %13 : vector<1x128xf32> to vector<8x128xf32>
      %15 = arith.addf %12, %14 : vector<8x128xf32>
      %cst_14 = arith.constant 0.000000e+00 : f32
      %16 = vector.broadcast %cst_14 : f32 to vector<8x128xf32>
      %17 = arith.maximumf %15, %16 : vector<8x128xf32>
      %18 = arith.truncf %17 : vector<8x128xf32> to vector<8x128xbf16>
      %c0_15 = arith.constant 0 : index
      %c0_16 = arith.constant 0 : index
      %19 = vector.load %arg5[%c0_15, %c0_16] : memref<128x64xbf16, #tpu.memory_space<vmem>>, vector<128x64xbf16>
      %cst_17 = arith.constant dense<0.000000e+00> : vector<8x64xf32>
      %20 = tpu.matmul %18, %19, %cst_17 {dimension_numbers = #tpu.dot_dimension_numbers<[1], [0], [0], [1], [0, 0, 1, 1], [], []>} : vector<8x128xbf16>, vector<128x64xbf16>, vector<8x64xf32> -> vector<8x64xf32>
      %c0_18 = arith.constant 0 : index
      %c0_19 = arith.constant 0 : index
      %21 = vector.load %arg6[%c0_18, %c0_19] : memref<1x64xf32, #tpu.memory_space<vmem>>, vector<1x64xf32>
      %22 = vector.broadcast %21 : vector<1x64xf32> to vector<8x64xf32>
      %23 = arith.addf %20, %22 : vector<8x64xf32>
      %cst_20 = arith.constant 0.000000e+00 : f32
      %24 = vector.broadcast %cst_20 : f32 to vector<8x64xf32>
      %25 = arith.maximumf %23, %24 : vector<8x64xf32>
      %26 = arith.truncf %25 : vector<8x64xf32> to vector<8x64xbf16>
      %c0_21 = arith.constant 0 : index
      %c0_22 = arith.constant 0 : index
      %27 = vector.load %arg7[%c0_21, %c0_22] : memref<64x1xbf16, #tpu.memory_space<vmem>>, vector<64x1xbf16>
      %cst_23 = arith.constant dense<0.000000e+00> : vector<8x1xf32>
      %28 = tpu.matmul %26, %27, %cst_23 {dimension_numbers = #tpu.dot_dimension_numbers<[1], [0], [0], [1], [0, 0, 1, 1], [], []>} : vector<8x64xbf16>, vector<64x1xbf16>, vector<8x1xf32> -> vector<8x1xf32>
      %c0_24 = arith.constant 0 : index
      %c0_25 = arith.constant 0 : index
      %29 = vector.load %arg8[%c0_24, %c0_25] : memref<1x1xf32, #tpu.memory_space<vmem>>, vector<1x1xf32>
      %30 = vector.broadcast %29 : vector<1x1xf32> to vector<8x1xf32>
      %31 = arith.addf %28, %30 : vector<8x1xf32>
      %c0_26 = arith.constant 0 : index
      %c0_27 = arith.constant 0 : index
      %32 = vector.load %arg9[%c0_26, %c0_27] : memref<8x1xf32, #tpu.memory_space<vmem>>, vector<8x1xf32>
      tpu.vector_store %arg9[%c0_26, %c0_27], %31 {strides = array<i32>} : memref<8x1xf32, #tpu.memory_space<vmem>>, vector<8x1xf32>,
    } else {
    }
    return
  }
  func.func @transform_0(%arg0: i32, %arg1: i32) -> (i32, i32) {
    %c0_i32 = arith.constant 0 : i32
    return %arg0, %arg1 : i32, i32
  }
  func.func @transform_1(%arg0: i32, %arg1: i32) -> (i32, i32) {
    %c0_i32 = arith.constant 0 : i32
    %c0_i32_0 = arith.constant 0 : i32
    return %arg1, %c0_i32 : i32, i32
  }
  func.func @transform_2(%arg0: i32, %arg1: i32) -> (i32, i32) {
    %c0_i32 = arith.constant 0 : i32
    %c0_i32_0 = arith.constant 0 : i32
    %c0_i32_1 = arith.constant 0 : i32
    return %c0_i32, %c0_i32_0 : i32, i32
  }
  func.func @transform_3(%arg0: i32, %arg1: i32) -> (i32, i32) {
    %c0_i32 = arith.constant 0 : i32
    %c0_i32_0 = arith.constant 0 : i32
    %c0_i32_1 = arith.constant 0 : i32
    return %c0_i32, %c0_i32_0 : i32, i32
  }
  func.func @transform_4(%arg0: i32, %arg1: i32) -> (i32, i32) {
    %c0_i32 = arith.constant 0 : i32
    %c0_i32_0 = arith.constant 0 : i32
    %c0_i32_1 = arith.constant 0 : i32
    return %c0_i32, %c0_i32_0 : i32, i32
  }
  func.func @transform_5(%arg0: i32, %arg1: i32) -> (i32, i32) {
    %c0_i32 = arith.constant 0 : i32
    %c0_i32_0 = arith.constant 0 : i32
    %c0_i32_1 = arith.constant 0 : i32
    return %c0_i32, %c0_i32_0 : i32, i32
  }
  func.func @transform_6(%arg0: i32, %arg1: i32) -> (i32, i32) {
    %c0_i32 = arith.constant 0 : i32
    %c0_i32_0 = arith.constant 0 : i32
    %c0_i32_1 = arith.constant 0 : i32
    return %c0_i32, %c0_i32_0 : i32, i32
  }
  func.func @transform_7(%arg0: i32, %arg1: i32) -> (i32, i32) {
    %c0_i32 = arith.constant 0 : i32
    %c0_i32_0 = arith.constant 0 : i32
    return %arg0, %c0_i32 : i32, i32
  }
}

</mosaic_0001>

<llo_original>
// kernel: cnn_forward.2
$region0: #{cnn_forward.2}
  #allocation0 [shape = 'u32[]', space=smem, size = 0x4, offset = 0x4, fixed_abs, tag = 'smem constant byte address 0x4 - core index']
  #allocation1 [shape = 'u32[144,128]{1,0:T(1,128)}', space=vmem, size = 0x12000, scoped, tag = 'internal scratch']
  %s0 = inlined_call_operand.vmem [shape: bf16[2,9,8,38], index: 0, kind: input, shape index: {}]
  %s1 = inlined_call_operand.vmem [shape: bf16[16,8], index: 1, kind: input, shape index: {}]
  %s2 = inlined_call_operand.vmem [shape: f32[16,1], index: 2, kind: input, shape index: {}]
  %s3 = inlined_call_operand.vmem [shape: bf16[3,16,16], index: 3, kind: input, shape index: {}]
  %s4 = inlined_call_operand.vmem [shape: f32[16,1], index: 4, kind: input, shape index: {}]
  %s5 = inlined_call_operand.vmem [shape: bf16[3,64,16], index: 5, kind: input, shape index: {}]
  %s6 = inlined_call_operand.vmem [shape: f32[64,1], index: 6, kind: input, shape index: {}]
  %s7 = inlined_call_operand.vmem [shape: bf16[3,64,64], index: 7, kind: input, shape index: {}]
  %s8 = inlined_call_operand.vmem [shape: f32[64,1], index: 8, kind: input, shape index: {}]
  %s9 = inlined_call_operand.vmem [shape: bf16[2,64,36], index: 9, kind: output, shape index: {}]
  %s10 = sld [smem:[#allocation0]]
  $region69: #{cnn_forward.2} parent=0
    _
  %s12 = ssub.s32 1, %s10
  %s13 = scalar_select 0, %s12, %s10
  loop: start=0, step=1, limit=4
  $region2: #{cnn_forward.2} parent=0 // loop_pre_header
    _
  $region3: #{cnn_forward.2} parent=0 // loop_header
    %s15 = sphi 0, %s19
    %p16 = scmp.ge.s32.totalorder %s15, 4
    %s25 = sphi 0, %s27
    %s28 = sphi 0, %s25
    %s29 = sphi 0, %s28
    %s45 = sphi 0, %s29
    %s49 = sphi 0, %s49
    %s51 = sphi 0, %s49
    %s52 = sphi 0, %s51
    %s66 = sphi 0, %s52
    %s70 = sphi 0, %s70
    %s72 = sphi 0, %s70
    %s73 = sphi 0, %s72
    %s87 = sphi 0, %s73
    %s91 = sphi 0, %s91
    %s93 = sphi 0, %s91
    %s94 = sphi 0, %s93
    %s108 = sphi 0, %s94
    %s112 = sphi 0, %s112
    %s114 = sphi 0, %s112
    %s115 = sphi 0, %s114
    %s129 = sphi 0, %s115
    %s133 = sphi 0, %s133
    %s135 = sphi 0, %s133
    %s136 = sphi 0, %s135
    %s150 = sphi 0, %s136
    %s154 = sphi 0, %s154
    %s156 = sphi 0, %s154
    %s157 = sphi 0, %s156
    %s171 = sphi 0, %s157
    %s175 = sphi 0, %s175
    %s177 = sphi 0, %s175
    %s178 = sphi 0, %s177
    %s192 = sphi 0, %s178
    %s196 = sphi 0, %s196
    %s198 = sphi 0, %s196
    %s199 = sphi 0, %s198
    %s213 = sphi 0, %s199
    %s219 = sphi 0, %s221
    %s222 = sphi 0, %s219
    %s223 = sphi 0, %s222
    %s239 = sphi 0, %s223
  $region4: #{cnn_forward.2} parent=0 // loop_header_branch
    %18 = sbr.rel (%p16) target = $region8
  $region5: #{cnn_forward.2} parent=0 // loop_body
    %s20 = ssub.s32 %s15, 1
    %s21 = ssub.s32 %s15, 2
    %s22 = sadd.s32 %s15, 1
    %s23 = ssub.s32 %s15, %s22
    %p24 = scmp.eq.s32.totalorder %s23, 0
    %s26 = sadd.s32 %s25, 1
    %s27 = scalar_select %p24, %s25, %s26
    %p30 = pneg %p24
    %p31 = scmp.eq.s32.totalorder %s15, 1
    %p32 = por %p30, %p31
    %p33 = scmp.ne.s32.totalorder %s25, %s28
    %p34 = scmp.eq.s32.totalorder %s15, 0
    %p35 = por %p33, %p34
    %p36 = scmp.ne.s32.totalorder %s25, %s28
    %p37 = scmp.eq.s32.totalorder %s20, 1
    %p38 = por %p36, %p37
    %p39 = scmp.ne.s32.totalorder %s28, %s29
    %p40 = scmp.eq.s32.totalorder %s20, 0
    %p41 = por %p39, %p40
    %p42 = scmp.ne.s32.totalorder %s28, %s29
    %p43 = scmp.eq.s32.totalorder %s21, 1
    %p44 = por %p42, %p43
    %p46 = scmp.ne.s32.totalorder %s29, %s45
    %p47 = scmp.eq.s32.totalorder %s21, 0
    %p48 = por %p46, %p47
    %s50 = sadd.s32 %s49, 1
    %p53 = scmp.eq.s32.totalorder %s15, 1
    %p54 = scmp.ne.s32.totalorder %s49, %s51
    %p55 = scmp.eq.s32.totalorder %s15, 0
    %p56 = por %p54, %p55
    %p57 = scmp.ne.s32.totalorder %s49, %s51
    %p58 = scmp.eq.s32.totalorder %s20, 1
    %p59 = por %p57, %p58
    %p60 = scmp.ne.s32.totalorder %s51, %s52
    %p61 = scmp.eq.s32.totalorder %s20, 0
    %p62 = por %p60, %p61
    %p63 = scmp.ne.s32.totalorder %s51, %s52
    %p64 = scmp.eq.s32.totalorder %s21, 1
    %p65 = por %p63, %p64
    %p67 = scmp.ne.s32.totalorder %s52, %s66
    %p68 = scmp.eq.s32.totalorder %s21, 0
    %p69 = por %p67, %p68
    %s71 = sadd.s32 %s70, 1
    %p74 = scmp.eq.s32.totalorder %s15, 1
    %p75 = scmp.ne.s32.totalorder %s70, %s72
    %p76 = scmp.eq.s32.totalorder %s15, 0
    %p77 = por %p75, %p76
    %p78 = scmp.ne.s32.totalorder %s70, %s72
    %p79 = scmp.eq.s32.totalorder %s20, 1
    %p80 = por %p78, %p79
    %p81 = scmp.ne.s32.totalorder %s72, %s73
    %p82 = scmp.eq.s32.totalorder %s20, 0
    %p83 = por %p81, %p82
    %p84 = scmp.ne.s32.totalorder %s72, %s73
    %p85 = scmp.eq.s32.totalorder %s21, 1
    %p86 = por %p84, %p85
    %p88 = scmp.ne.s32.totalorder %s73, %s87
    %p89 = scmp.eq.s32.totalorder %s21, 0
    %p90 = por %p88, %p89
    %s92 = sadd.s32 %s91, 1
    %p95 = scmp.eq.s32.totalorder %s15, 1
    %p96 = scmp.ne.s32.totalorder %s91, %s93
    %p97 = scmp.eq.s32.totalorder %s15, 0
    %p98 = por %p96, %p97
    %p99 = scmp.ne.s32.totalorder %s91, %s93
    %p100 = scmp.eq.s32.totalorder %s20, 1
    %p101 = por %p99, %p100
    %p102 = scmp.ne.s32.totalorder %s93, %s94
    %p103 = scmp.eq.s32.totalorder %s20, 0
    %p104 = por %p102, %p103
    %p105 = scmp.ne.s32.totalorder %s93, %s94
    %p106 = scmp.eq.s32.totalorder %s21, 1
    %p107 = por %p105, %p106
    %p109 = scmp.ne.s32.totalorder %s94, %s108
    %p110 = scmp.eq.s32.totalorder %s21, 0
    %p111 = por %p109, %p110
    %s113 = sadd.s32 %s112, 1
    %p116 = scmp.eq.s32.totalorder %s15, 1
    %p117 = scmp.ne.s32.totalorder %s112, %s114
    %p118 = scmp.eq.s32.totalorder %s15, 0
    %p119 = por %p117, %p118
    %p120 = scmp.ne.s32.totalorder %s112, %s114
    %p121 = scmp.eq.s32.totalorder %s20, 1
    %p122 = por %p120, %p121
    %p123 = scmp.ne.s32.totalorder %s114, %s115
    %p124 = scmp.eq.s32.totalorder %s20, 0
    %p125 = por %p123, %p124
    %p126 = scmp.ne.s32.totalorder %s114, %s115
    %p127 = scmp.eq.s32.totalorder %s21, 1
    %p128 = por %p126, %p127
    %p130 = scmp.ne.s32.totalorder %s115, %s129
    %p131 = scmp.eq.s32.totalorder %s21, 0
    %p132 = por %p130, %p131
    %s134 = sadd.s32 %s133, 1
    %p137 = scmp.eq.s32.totalorder %s15, 1
    %p138 = scmp.ne.s32.totalorder %s133, %s135
    %p139 = scmp.eq.s32.totalorder %s15, 0
    %p140 = por %p138, %p139
    %p141 = scmp.ne.s32.totalorder %s133, %s135
    %p142 = scmp.eq.s32.totalorder %s20, 1
    %p143 = por %p141, %p142
    %p144 = scmp.ne.s32.totalorder %s135, %s136
    %p145 = scmp.eq.s32.totalorder %s20, 0
    %p146 = por %p144, %p145
    %p147 = scmp.ne.s32.totalorder %s135, %s136
    %p148 = scmp.eq.s32.totalorder %s21, 1
    %p149 = por %p147, %p148
    %p151 = scmp.ne.s32.totalorder %s136, %s150
    %p152 = scmp.eq.s32.totalorder %s21, 0
    %p153 = por %p151, %p152
    %s155 = sadd.s32 %s154, 1
    %p158 = scmp.eq.s32.totalorder %s15, 1
    %p159 = scmp.ne.s32.totalorder %s154, %s156
    %p160 = scmp.eq.s32.totalorder %s15, 0
    %p161 = por %p159, %p160
    %p162 = scmp.ne.s32.totalorder %s154, %s156
    %p163 = scmp.eq.s32.totalorder %s20, 1
    %p164 = por %p162, %p163
    %p165 = scmp.ne.s32.totalorder %s156, %s157
    %p166 = scmp.eq.s32.totalorder %s20, 0
    %p167 = por %p165, %p166
    %p168 = scmp.ne.s32.totalorder %s156, %s157
    %p169 = scmp.eq.s32.totalorder %s21, 1
    %p170 = por %p168, %p169
    %p172 = scmp.ne.s32.totalorder %s157, %s171
    %p173 = scmp.eq.s32.totalorder %s21, 0
    %p174 = por %p172, %p173
    %s176 = sadd.s32 %s175, 1
    %p179 = scmp.eq.s32.totalorder %s15, 1
    %p180 = scmp.ne.s32.totalorder %s175, %s177
    %p181 = scmp.eq.s32.totalorder %s15, 0
    %p182 = por %p180, %p181
    %p183 = scmp.ne.s32.totalorder %s175, %s177
    %p184 = scmp.eq.s32.totalorder %s20, 1
    %p185 = por %p183, %p184
    %p186 = scmp.ne.s32.totalorder %s177, %s178
    %p187 = scmp.eq.s32.totalorder %s20, 0
    %p188 = por %p186, %p187
    %p189 = scmp.ne.s32.totalorder %s177, %s178
    %p190 = scmp.eq.s32.totalorder %s21, 1
    %p191 = por %p189, %p190
    %p193 = scmp.ne.s32.totalorder %s178, %s192
    %p194 = scmp.eq.s32.totalorder %s21, 0
    %p195 = por %p193, %p194
    %s197 = sadd.s32 %s196, 1
    %p200 = scmp.eq.s32.totalorder %s15, 1
    %p201 = scmp.ne.s32.totalorder %s196, %s198
    %p202 = scmp.eq.s32.totalorder %s15, 0
    %p203 = por %p201, %p202
    %p204 = scmp.ne.s32.totalorder %s196, %s198
    %p205 = scmp.eq.s32.totalorder %s20, 1
    %p206 = por %p204, %p205
    %p207 = scmp.ne.s32.totalorder %s198, %s199
    %p208 = scmp.eq.s32.totalorder %s20, 0
    %p209 = por %p207, %p208
    %p210 = scmp.ne.s32.totalorder %s198, %s199
    %p211 = scmp.eq.s32.totalorder %s21, 1
    %p212 = por %p210, %p211
    %p214 = scmp.ne.s32.totalorder %s199, %s213
    %p215 = scmp.eq.s32.totalorder %s21, 0
    %p216 = por %p214, %p215
    %s217 = ssub.s32 %s15, %s22
    %p218 = scmp.eq.s32.totalorder %s217, 0
    %s220 = sadd.s32 %s219, 1
    %s221 = scalar_select %p218, %s219, %s220
    %p224 = pneg %p218
    %p225 = scmp.eq.s32.totalorder %s15, 1
    %p226 = por %p224, %p225
    %p227 = scmp.ne.s32.totalorder %s219, %s222
    %p228 = scmp.eq.s32.totalorder %s15, 0
    %p229 = por %p227, %p228
    %p230 = scmp.ne.s32.totalorder %s219, %s222
    %p231 = scmp.eq.s32.totalorder %s20, 1
    %p232 = por %p230, %p231
    %p233 = scmp.ne.s32.totalorder %s222, %s223
    %p234 = scmp.eq.s32.totalorder %s20, 0
    %p235 = por %p233, %p234
    %p236 = scmp.ne.s32.totalorder %s222, %s223
    %p237 = scmp.eq.s32.totalorder %s21, 1
    %p238 = por %p236, %p237
    %p240 = scmp.ne.s32.totalorder %s223, %s239
    %p241 = scmp.eq.s32.totalorder %s21, 0
    %p242 = por %p240, %p241
    %p243 = scmp.le.s32.totalorder 1, %s15
    %p244 = scmp.lt.s32.totalorder %s15, 3
    %p245 = pnand %p243, %p244
    %p246 = pneg %p245
    // Predicated region
    $region9: #{cnn_forward.2} parent=5 // pred_check
      _
    $region10: #{cnn_forward.2} parent=5 // pred_check_branch
      %248 = sbr.rel (%p245) target = $region12
    $region11: #{cnn_forward.2} parent=5 // pred_region
      %s249 = ssub.s32 %s15, 1
      // Predicated region
      $region13: #{cnn_forward.2} parent=11 // pred_check
        %p250 = pneg %p62
      $region14: #{cnn_forward.2} parent=11 // pred_check_branch
        %252 = sbr.rel (%p250) target = $region16
      $region15: #{cnn_forward.2} parent=11 // pred_region
        _
      $region16: #{cnn_forward.2} parent=11 // pred_fallthru
        _
      // Predicated region
      $region17: #{cnn_forward.2} parent=11 // pred_check
        %p253 = pneg %p83
      $region18: #{cnn_forward.2} parent=11 // pred_check_branch
        %255 = sbr.rel (%p253) target = $region20
      $region19: #{cnn_forward.2} parent=11 // pred_region
        _
      $region20: #{cnn_forward.2} parent=11 // pred_fallthru
        _
      // Predicated region
      $region21: #{cnn_forward.2} parent=11 // pred_check
        %p256 = pneg %p104
      $region22: #{cnn_forward.2} parent=11 // pred_check_branch
        %258 = sbr.rel (%p256) target = $region24
      $region23: #{cnn_forward.2} parent=11 // pred_region
        _
      $region24: #{cnn_forward.2} parent=11 // pred_fallthru
        _
      // Predicated region
      $region25: #{cnn_forward.2} parent=11 // pred_check
        %p259 = pneg %p125
      $region26: #{cnn_forward.2} parent=11 // pred_check_branch
        %261 = sbr.rel (%p259) target = $region28
      $region27: #{cnn_forward.2} parent=11 // pred_region
        _
      $region28: #{cnn_forward.2} parent=11 // pred_fallthru
        _
      // Predicated region
      $region29: #{cnn_forward.2} parent=11 // pred_check
        %p262 = pneg %p146
      $region30: #{cnn_forward.2} parent=11 // pred_check_branch
        %264 = sbr.rel (%p262) target = $region32
      $region31: #{cnn_forward.2} parent=11 // pred_region
        _
      $region32: #{cnn_forward.2} parent=11 // pred_fallthru
        _
      // Predicated region
      $region33: #{cnn_forward.2} parent=11 // pred_check
        %p265 = pneg %p167
      $region34: #{cnn_forward.2} parent=11 // pred_check_branch
        %267 = sbr.rel (%p265) target = $region36
      $region35: #{cnn_forward.2} parent=11 // pred_region
        _
      $region36: #{cnn_forward.2} parent=11 // pred_fallthru
        _
      // Predicated region
      $region37: #{cnn_forward.2} parent=11 // pred_check
        %p268 = pneg %p188
      $region38: #{cnn_forward.2} parent=11 // pred_check_branch
        %270 = sbr.rel (%p268) target = $region40
      $region39: #{cnn_forward.2} parent=11 // pred_region
        _
      $region40: #{cnn_forward.2} parent=11 // pred_fallthru
        _
      // Predicated region
      $region41: #{cnn_forward.2} parent=11 // pred_check
        %p271 = pneg %p209
      $region42: #{cnn_forward.2} parent=11 // pred_check_branch
        %273 = sbr.rel (%p271) target = $region44
      $region43: #{cnn_forward.2} parent=11 // pred_region
        _
      $region44: #{cnn_forward.2} parent=11 // pred_fallthru
        _
    $region12: #{cnn_forward.2} parent=5 // pred_fallthru
      _
    %p274 = scmp.lt.s32.totalorder %s15, 2
    // Predicated region
    $region45: #{cnn_forward.2} parent=5 // pred_check
      %p275 = pneg %p274
    $region46: #{cnn_forward.2} parent=5 // pred_check_branch
      %277 = sbr.rel (%p275) target = $region48
    $region47: #{cnn_forward.2} parent=5 // pred_region
      // Predicated region
      $region49: #{cnn_forward.2} parent=47 // pred_check
        %p278 = pneg %p35
      $region50: #{cnn_forward.2} parent=47 // pred_check_branch
        %280 = sbr.rel (%p278) target = $region52
      $region51: #{cnn_forward.2} parent=47 // pred_region
        %p281 = scmp.lt.s32.totalorder %s15, 1
        %s282 = scalar_select %p281, %s15, 1
        %s283 = smul.addr %s282, 9
        %s284 = smul.addr %s283, 4
        %s285 = scalar_lea.vmem %s0, %s284
      $region52: #{cnn_forward.2} parent=47 // pred_fallthru
        _
    $region48: #{cnn_forward.2} parent=5 // pred_fallthru
      _
    %p286 = scmp.le.s32.totalorder 1, %s15
    %p287 = scmp.lt.s32.totalorder %s15, 3
    %p288 = pnand %p286, %p287
    %p289 = pneg %p288
    // Predicated region
    $region53: #{cnn_forward.2} parent=5 // pred_check
      _
    $region54: #{cnn_forward.2} parent=5 // pred_check_branch
      %291 = sbr.rel (%p288) target = $region56
    $region55: #{cnn_forward.2} parent=5 // pred_region
      %s292 = ssub.s32 %s15, 1
      %p293 = scmp.lt.s32.totalorder %s20, 1
      %s294 = scalar_select %p293, %s20, 1
      %s295 = smul.addr %s294, 9
      %s296 = smul.addr %s295, 4
      %s297 = scalar_lea.vmem %s0, %s296
      %p298 = pneg %p41
      %p299 = pneg %p38
      %p300 = pneg %p62
      %p301 = pneg %p59
      %p302 = pneg %p83
      %p303 = pneg %p80
      %p304 = pneg %p104
      %p305 = pneg %p101
      %p306 = pneg %p125
      %p307 = pneg %p122
      %p308 = pneg %p146
      %p309 = pneg %p143
      %p310 = pneg %p167
      %p311 = pneg %p164
      %p312 = pneg %p188
      %p313 = pneg %p185
      %p314 = pneg %p209
      %p315 = pneg %p206
      %p316 = pneg %p235
      %p317 = pneg %p232
      %p318 = scmp.lt.s32.totalorder %s20, 1
      %s319 = scalar_select %p318, %s20, 1
      %s320 = smul.addr %s319, 8
      %s321 = smul.addr %s320, 4
      %s322 = scalar_lea.vmem %s9, %s321
      %p323 = scmp.lt.s32.totalorder %s20, 1
      %s324 = scalar_select %p323, %s20, 1
      %s325 = smul.addr %s324, 9
      %s326 = smul.addr %s325, 4
      %s327 = scalar_lea.vmem %s0, %s326
      %p328 = scmp.lt.s32.totalorder %s20, 1
      %s329 = scalar_select %p328, %s20, 1
      %s330 = smul.addr %s329, 8
      %s331 = smul.addr %s330, 4
      %s332 = scalar_lea.vmem %s9, %s331
      %v334 = vld [vmem:[%s327] sm:$0xf]
      %v335 = vld [vmem:[%s327 + $0x4] sm:$0xf]
      %v336 = vld [vmem:[%s327 + $0x8] sm:$0xf]
      %v337 = vld [vmem:[%s327 + $0xc] sm:$0xf]
      %v338 = vld [vmem:[%s327 + $0x10] sm:$0xf]
      %v339 = vld [vmem:[%s327 + $0x14] sm:$0xf]
      %v340 = vld [vmem:[%s327 + $0x18] sm:$0xf]
      %v341 = vld [vmem:[%s327 + $0x1c] sm:$0xf]
      %v342 = vld [vmem:[%s327 + $0x20] sm:$0xf]
      %v343 = vld [vmem:[%s1] sm:$0xf]
      %v344 = vld [vmem:[%s1 + $0x4] sm:$0xf]
      %v345 = vld [vmem:[%s2] sm:$0xff]
      %v346 = vld [vmem:[%s2 + $0x8] sm:$0xff]
      %348 = vset.pattern.permute.xlu0 0
      %349 = vperm.xlu0 %348, %v345
      %v350 = vpop.permute.xlu0 %349
      %353 = vset.pattern.permute.xlu0 0
      %354 = vperm.xlu0 %353, %v346
      %v355 = vpop.permute.xlu0 %354
      %v359 = vunpack.c.l.b16 %v343
      %v360 = vunpack.c.l.b16 %v344
      %v361 = vpack.c.b16 %v360, %v359
      %vm362 = vcmask 64512
      %v364 = vsel %vm362, %v361, 0
      %vm366 = vcmask 1043456
      %v368 = vsel %vm366, %v334, 0
      %370 = vmatprep.subr.bf16.mxu0 0
      %371 = vmatpush1.bf16.msra.mxu0 %v368
      %372 = vmatprep.subr.bf16.mxu0 0
      %373 = vmatpush1.bf16.msra.mxu0 0
      %374 = vmatprep.subr.bf16.mxu0 0
      %375 = vmatpush1.bf16.msra.mxu0 0
      %376 = vmatprep.subr.bf16.mxu0 0
      %377 = vmatpush1.bf16.msra.mxu0 0
      %378 = vmatprep.subr.bf16.mxu0 0
      %379 = vmatpush1.bf16.msra.mxu0 0
      %380 = vmatprep.subr.bf16.mxu0 0
      %381 = vmatpush1.bf16.msra.mxu0 0
      %382 = vmatprep.subr.bf16.mxu0 0
      %383 = vmatpush1.bf16.msra.mxu0 0
      %384 = vmatprep.subr.bf16.mxu0 0
      %385 = vmatpush1.bf16.msra.mxu0 0
      %386 = vmatprep.subr.bf16.mxu0 0
      %387 = vmatpush1.bf16.msra.mxu0 0
      %388 = vmatprep.subr.bf16.mxu0 0
      %389 = vmatpush1.bf16.msra.mxu0 0
      %390 = vmatprep.subr.bf16.mxu0 0
      %391 = vmatpush1.bf16.msra.mxu0 0
      %392 = vmatprep.subr.bf16.mxu0 0
      %393 = vmatpush1.bf16.msra.mxu0 0
      %394 = vmatprep.subr.bf16.mxu0 0
      %395 = vmatpush1.bf16.msra.mxu0 0
      %396 = vmatprep.subr.bf16.mxu0 0
      %397 = vmatpush1.bf16.msra.mxu0 0
      %398 = vmatprep.subr.bf16.mxu0 0
      %399 = vmatpush1.bf16.msra.mxu0 0
      %400 = vmatprep.subr.bf16.mxu0 0
      %401 = vmatpush1.bf16.msra.mxu0 0
      %402 = vmatprep.mubr.bf16.mxu0 0
      %403 = vmatmul.mubr.bf16.gmra.mrb[0].mxu0 %v364
      %v404 = vpop.f32.mrb[0].mxu0
      %v405 = vadd.f32 %v350, %v404
      %v406 = vpop.f32.mrb[0].mxu0
      %v407 = vpop.f32.mrb[0].mxu0
      %v408 = vadd.f32 %v355, %v407
      %v409 = vpop.f32.mrb[0].mxu0
      %410 = vdwg.mxu0
      %v411 = vpack.c.bf16 %v408, %v405
      %v413 = vsel %vm366, %v335, 0
      %415 = vmatprep.subr.bf16.mxu0 0
      %416 = vmatpush1.bf16.msra.mxu0 %v413
      %417 = vmatprep.subr.bf16.mxu0 0
      %418 = vmatpush1.bf16.msra.mxu0 0
      %419 = vmatprep.subr.bf16.mxu0 0
      %420 = vmatpush1.bf16.msra.mxu0 0
      %421 = vmatprep.subr.bf16.mxu0 0
      %422 = vmatpush1.bf16.msra.mxu0 0
      %423 = vmatprep.subr.bf16.mxu0 0
      %424 = vmatpush1.bf16.msra.mxu0 0
      %425 = vmatprep.subr.bf16.mxu0 0
      %426 = vmatpush1.bf16.msra.mxu0 0
      %427 = vmatprep.subr.bf16.mxu0 0
      %428 = vmatpush1.bf16.msra.mxu0 0
      %429 = vmatprep.subr.bf16.mxu0 0
      %430 = vmatpush1.bf16.msra.mxu0 0
      %431 = vmatprep.subr.bf16.mxu0 0
      %432 = vmatpush1.bf16.msra.mxu0 0
      %433 = vmatprep.subr.bf16.mxu0 0
      %434 = vmatpush1.bf16.msra.mxu0 0
      %435 = vmatprep.subr.bf16.mxu0 0
      %436 = vmatpush1.bf16.msra.mxu0 0
      %437 = vmatprep.subr.bf16.mxu0 0
      %438 = vmatpush1.bf16.msra.mxu0 0
      %439 = vmatprep.subr.bf16.mxu0 0
      %440 = vmatpush1.bf16.msra.mxu0 0
      %441 = vmatprep.subr.bf16.mxu0 0
      %442 = vmatpush1.bf16.msra.mxu0 0
      %443 = vmatprep.subr.bf16.mxu0 0
      %444 = vmatpush1.bf16.msra.mxu0 0
      %445 = vmatprep.subr.bf16.mxu0 0
      %446 = vmatpush1.bf16.msra.mxu0 0
      %447 = vmatprep.mubr.bf16.mxu0 0
      %448 = vmatmul.mubr.bf16.gmra.mrb[0].mxu0 %v364
      %v449 = vpop.f32.mrb[0].mxu0
      %v450 = vadd.f32 %v350, %v449
      %v451 = vpop.f32.mrb[0].mxu0
      %v452 = vpop.f32.mrb[0].mxu0
      %v453 = vadd.f32 %v355, %v452
      %v454 = vpop.f32.mrb[0].mxu0
      %455 = vdwg.mxu0
      %v456 = vpack.c.bf16 %v453, %v450
      %v458 = vsel %vm366, %v336, 0
      %460 = vmatprep.subr.bf16.mxu0 0
      %461 = vmatpush1.bf16.msra.mxu0 %v458
      %462 = vmatprep.subr.bf16.mxu0 0
      %463 = vmatpush1.bf16.msra.mxu0 0
      %464 = vmatprep.subr.bf16.mxu0 0
      %465 = vmatpush1.bf16.msra.mxu0 0
      %466 = vmatprep.subr.bf16.mxu0 0
      %467 = vmatpush1.bf16.msra.mxu0 0
      %468 = vmatprep.subr.bf16.mxu0 0
      %469 = vmatpush1.bf16.msra.mxu0 0
      %470 = vmatprep.subr.bf16.mxu0 0
      %471 = vmatpush1.bf16.msra.mxu0 0
      %472 = vmatprep.subr.bf16.mxu0 0
      %473 = vmatpush1.bf16.msra.mxu0 0
      %474 = vmatprep.subr.bf16.mxu0 0
      %475 = vmatpush1.bf16.msra.mxu0 0
      %476 = vmatprep.subr.bf16.mxu0 0
      %477 = vmatpush1.bf16.msra.mxu0 0
      %478 = vmatprep.subr.bf16.mxu0 0
      %479 = vmatpush1.bf16.msra.mxu0 0
      %480 = vmatprep.subr.bf16.mxu0 0
      %481 = vmatpush1.bf16.msra.mxu0 0
      %482 = vmatprep.subr.bf16.mxu0 0
      %483 = vmatpush1.bf16.msra.mxu0 0
      %484 = vmatprep.subr.bf16.mxu0 0
      %485 = vmatpush1.bf16.msra.mxu0 0
      %486 = vmatprep.subr.bf16.mxu0 0
      %487 = vmatpush1.bf16.msra.mxu0 0
      %488 = vmatprep.subr.bf16.mxu0 0
      %489 = vmatpush1.bf16.msra.mxu0 0
      %490 = vmatprep.subr.bf16.mxu0 0
      %491 = vmatpush1.bf16.msra.mxu0 0
      %492 = vmatprep.mubr.bf16.mxu0 0
      %493 = vmatmul.mubr.bf16.gmra.mrb[0].mxu0 %v364
      %v494 = vpop.f32.mrb[0].mxu0
      %v495 = vadd.f32 %v350, %v494
      %v496 = vpop.f32.mrb[0].mxu0
      %v497 = vpop.f32.mrb[0].mxu0
      %v498 = vadd.f32 %v355, %v497
      %v499 = vpop.f32.mrb[0].mxu0
      %500 = vdwg.mxu0
      %v501 = vpack.c.bf16 %v498, %v495
      %v503 = vsel %vm366, %v337, 0
      %505 = vmatprep.subr.bf16.mxu0 0
      %506 = vmatpush1.bf16.msra.mxu0 %v503
      %507 = vmatprep.subr.bf16.mxu0 0
      %508 = vmatpush1.bf16.msra.mxu0 0
      %509 = vmatprep.subr.bf16.mxu0 0
      %510 = vmatpush1.bf16.msra.mxu0 0
      %511 = vmatprep.subr.bf16.mxu0 0
      %512 = vmatpush1.bf16.msra.mxu0 0
      %513 = vmatprep.subr.bf16.mxu0 0
      %514 = vmatpush1.bf16.msra.mxu0 0
      %515 = vmatprep.subr.bf16.mxu0 0
      %516 = vmatpush1.bf16.msra.mxu0 0
      %517 = vmatprep.subr.bf16.mxu0 0
      %518 = vmatpush1.bf16.msra.mxu0 0
      %519 = vmatprep.subr.bf16.mxu0 0
      %520 = vmatpush1.bf16.msra.mxu0 0
      %521 = vmatprep.subr.bf16.mxu0 0
      %522 = vmatpush1.bf16.msra.mxu0 0
      %523 = vmatprep.subr.bf16.mxu0 0
      %524 = vmatpush1.bf16.msra.mxu0 0
      %525 = vmatprep.subr.bf16.mxu0 0
      %526 = vmatpush1.bf16.msra.mxu0 0
      %527 = vmatprep.subr.bf16.mxu0 0
      %528 = vmatpush1.bf16.msra.mxu0 0
      %529 = vmatprep.subr.bf16.mxu0 0
      %530 = vmatpush1.bf16.msra.mxu0 0
      %531 = vmatprep.subr.bf16.mxu0 0
      %532 = vmatpush1.bf16.msra.mxu0 0
      %533 = vmatprep.subr.bf16.mxu0 0
      %534 = vmatpush1.bf16.msra.mxu0 0
      %535 = vmatprep.subr.bf16.mxu0 0
      %536 = vmatpush1.bf16.msra.mxu0 0
      %537 = vmatprep.mubr.bf16.mxu0 0
      %538 = vmatmul.mubr.bf16.gmra.mrb[0].mxu0 %v364
      %v539 = vpop.f32.mrb[0].mxu0
      %v540 = vadd.f32 %v350, %v539
      %v541 = vpop.f32.mrb[0].mxu0
      %v542 = vpop.f32.mrb[0].mxu0
      %v543 = vadd.f32 %v355, %v542
      %v544 = vpop.f32.mrb[0].mxu0
      %545 = vdwg.mxu0
      %v546 = vpack.c.bf16 %v543, %v540
      %v548 = vsel %vm366, %v338, 0
      %550 = vmatprep.subr.bf16.mxu0 0
      %551 = vmatpush1.bf16.msra.mxu0 %v548
      %552 = vmatprep.subr.bf16.mxu0 0
      %553 = vmatpush1.bf16.msra.mxu0 0
      %554 = vmatprep.subr.bf16.mxu0 0
      %555 = vmatpush1.bf16.msra.mxu0 0
      %556 = vmatprep.subr.bf16.mxu0 0
      %557 = vmatpush1.bf16.msra.mxu0 0
      %558 = vmatprep.subr.bf16.mxu0 0
      %559 = vmatpush1.bf16.msra.mxu0 0
      %560 = vmatprep.subr.bf16.mxu0 0
      %561 = vmatpush1.bf16.msra.mxu0 0
      %562 = vmatprep.subr.bf16.mxu0 0
      %563 = vmatpush1.bf16.msra.mxu0 0
      %564 = vmatprep.subr.bf16.mxu0 0
      %565 = vmatpush1.bf16.msra.mxu0 0
      %566 = vmatprep.subr.bf16.mxu0 0
      %567 = vmatpush1.bf16.msra.mxu0 0
      %568 = vmatprep.subr.bf16.mxu0 0
      %569 = vmatpush1.bf16.msra.mxu0 0
      %570 = vmatprep.subr.bf16.mxu0 0
      %571 = vmatpush1.bf16.msra.mxu0 0
      %572 = vmatprep.subr.bf16.mxu0 0
      %573 = vmatpush1.bf16.msra.mxu0 0
      %574 = vmatprep.subr.bf16.mxu0 0
      %575 = vmatpush1.bf16.msra.mxu0 0
      %576 = vmatprep.subr.bf16.mxu0 0
      %577 = vmatpush1.bf16.msra.mxu0 0
      %578 = vmatprep.subr.bf16.mxu0 0
      %579 = vmatpush1.bf16.msra.mxu0 0
      %580 = vmatprep.subr.bf16.mxu0 0
      %581 = vmatpush1.bf16.msra.mxu0 0
      %582 = vmatprep.mubr.bf16.mxu0 0
      %583 = vmatmul.mubr.bf16.gmra.mrb[0].mxu0 %v364
      %v584 = vpop.f32.mrb[0].mxu0
      %v585 = vadd.f32 %v350, %v584
      %v586 = vpop.f32.mrb[0].mxu0
      %v587 = vpop.f32.mrb[0].mxu0
      %v588 = vadd.f32 %v355, %v587
      %v589 = vpop.f32.mrb[0].mxu0
      %590 = vdwg.mxu0
      %v591 = vpack.c.bf16 %v588, %v585
      %v593 = vsel %vm366, %v339, 0
      %595 = vmatprep.subr.bf16.mxu0 0
      %596 = vmatpush1.bf16.msra.mxu0 %v593
      %597 = vmatprep.subr.bf16.mxu0 0
      %598 = vmatpush1.bf16.msra.mxu0 0
      %599 = vmatprep.subr.bf16.mxu0 0
      %600 = vmatpush1.bf16.msra.mxu0 0
      %601 = vmatprep.subr.bf16.mxu0 0
      %602 = vmatpush1.bf16.msra.mxu0 0
      %603 = vmatprep.subr.bf16.mxu0 0
      %604 = vmatpush1.bf16.msra.mxu0 0
      %605 = vmatprep.subr.bf16.mxu0 0
      %606 = vmatpush1.bf16.msra.mxu0 0
      %607 = vmatprep.subr.bf16.mxu0 0
      %608 = vmatpush1.bf16.msra.mxu0 0
      %609 = vmatprep.subr.bf16.mxu0 0
      %610 = vmatpush1.bf16.msra.mxu0 0
      %611 = vmatprep.subr.bf16.mxu0 0
      %612 = vmatpush1.bf16.msra.mxu0 0
      %613 = vmatprep.subr.bf16.mxu0 0
      %614 = vmatpush1.bf16.msra.mxu0 0
      %615 = vmatprep.subr.bf16.mxu0 0
      %616 = vmatpush1.bf16.msra.mxu0 0
      %617 = vmatprep.subr.bf16.mxu0 0
      %618 = vmatpush1.bf16.msra.mxu0 0
      %619 = vmatprep.subr.bf16.mxu0 0
      %620 = vmatpush1.bf16.msra.mxu0 0
      %621 = vmatprep.subr.bf16.mxu0 0
      %622 = vmatpush1.bf16.msra.mxu0 0
      %623 = vmatprep.subr.bf16.mxu0 0
      %624 = vmatpush1.bf16.msra.mxu0 0
      %625 = vmatprep.subr.bf16.mxu0 0
      %626 = vmatpush1.bf16.msra.mxu0 0
      %627 = vmatprep.mubr.bf16.mxu0 0
      %628 = vmatmul.mubr.bf16.gmra.mrb[0].mxu0 %v364
      %v629 = vpop.f32.mrb[0].mxu0
      %v630 = vadd.f32 %v350, %v629
      %v631 = vpop.f32.mrb[0].mxu0
      %v632 = vpop.f32.mrb[0].mxu0
      %v633 = vadd.f32 %v355, %v632
      %v634 = vpop.f32.mrb[0].mxu0
      %635 = vdwg.mxu0
      %v636 = vpack.c.bf16 %v633, %v630
      %v638 = vsel %vm366, %v340, 0
      %640 = vmatprep.subr.bf16.mxu0 0
      %641 = vmatpush1.bf16.msra.mxu0 %v638
      %642 = vmatprep.subr.bf16.mxu0 0
      %643 = vmatpush1.bf16.msra.mxu0 0
      %644 = vmatprep.subr.bf16.mxu0 0
      %645 = vmatpush1.bf16.msra.mxu0 0
      %646 = vmatprep.subr.bf16.mxu0 0
      %647 = vmatpush1.bf16.msra.mxu0 0
      %648 = vmatprep.subr.bf16.mxu0 0
      %649 = vmatpush1.bf16.msra.mxu0 0
      %650 = vmatprep.subr.bf16.mxu0 0
      %651 = vmatpush1.bf16.msra.mxu0 0
      %652 = vmatprep.subr.bf16.mxu0 0
      %653 = vmatpush1.bf16.msra.mxu0 0
      %654 = vmatprep.subr.bf16.mxu0 0
      %655 = vmatpush1.bf16.msra.mxu0 0
      %656 = vmatprep.subr.bf16.mxu0 0
      %657 = vmatpush1.bf16.msra.mxu0 0
      %658 = vmatprep.subr.bf16.mxu0 0
      %659 = vmatpush1.bf16.msra.mxu0 0
      %660 = vmatprep.subr.bf16.mxu0 0
      %661 = vmatpush1.bf16.msra.mxu0 0
      %662 = vmatprep.subr.bf16.mxu0 0
      %663 = vmatpush1.bf16.msra.mxu0 0
      %664 = vmatprep.subr.bf16.mxu0 0
      %665 = vmatpush1.bf16.msra.mxu0 0
      %666 = vmatprep.subr.bf16.mxu0 0
      %667 = vmatpush1.bf16.msra.mxu0 0
      %668 = vmatprep.subr.bf16.mxu0 0
      %669 = vmatpush1.bf16.msra.mxu0 0
      %670 = vmatprep.subr.bf16.mxu0 0
      %671 = vmatpush1.bf16.msra.mxu0 0
      %672 = vmatprep.mubr.bf16.mxu0 0
      %673 = vmatmul.mubr.bf16.gmra.mrb[0].mxu0 %v364
      %v674 = vpop.f32.mrb[0].mxu0
      %v675 = vadd.f32 %v350, %v674
      %v676 = vpop.f32.mrb[0].mxu0
      %v677 = vpop.f32.mrb[0].mxu0
      %v678 = vadd.f32 %v355, %v677
      %v679 = vpop.f32.mrb[0].mxu0
      %680 = vdwg.mxu0
      %v681 = vpack.c.bf16 %v678, %v675
      %v683 = vsel %vm366, %v341, 0
      %685 = vmatprep.subr.bf16.mxu0 0
      %686 = vmatpush1.bf16.msra.mxu0 %v683
      %687 = vmatprep.subr.bf16.mxu0 0
      %688 = vmatpush1.bf16.msra.mxu0 0
      %689 = vmatprep.subr.bf16.mxu0 0
      %690 = vmatpush1.bf16.msra.mxu0 0
      %691 = vmatprep.subr.bf16.mxu0 0
      %692 = vmatpush1.bf16.msra.mxu0 0
      %693 = vmatprep.subr.bf16.mxu0 0
      %694 = vmatpush1.bf16.msra.mxu0 0
      %695 = vmatprep.subr.bf16.mxu0 0
      %696 = vmatpush1.bf16.msra.mxu0 0
      %697 = vmatprep.subr.bf16.mxu0 0
      %698 = vmatpush1.bf16.msra.mxu0 0
      %699 = vmatprep.subr.bf16.mxu0 0
      %700 = vmatpush1.bf16.msra.mxu0 0
      %701 = vmatprep.subr.bf16.mxu0 0
      %702 = vmatpush1.bf16.msra.mxu0 0
      %703 = vmatprep.subr.bf16.mxu0 0
      %704 = vmatpush1.bf16.msra.mxu0 0
      %705 = vmatprep.subr.bf16.mxu0 0
      %706 = vmatpush1.bf16.msra.mxu0 0
      %707 = vmatprep.subr.bf16.mxu0 0
      %708 = vmatpush1.bf16.msra.mxu0 0
      %709 = vmatprep.subr.bf16.mxu0 0
      %710 = vmatpush1.bf16.msra.mxu0 0
      %711 = vmatprep.subr.bf16.mxu0 0
      %712 = vmatpush1.bf16.msra.mxu0 0
      %713 = vmatprep.subr.bf16.mxu0 0
      %714 = vmatpush1.bf16.msra.mxu0 0
      %715 = vmatprep.subr.bf16.mxu0 0
      %716 = vmatpush1.bf16.msra.mxu0 0
      %717 = vmatprep.mubr.bf16.mxu0 0
      %718 = vmatmul.mubr.bf16.gmra.mrb[0].mxu0 %v364
      %v719 = vpop.f32.mrb[0].mxu0
      %v720 = vadd.f32 %v350, %v719
      %v721 = vpop.f32.mrb[0].mxu0
      %v722 = vpop.f32.mrb[0].mxu0
      %v723 = vadd.f32 %v355, %v722
      %v724 = vpop.f32.mrb[0].mxu0
      %725 = vdwg.mxu0
      %v726 = vpack.c.bf16 %v723, %v720
      %v728 = vsel %vm366, %v342, 0
      %730 = vmatprep.subr.bf16.mxu0 0
      %731 = vmatpush1.bf16.msra.mxu0 %v728
      %732 = vmatprep.subr.bf16.mxu0 0
      %733 = vmatpush1.bf16.msra.mxu0 0
      %734 = vmatprep.subr.bf16.mxu0 0
      %735 = vmatpush1.bf16.msra.mxu0 0
      %736 = vmatprep.subr.bf16.mxu0 0
      %737 = vmatpush1.bf16.msra.mxu0 0
      %738 = vmatprep.subr.bf16.mxu0 0
      %739 = vmatpush1.bf16.msra.mxu0 0
      %740 = vmatprep.subr.bf16.mxu0 0
      %741 = vmatpush1.bf16.msra.mxu0 0
      %742 = vmatprep.subr.bf16.mxu0 0
      %743 = vmatpush1.bf16.msra.mxu0 0
      %744 = vmatprep.subr.bf16.mxu0 0
      %745 = vmatpush1.bf16.msra.mxu0 0
      %746 = vmatprep.subr.bf16.mxu0 0
      %747 = vmatpush1.bf16.msra.mxu0 0
      %748 = vmatprep.subr.bf16.mxu0 0
      %749 = vmatpush1.bf16.msra.mxu0 0
      %750 = vmatprep.subr.bf16.mxu0 0
      %751 = vmatpush1.bf16.msra.mxu0 0
      %752 = vmatprep.subr.bf16.mxu0 0
      %753 = vmatpush1.bf16.msra.mxu0 0
      %754 = vmatprep.subr.bf16.mxu0 0
      %755 = vmatpush1.bf16.msra.mxu0 0
      %756 = vmatprep.subr.bf16.mxu0 0
      %757 = vmatpush1.bf16.msra.mxu0 0
      %758 = vmatprep.subr.bf16.mxu0 0
      %759 = vmatpush1.bf16.msra.mxu0 0
      %760 = vmatprep.subr.bf16.mxu0 0
      %761 = vmatpush1.bf16.msra.mxu0 0
      %762 = vmatprep.mubr.bf16.mxu0 0
      %763 = vmatmul.mubr.bf16.gmra.mrb[0].mxu0 %v364
      %v764 = vpop.f32.mrb[0].mxu0
      %v765 = vadd.f32 %v350, %v764
      %v766 = vpop.f32.mrb[0].mxu0
      %v767 = vpop.f32.mrb[0].mxu0
      %v768 = vadd.f32 %v355, %v767
      %v769 = vpop.f32.mrb[0].mxu0
      %770 = vdwg.mxu0
      %v771 = vpack.c.bf16 %v768, %v765
      %v772 = vld [vmem:[%s3] sm:$0xf]
      %v773 = vld [vmem:[%s3 + $0x4] sm:$0xf]
      %v774 = vld [vmem:[%s3 + $0x8] sm:$0xf]
      %v775 = vld [vmem:[%s3 + $0xc] sm:$0xf]
      %v776 = vld [vmem:[%s3 + $0x10] sm:$0xf]
      %v777 = vld [vmem:[%s3 + $0x14] sm:$0xf]
      %v778 = vld [vmem:[%s4] sm:$0xff]
      %v779 = vld [vmem:[%s4 + $0x8] sm:$0xff]
      %v782 = vunpack.c.l.b16 %v774
      %v783 = vunpack.c.l.b16 %v775
      %v784 = vpack.c.b16 %v783, %v782
      %vm785 = vcmask 130048
      %v787 = vsel %vm785, %v784, 0
      %789 = vmatprep.subr.bf16.mxu0 0
      %790 = vmatpush1.bf16.msra.mxu0 %v456
      %791 = vmatprep.subr.bf16.mxu0 0
      %792 = vmatpush1.bf16.msra.mxu0 0
      %793 = vmatprep.subr.bf16.mxu0 0
      %794 = vmatpush1.bf16.msra.mxu0 0
      %795 = vmatprep.subr.bf16.mxu0 0
      %796 = vmatpush1.bf16.msra.mxu0 0
      %797 = vmatprep.subr.bf16.mxu0 0
      %798 = vmatpush1.bf16.msra.mxu0 0
      %799 = vmatprep.subr.bf16.mxu0 0
      %800 = vmatpush1.bf16.msra.mxu0 0
      %801 = vmatprep.subr.bf16.mxu0 0
      %802 = vmatpush1.bf16.msra.mxu0 0
      %803 = vmatprep.subr.bf16.mxu0 0
      %804 = vmatpush1.bf16.msra.mxu0 0
      %805 = vmatprep.subr.bf16.mxu0 0
      %806 = vmatpush1.bf16.msra.mxu0 0
      %807 = vmatprep.subr.bf16.mxu0 0
      %808 = vmatpush1.bf16.msra.mxu0 0
      %809 = vmatprep.subr.bf16.mxu0 0
      %810 = vmatpush1.bf16.msra.mxu0 0
      %811 = vmatprep.subr.bf16.mxu0 0
      %812 = vmatpush1.bf16.msra.mxu0 0
      %813 = vmatprep.subr.bf16.mxu0 0
      %814 = vmatpush1.bf16.msra.mxu0 0
      %815 = vmatprep.subr.bf16.mxu0 0
      %816 = vmatpush1.bf16.msra.mxu0 0
      %817 = vmatprep.subr.bf16.mxu0 0
      %818 = vmatpush1.bf16.msra.mxu0 0
      %819 = vmatprep.subr.bf16.mxu0 0
      %820 = vmatpush1.bf16.msra.mxu0 0
      %821 = vmatprep.mubr.bf16.mxu0 0
      %822 = vmatmul.mubr.bf16.gmra.mrb[0].mxu0 %v787
      %v823 = vpop.f32.mrb[0].mxu0
      %v824 = vadd.f32 0.0, %v823
      %v825 = vpop.f32.mrb[0].mxu0
      %v826 = vpop.f32.mrb[0].mxu0
      %v827 = vadd.f32 0.0, %v826
      %v828 = vpop.f32.mrb[0].mxu0
      %829 = vdwg.mxu0
      %v832 = vunpack.c.l.b16 %v772
      %v833 = vunpack.c.l.b16 %v773
      %v834 = vpack.c.b16 %v833, %v832
      %v836 = vsel %vm785, %v834, 0
      %838 = vmatprep.subr.bf16.mxu0 0
      %839 = vmatpush1.bf16.msra.mxu0 %v411
      %840 = vmatprep.subr.bf16.mxu0 0
      %841 = vmatpush1.bf16.msra.mxu0 0
      %842 = vmatprep.subr.bf16.mxu0 0
      %843 = vmatpush1.bf16.msra.mxu0 0
      %844 = vmatprep.subr.bf16.mxu0 0
      %845 = vmatpush1.bf16.msra.mxu0 0
      %846 = vmatprep.subr.bf16.mxu0 0
      %847 = vmatpush1.bf16.msra.mxu0 0
      %848 = vmatprep.subr.bf16.mxu0 0
      %849 = vmatpush1.bf16.msra.mxu0 0
      %850 = vmatprep.subr.bf16.mxu0 0
      %851 = vmatpush1.bf16.msra.mxu0 0
      %852 = vmatprep.subr.bf16.mxu0 0
      %853 = vmatpush1.bf16.msra.mxu0 0
      %854 = vmatprep.subr.bf16.mxu0 0
      %855 = vmatpush1.bf16.msra.mxu0 0
      %856 = vmatprep.subr.bf16.mxu0 0
      %857 = vmatpush1.bf16.msra.mxu0 0
      %858 = vmatprep.subr.bf16.mxu0 0
      %859 = vmatpush1.bf16.msra.mxu0 0
      %860 = vmatprep.subr.bf16.mxu0 0
      %861 = vmatpush1.bf16.msra.mxu0 0
      %862 = vmatprep.subr.bf16.mxu0 0
      %863 = vmatpush1.bf16.msra.mxu0 0
      %864 = vmatprep.subr.bf16.mxu0 0
      %865 = vmatpush1.bf16.msra.mxu0 0
      %866 = vmatprep.subr.bf16.mxu0 0
      %867 = vmatpush1.bf16.msra.mxu0 0
      %868 = vmatprep.subr.bf16.mxu0 0
      %869 = vmatpush1.bf16.msra.mxu0 0
      %870 = vmatprep.mubr.bf16.mxu0 0
      %871 = vmatmul.mubr.bf16.gmra.mrb[0].mxu0 %v836
      %v872 = vpop.f32.mrb[0].mxu0
      %v873 = vadd.f32 %v824, %v872
      %v874 = vpop.f32.mrb[0].mxu0
      %v875 = vpop.f32.mrb[0].mxu0
      %v876 = vadd.f32 %v827, %v875
      %v877 = vpop.f32.mrb[0].mxu0
      %878 = vdwg.mxu0
      %v881 = vunpack.c.l.b16 %v776
      %v882 = vunpack.c.l.b16 %v777
      %v883 = vpack.c.b16 %v882, %v881
      %v885 = vsel %vm785, %v883, 0
      %887 = vmatprep.subr.bf16.mxu0 0
      %888 = vmatpush1.bf16.msra.mxu0 %v501
      %889 = vmatprep.subr.bf16.mxu0 0
      %890 = vmatpush1.bf16.msra.mxu0 0
      %891 = vmatprep.subr.bf16.mxu0 0
      %892 = vmatpush1.bf16.msra.mxu0 0
      %893 = vmatprep.subr.bf16.mxu0 0
      %894 = vmatpush1.bf16.msra.mxu0 0
      %895 = vmatprep.subr.bf16.mxu0 0
      %896 = vmatpush1.bf16.msra.mxu0 0
      %897 = vmatprep.subr.bf16.mxu0 0
      %898 = vmatpush1.bf16.msra.mxu0 0
      %899 = vmatprep.subr.bf16.mxu0 0
      %900 = vmatpush1.bf16.msra.mxu0 0
      %901 = vmatprep.subr.bf16.mxu0 0
      %902 = vmatpush1.bf16.msra.mxu0 0
      %903 = vmatprep.subr.bf16.mxu0 0
      %904 = vmatpush1.bf16.msra.mxu0 0
      %905 = vmatprep.subr.bf16.mxu0 0
      %906 = vmatpush1.bf16.msra.mxu0 0
      %907 = vmatprep.subr.bf16.mxu0 0
      %908 = vmatpush1.bf16.msra.mxu0 0
      %909 = vmatprep.subr.bf16.mxu0 0
      %910 = vmatpush1.bf16.msra.mxu0 0
      %911 = vmatprep.subr.bf16.mxu0 0
      %912 = vmatpush1.bf16.msra.mxu0 0
      %913 = vmatprep.subr.bf16.mxu0 0
      %914 = vmatpush1.bf16.msra.mxu0 0
      %915 = vmatprep.subr.bf16.mxu0 0
      %916 = vmatpush1.bf16.msra.mxu0 0
      %917 = vmatprep.subr.bf16.mxu0 0
      %918 = vmatpush1.bf16.msra.mxu0 0
      %919 = vmatprep.mubr.bf16.mxu0 0
      %920 = vmatmul.mubr.bf16.gmra.mrb[0].mxu0 %v885
      %v921 = vpop.f32.mrb[0].mxu0
      %v922 = vadd.f32 0.0, %v921
      %v923 = vpop.f32.mrb[0].mxu0
      %v924 = vpop.f32.mrb[0].mxu0
      %v925 = vadd.f32 0.0, %v924
      %v926 = vpop.f32.mrb[0].mxu0
      %927 = vdwg.mxu0
      %v928 = vadd.f32 %v873, %v922
      %v929 = vadd.f32 %v876, %v925
      %931 = vset.pattern.permute.xlu0 0
      %932 = vperm.xlu0 %931, %v778
      %v933 = vpop.permute.xlu0 %932
      %936 = vset.pattern.permute.xlu0 0
      %937 = vperm.xlu0 %936, %v779
      %v938 = vpop.permute.xlu0 %937
      %v940 = vadd.f32 %v928, %v933
      %v941 = vadd.f32 %v929, %v938
      %v942 = vmax.f32 %v940, 0.0
      %v943 = vmax.f32 %v941, 0.0
      %v944 = vpack.c.bf16 %v943, %v942
      %945 = vmatprep.subr.bf16.mxu0 0
      %946 = vmatpush1.bf16.msra.mxu0 %v501
      %947 = vmatprep.subr.bf16.mxu0 0
      %948 = vmatpush1.bf16.msra.mxu0 0
      %949 = vmatprep.subr.bf16.mxu0 0
      %950 = vmatpush1.bf16.msra.mxu0 0
      %951 = vmatprep.subr.bf16.mxu0 0
      %952 = vmatpush1.bf16.msra.mxu0 0
      %953 = vmatprep.subr.bf16.mxu0 0
      %954 = vmatpush1.bf16.msra.mxu0 0
      %955 = vmatprep.subr.bf16.mxu0 0
      %956 = vmatpush1.bf16.msra.mxu0 0
      %957 = vmatprep.subr.bf16.mxu0 0
      %958 = vmatpush1.bf16.msra.mxu0 0
      %959 = vmatprep.subr.bf16.mxu0 0
      %960 = vmatpush1.bf16.msra.mxu0 0
      %961 = vmatprep.subr.bf16.mxu0 0
      %962 = vmatpush1.bf16.msra.mxu0 0
      %963 = vmatprep.subr.bf16.mxu0 0
      %964 = vmatpush1.bf16.msra.mxu0 0
      %965 = vmatprep.subr.bf16.mxu0 0
      %966 = vmatpush1.bf16.msra.mxu0 0
      %967 = vmatprep.subr.bf16.mxu0 0
      %968 = vmatpush1.bf16.msra.mxu0 0
      %969 = vmatprep.subr.bf16.mxu0 0
      %970 = vmatpush1.bf16.msra.mxu0 0
      %971 = vmatprep.subr.bf16.mxu0 0
      %972 = vmatpush1.bf16.msra.mxu0 0
      %973 = vmatprep.subr.bf16.mxu0 0
      %974 = vmatpush1.bf16.msra.mxu0 0
      %975 = vmatprep.subr.bf16.mxu0 0
      %976 = vmatpush1.bf16.msra.mxu0 0
      %977 = vmatprep.mubr.bf16.mxu0 0
      %978 = vmatmul.mubr.bf16.gmra.mrb[0].mxu0 %v787
      %v979 = vpop.f32.mrb[0].mxu0
      %v980 = vadd.f32 0.0, %v979
      %v981 = vpop.f32.mrb[0].mxu0
      %v982 = vpop.f32.mrb[0].mxu0
      %v983 = vadd.f32 0.0, %v982
      %v984 = vpop.f32.mrb[0].mxu0
      %985 = vdwg.mxu0
      %986 = vmatprep.subr.bf16.mxu0 0
      %987 = vmatpush1.bf16.msra.mxu0 %v456
      %988 = vmatprep.subr.bf16.mxu0 0
      %989 = vmatpush1.bf16.msra.mxu0 0
      %990 = vmatprep.subr.bf16.mxu0 0
      %991 = vmatpush1.bf16.msra.mxu0 0
      %992 = vmatprep.subr.bf16.mxu0 0
      %993 = vmatpush1.bf16.msra.mxu0 0
      %994 = vmatprep.subr.bf16.mxu0 0
      %995 = vmatpush1.bf16.msra.mxu0 0
      %996 = vmatprep.subr.bf16.mxu0 0
      %997 = vmatpush1.bf16.msra.mxu0 0
      %998 = vmatprep.subr.bf16.mxu0 0
      %999 = vmatpush1.bf16.msra.mxu0 0
      %1000 = vmatprep.subr.bf16.mxu0 0
      %1001 = vmatpush1.bf16.msra.mxu0 0
      %1002 = vmatprep.subr.bf16.mxu0 0
      %1003 = vmatpush1.bf16.msra.mxu0 0
      %1004 = vmatprep.subr.bf16.mxu0 0
      %1005 = vmatpush1.bf16.msra.mxu0 0
      %1006 = vmatprep.subr.bf16.mxu0 0
      %1007 = vmatpush1.bf16.msra.mxu0 0
      %1008 = vmatprep.subr.bf16.mxu0 0
      %1009 = vmatpush1.bf16.msra.mxu0 0
      %1010 = vmatprep.subr.bf16.mxu0 0
      %1011 = vmatpush1.bf16.msra.mxu0 0
      %1012 = vmatprep.subr.bf16.mxu0 0
      %1013 = vmatpush1.bf16.msra.mxu0 0
      %1014 = vmatprep.subr.bf16.mxu0 0
      %1015 = vmatpush1.bf16.msra.mxu0 0
      %1016 = vmatprep.subr.bf16.mxu0 0
      %1017 = vmatpush1.bf16.msra.mxu0 0
      %1018 = vmatprep.mubr.bf16.mxu0 0
      %1019 = vmatmul.mubr.bf16.gmra.mrb[0].mxu0 %v836
      %v1020 = vpop.f32.mrb[0].mxu0
      %v1021 = vadd.f32 %v980, %v1020
      %v1022 = vpop.f32.mrb[0].mxu0
      %v1023 = vpop.f32.mrb[0].mxu0
      %v1024 = vadd.f32 %v983, %v1023
      %v1025 = vpop.f32.mrb[0].mxu0
      %1026 = vdwg.mxu0
      %1027 = vmatprep.subr.bf16.mxu0 0
      %1028 = vmatpush1.bf16.msra.mxu0 %v546
      %1029 = vmatprep.subr.bf16.mxu0 0
      %1030 = vmatpush1.bf16.msra.mxu0 0
      %1031 = vmatprep.subr.bf16.mxu0 0
      %1032 = vmatpush1.bf16.msra.mxu0 0
      %1033 = vmatprep.subr.bf16.mxu0 0
      %1034 = vmatpush1.bf16.msra.mxu0 0
      %1035 = vmatprep.subr.bf16.mxu0 0
      %1036 = vmatpush1.bf16.msra.mxu0 0
      %1037 = vmatprep.subr.bf16.mxu0 0
      %1038 = vmatpush1.bf16.msra.mxu0 0
      %1039 = vmatprep.subr.bf16.mxu0 0
      %1040 = vmatpush1.bf16.msra.mxu0 0
      %1041 = vmatprep.subr.bf16.mxu0 0
      %1042 = vmatpush1.bf16.msra.mxu0 0
      %1043 = vmatprep.subr.bf16.mxu0 0
      %1044 = vmatpush1.bf16.msra.mxu0 0
      %1045 = vmatprep.subr.bf16.mxu0 0
      %1046 = vmatpush1.bf16.msra.mxu0 0
      %1047 = vmatprep.subr.bf16.mxu0 0
      %1048 = vmatpush1.bf16.msra.mxu0 0
      %1049 = vmatprep.subr.bf16.mxu0 0
      %1050 = vmatpush1.bf16.msra.mxu0 0
      %1051 = vmatprep.subr.bf16.mxu0 0
      %1052 = vmatpush1.bf16.msra.mxu0 0
      %1053 = vmatprep.subr.bf16.mxu0 0
      %1054 = vmatpush1.bf16.msra.mxu0 0
      %1055 = vmatprep.subr.bf16.mxu0 0
      %1056 = vmatpush1.bf16.msra.mxu0 0
      %1057 = vmatprep.subr.bf16.mxu0 0
      %1058 = vmatpush1.bf16.msra.mxu0 0
      %1059 = vmatprep.mubr.bf16.mxu0 0
      %1060 = vmatmul.mubr.bf16.gmra.mrb[0].mxu0 %v885
      %v1061 = vpop.f32.mrb[0].mxu0
      %v1062 = vadd.f32 0.0, %v1061
      %v1063 = vpop.f32.mrb[0].mxu0
      %v1064 = vpop.f32.mrb[0].mxu0
      %v1065 = vadd.f32 0.0, %v1064
      %v1066 = vpop.f32.mrb[0].mxu0
      %1067 = vdwg.mxu0
      %v1068 = vadd.f32 %v1021, %v1062
      %v1069 = vadd.f32 %v1024, %v1065
      %v1070 = vadd.f32 %v1068, %v933
      %v1071 = vadd.f32 %v1069, %v938
      %v1072 = vmax.f32 %v1070, 0.0
      %v1073 = vmax.f32 %v1071, 0.0
      %v1074 = vpack.c.bf16 %v1073, %v1072
      %1075 = vmatprep.subr.bf16.mxu0 0
      %1076 = vmatpush1.bf16.msra.mxu0 %v546
      %1077 = vmatprep.subr.bf16.mxu0 0
      %1078 = vmatpush1.bf16.msra.mxu0 0
      %1079 = vmatprep.subr.bf16.mxu0 0
      %1080 = vmatpush1.bf16.msra.mxu0 0
      %1081 = vmatprep.subr.bf16.mxu0 0
      %1082 = vmatpush1.bf16.msra.mxu0 0
      %1083 = vmatprep.subr.bf16.mxu0 0
      %1084 = vmatpush1.bf16.msra.mxu0 0
      %1085 = vmatprep.subr.bf16.mxu0 0
      %1086 = vmatpush1.bf16.msra.mxu0 0
      %1087 = vmatprep.subr.bf16.mxu0 0
      %1088 = vmatpush1.bf16.msra.mxu0 0
      %1089 = vmatprep.subr.bf16.mxu0 0
      %1090 = vmatpush1.bf16.msra.mxu0 0
      %1091 = vmatprep.subr.bf16.mxu0 0
      %1092 = vmatpush1.bf16.msra.mxu0 0
      %1093 = vmatprep.subr.bf16.mxu0 0
      %1094 = vmatpush1.bf16.msra.mxu0 0
      %1095 = vmatprep.subr.bf16.mxu0 0
      %1096 = vmatpush1.bf16.msra.mxu0 0
      %1097 = vmatprep.subr.bf16.mxu0 0
      %1098 = vmatpush1.bf16.msra.mxu0 0
      %1099 = vmatprep.subr.bf16.mxu0 0
      %1100 = vmatpush1.bf16.msra.mxu0 0
      %1101 = vmatprep.subr.bf16.mxu0 0
      %1102 = vmatpush1.bf16.msra.mxu0 0
      %1103 = vmatprep.subr.bf16.mxu0 0
      %1104 = vmatpush1.bf16.msra.mxu0 0
      %1105 = vmatprep.subr.bf16.mxu0 0
      %1106 = vmatpush1.bf16.msra.mxu0 0
      %1107 = vmatprep.mubr.bf16.mxu0 0
      %1108 = vmatmul.mubr.bf16.gmra.mrb[0].mxu0 %v787
      %v1109 = vpop.f32.mrb[0].mxu0
      %v1110 = vadd.f32 0.0, %v1109
      %v1111 = vpop.f32.mrb[0].mxu0
      %v1112 = vpop.f32.mrb[0].mxu0
      %v1113 = vadd.f32 0.0, %v1112
      %v1114 = vpop.f32.mrb[0].mxu0
      %1115 = vdwg.mxu0
      %1116 = vmatprep.subr.bf16.mxu0 0
      %1117 = vmatpush1.bf16.msra.mxu0 %v501
      %1118 = vmatprep.subr.bf16.mxu0 0
      %1119 = vmatpush1.bf16.msra.mxu0 0
      %1120 = vmatprep.subr.bf16.mxu0 0
      %1121 = vmatpush1.bf16.msra.mxu0 0
      %1122 = vmatprep.subr.bf16.mxu0 0
      %1123 = vmatpush1.bf16.msra.mxu0 0
      %1124 = vmatprep.subr.bf16.mxu0 0
      %1125 = vmatpush1.bf16.msra.mxu0 0
      %1126 = vmatprep.subr.bf16.mxu0 0
      %1127 = vmatpush1.bf16.msra.mxu0 0
      %1128 = vmatprep.subr.bf16.mxu0 0
      %1129 = vmatpush1.bf16.msra.mxu0 0
      %1130 = vmatprep.subr.bf16.mxu0 0
      %1131 = vmatpush1.bf16.msra.mxu0 0
      %1132 = vmatprep.subr.bf16.mxu0 0
      %1133 = vmatpush1.bf16.msra.mxu0 0
      %1134 = vmatprep.subr.bf16.mxu0 0
      %1135 = vmatpush1.bf16.msra.mxu0 0
      %1136 = vmatprep.subr.bf16.mxu0 0
      %1137 = vmatpush1.bf16.msra.mxu0 0
      %1138 = vmatprep.subr.bf16.mxu0 0
      %1139 = vmatpush1.bf16.msra.mxu0 0
      %1140 = vmatprep.subr.bf16.mxu0 0
      %1141 = vmatpush1.bf16.msra.mxu0 0
      %1142 = vmatprep.subr.bf16.mxu0 0
      %1143 = vmatpush1.bf16.msra.mxu0 0
      %1144 = vmatprep.subr.bf16.mxu0 0
      %1145 = vmatpush1.bf16.msra.mxu0 0
      %1146 = vmatprep.subr.bf16.mxu0 0
      %1147 = vmatpush1.bf16.msra.mxu0 0
      %1148 = vmatprep.mubr.bf16.mxu0 0
      %1149 = vmatmul.mubr.bf16.gmra.mrb[0].mxu0 %v836
      %v1150 = vpop.f32.mrb[0].mxu0
      %v1151 = vadd.f32 %v1110, %v1150
      %v1152 = vpop.f32.mrb[0].mxu0
      %v1153 = vpop.f32.mrb[0].mxu0
      %v1154 = vadd.f32 %v1113, %v1153
      %v1155 = vpop.f32.mrb[0].mxu0
      %1156 = vdwg.mxu0
      %1157 = vmatprep.subr.bf16.mxu0 0
      %1158 = vmatpush1.bf16.msra.mxu0 %v591
      %1159 = vmatprep.subr.bf16.mxu0 0
      %1160 = vmatpush1.bf16.msra.mxu0 0
      %1161 = vmatprep.subr.bf16.mxu0 0
      %1162 = vmatpush1.bf16.msra.mxu0 0
      %1163 = vmatprep.subr.bf16.mxu0 0
      %1164 = vmatpush1.bf16.msra.mxu0 0
      %1165 = vmatprep.subr.bf16.mxu0 0
      %1166 = vmatpush1.bf16.msra.mxu0 0
      %1167 = vmatprep.subr.bf16.mxu0 0
      %1168 = vmatpush1.bf16.msra.mxu0 0
      %1169 = vmatprep.subr.bf16.mxu0 0
      %1170 = vmatpush1.bf16.msra.mxu0 0
      %1171 = vmatprep.subr.bf16.mxu0 0
      %1172 = vmatpush1.bf16.msra.mxu0 0
      %1173 = vmatprep.subr.bf16.mxu0 0
      %1174 = vmatpush1.bf16.msra.mxu0 0
      %1175 = vmatprep.subr.bf16.mxu0 0
      %1176 = vmatpush1.bf16.msra.mxu0 0
      %1177 = vmatprep.subr.bf16.mxu0 0
      %1178 = vmatpush1.bf16.msra.mxu0 0
      %1179 = vmatprep.subr.bf16.mxu0 0
      %1180 = vmatpush1.bf16.msra.mxu0 0
      %1181 = vmatprep.subr.bf16.mxu0 0
      %1182 = vmatpush1.bf16.msra.mxu0 0
      %1183 = vmatprep.subr.bf16.mxu0 0
      %1184 = vmatpush1.bf16.msra.mxu0 0
      %1185 = vmatprep.subr.bf16.mxu0 0
      %1186 = vmatpush1.bf16.msra.mxu0 0
      %1187 = vmatprep.subr.bf16.mxu0 0
      %1188 = vmatpush1.bf16.msra.mxu0 0
      %1189 = vmatprep.mubr.bf16.mxu0 0
      %1190 = vmatmul.mubr.bf16.gmra.mrb[0].mxu0 %v885
      %v1191 = vpop.f32.mrb[0].mxu0
      %v1192 = vadd.f32 0.0, %v1191
      %v1193 = vpop.f32.mrb[0].mxu0
      %v1194 = vpop.f32.mrb[0].mxu0
      %v1195 = vadd.f32 0.0, %v1194
      %v1196 = vpop.f32.mrb[0].mxu0
      %1197 = vdwg.mxu0
      %v1198 = vadd.f32 %v1151, %v1192
      %v1199 = vadd.f32 %v1154, %v1195
      %v1200 = vadd.f32 %v1198, %v933
      %v1201 = vadd.f32 %v1199, %v938
      %v1202 = vmax.f32 %v1200, 0.0
      %v1203 = vmax.f32 %v1201, 0.0
      %v1204 = vpack.c.bf16 %v1203, %v1202
      %1205 = vmatprep.subr.bf16.mxu0 0
      %1206 = vmatpush1.bf16.msra.mxu0 %v591
      %1207 = vmatprep.subr.bf16.mxu0 0
      %1208 = vmatpush1.bf16.msra.mxu0 0
      %1209 = vmatprep.subr.bf16.mxu0 0
      %1210 = vmatpush1.bf16.msra.mxu0 0
      %1211 = vmatprep.subr.bf16.mxu0 0
      %1212 = vmatpush1.bf16.msra.mxu0 0
      %1213 = vmatprep.subr.bf16.mxu0 0
      %1214 = vmatpush1.bf16.msra.mxu0 0
      %1215 = vmatprep.subr.bf16.mxu0 0
      %1216 = vmatpush1.bf16.msra.mxu0 0
      %1217 = vmatprep.subr.bf16.mxu0 0
      %1218 = vmatpush1.bf16.msra.mxu0 0
      %1219 = vmatprep.subr.bf16.mxu0 0
      %1220 = vmatpush1.bf16.msra.mxu0 0
      %1221 = vmatprep.subr.bf16.mxu0 0
      %1222 = vmatpush1.bf16.msra.mxu0 0
      %1223 = vmatprep.subr.bf16.mxu0 0
      %1224 = vmatpush1.bf16.msra.mxu0 0
      %1225 = vmatprep.subr.bf16.mxu0 0
      %1226 = vmatpush1.bf16.msra.mxu0 0
      %1227 = vmatprep.subr.bf16.mxu0 0
      %1228 = vmatpush1.bf16.msra.mxu0 0
      %1229 = vmatprep.subr.bf16.mxu0 0
      %1230 = vmatpush1.bf16.msra.mxu0 0
      %1231 = vmatprep.subr.bf16.mxu0 0
      %1232 = vmatpush1.bf16.msra.mxu0 0
      %1233 = vmatprep.subr.bf16.mxu0 0
      %1234 = vmatpush1.bf16.msra.mxu0 0
      %1235 = vmatprep.subr.bf16.mxu0 0
      %1236 = vmatpush1.bf16.msra.mxu0 0
      %1237 = vmatprep.mubr.bf16.mxu0 0
      %1238 = vmatmul.mubr.bf16.gmra.mrb[0].mxu0 %v787
      %v1239 = vpop.f32.mrb[0].mxu0
      %v1240 = vadd.f32 0.0, %v1239
      %v1241 = vpop.f32.mrb[0].mxu0
      %v1242 = vpop.f32.mrb[0].mxu0
      %v1243 = vadd.f32 0.0, %v1242
      %v1244 = vpop.f32.mrb[0].mxu0
      %1245 = vdwg.mxu0
      %1246 = vmatprep.subr.bf16.mxu0 0
      %1247 = vmatpush1.bf16.msra.mxu0 %v546
      %1248 = vmatprep.subr.bf16.mxu0 0
      %1249 = vmatpush1.bf16.msra.mxu0 0
      %1250 = vmatprep.subr.bf16.mxu0 0
      %1251 = vmatpush1.bf16.msra.mxu0 0
      %1252 = vmatprep.subr.bf16.mxu0 0
      %1253 = vmatpush1.bf16.msra.mxu0 0
      %1254 = vmatprep.subr.bf16.mxu0 0
      %1255 = vmatpush1.bf16.msra.mxu0 0
      %1256 = vmatprep.subr.bf16.mxu0 0
      %1257 = vmatpush1.bf16.msra.mxu0 0
      %1258 = vmatprep.subr.bf16.mxu0 0
      %1259 = vmatpush1.bf16.msra.mxu0 0
      %1260 = vmatprep.subr.bf16.mxu0 0
      %1261 = vmatpush1.bf16.msra.mxu0 0
      %1262 = vmatprep.subr.bf16.mxu0 0
      %1263 = vmatpush1.bf16.msra.mxu0 0
      %1264 = vmatprep.subr.bf16.mxu0 0
      %1265 = vmatpush1.bf16.msra.mxu0 0
      %1266 = vmatprep.subr.bf16.mxu0 0
      %1267 = vmatpush1.bf16.msra.mxu0 0
      %1268 = vmatprep.subr.bf16.mxu0 0
      %1269 = vmatpush1.bf16.msra.mxu0 0
      %1270 = vmatprep.subr.bf16.mxu0 0
      %1271 = vmatpush1.bf16.msra.mxu0 0
      %1272 = vmatprep.subr.bf16.mxu0 0
      %1273 = vmatpush1.bf16.msra.mxu0 0
      %1274 = vmatprep.subr.bf16.mxu0 0
      %1275 = vmatpush1.bf16.msra.mxu0 0
      %1276 = vmatprep.subr.bf16.mxu0 0
      %1277 = vmatpush1.bf16.msra.mxu0 0
      %1278 = vmatprep.mubr.bf16.mxu0 0
      %1279 = vmatmul.mubr.bf16.gmra.mrb[0].mxu0 %v836
      %v1280 = vpop.f32.mrb[0].mxu0
      %v1281 = vadd.f32 %v1240, %v1280
      %v1282 = vpop.f32.mrb[0].mxu0
      %v1283 = vpop.f32.mrb[0].mxu0
      %v1284 = vadd.f32 %v1243, %v1283
      %v1285 = vpop.f32.mrb[0].mxu0
      %1286 = vdwg.mxu0
      %1287 = vmatprep.subr.bf16.mxu0 0
      %1288 = vmatpush1.bf16.msra.mxu0 %v636
      %1289 = vmatprep.subr.bf16.mxu0 0
      %1290 = vmatpush1.bf16.msra.mxu0 0
      %1291 = vmatprep.subr.bf16.mxu0 0
      %1292 = vmatpush1.bf16.msra.mxu0 0
      %1293 = vmatprep.subr.bf16.mxu0 0
      %1294 = vmatpush1.bf16.msra.mxu0 0
      %1295 = vmatprep.subr.bf16.mxu0 0
      %1296 = vmatpush1.bf16.msra.mxu0 0
      %1297 = vmatprep.subr.bf16.mxu0 0
      %1298 = vmatpush1.bf16.msra.mxu0 0
      %1299 = vmatprep.subr.bf16.mxu0 0
      %1300 = vmatpush1.bf16.msra.mxu0 0
      %1301 = vmatprep.subr.bf16.mxu0 0
      %1302 = vmatpush1.bf16.msra.mxu0 0
      %1303 = vmatprep.subr.bf16.mxu0 0
      %1304 = vmatpush1.bf16.msra.mxu0 0
      %1305 = vmatprep.subr.bf16.mxu0 0
      %1306 = vmatpush1.bf16.msra.mxu0 0
      %1307 = vmatprep.subr.bf16.mxu0 0
      %1308 = vmatpush1.bf16.msra.mxu0 0
      %1309 = vmatprep.subr.bf16.mxu0 0
      %1310 = vmatpush1.bf16.msra.mxu0 0
      %1311 = vmatprep.subr.bf16.mxu0 0
      %1312 = vmatpush1.bf16.msra.mxu0 0
      %1313 = vmatprep.subr.bf16.mxu0 0
      %1314 = vmatpush1.bf16.msra.mxu0 0
      %1315 = vmatprep.subr.bf16.mxu0 0
      %1316 = vmatpush1.bf16.msra.mxu0 0
      %1317 = vmatprep.subr.bf16.mxu0 0
      %1318 = vmatpush1.bf16.msra.mxu0 0
      %1319 = vmatprep.mubr.bf16.mxu0 0
      %1320 = vmatmul.mubr.bf16.gmra.mrb[0].mxu0 %v885
      %v1321 = vpop.f32.mrb[0].mxu0
      %v1322 = vadd.f32 0.0, %v1321
      %v1323 = vpop.f32.mrb[0].mxu0
      %v1324 = vpop.f32.mrb[0].mxu0
      %v1325 = vadd.f32 0.0, %v1324
      %v1326 = vpop.f32.mrb[0].mxu0
      %1327 = vdwg.mxu0
      %v1328 = vadd.f32 %v1281, %v1322
      %v1329 = vadd.f32 %v1284, %v1325
      %v1330 = vadd.f32 %v1328, %v933
      %v1331 = vadd.f32 %v1329, %v938
      %v1332 = vmax.f32 %v1330, 0.0
      %v1333 = vmax.f32 %v1331, 0.0
      %v1334 = vpack.c.bf16 %v1333, %v1332
      %1335 = vmatprep.subr.bf16.mxu0 0
      %1336 = vmatpush1.bf16.msra.mxu0 %v636
      %1337 = vmatprep.subr.bf16.mxu0 0
      %1338 = vmatpush1.bf16.msra.mxu0 0
      %1339 = vmatprep.subr.bf16.mxu0 0
      %1340 = vmatpush1.bf16.msra.mxu0 0
      %1341 = vmatprep.subr.bf16.mxu0 0
      %1342 = vmatpush1.bf16.msra.mxu0 0
      %1343 = vmatprep.subr.bf16.mxu0 0
      %1344 = vmatpush1.bf16.msra.mxu0 0
      %1345 = vmatprep.subr.bf16.mxu0 0
      %1346 = vmatpush1.bf16.msra.mxu0 0
      %1347 = vmatprep.subr.bf16.mxu0 0
      %1348 = vmatpush1.bf16.msra.mxu0 0
      %1349 = vmatprep.subr.bf16.mxu0 0
      %1350 = vmatpush1.bf16.msra.mxu0 0
      %1351 = vmatprep.subr.bf16.mxu0 0
      %1352 = vmatpush1.bf16.msra.mxu0 0
      %1353 = vmatprep.subr.bf16.mxu0 0
      %1354 = vmatpush1.bf16.msra.mxu0 0
      %1355 = vmatprep.subr.bf16.mxu0 0
      %1356 = vmatpush1.bf16.msra.mxu0 0
      %1357 = vmatprep.subr.bf16.mxu0 0
      %1358 = vmatpush1.bf16.msra.mxu0 0
      %1359 = vmatprep.subr.bf16.mxu0 0
      %1360 = vmatpush1.bf16.msra.mxu0 0
      %1361 = vmatprep.subr.bf16.mxu0 0
      %1362 = vmatpush1.bf16.msra.mxu0 0
      %1363 = vmatprep.subr.bf16.mxu0 0
      %1364 = vmatpush1.bf16.msra.mxu0 0
      %1365 = vmatprep.subr.bf16.mxu0 0
      %1366 = vmatpush1.bf16.msra.mxu0 0
      %1367 = vmatprep.mubr.bf16.mxu0 0
      %1368 = vmatmul.mubr.bf16.gmra.mrb[0].mxu0 %v787
      %v1369 = vpop.f32.mrb[0].mxu0
      %v1370 = vadd.f32 0.0, %v1369
      %v1371 = vpop.f32.mrb[0].mxu0
      %v1372 = vpop.f32.mrb[0].mxu0
      %v1373 = vadd.f32 0.0, %v1372
      %v1374 = vpop.f32.mrb[0].mxu0
      %1375 = vdwg.mxu0
      %1376 = vmatprep.subr.bf16.mxu0 0
      %1377 = vmatpush1.bf16.msra.mxu0 %v591
      %1378 = vmatprep.subr.bf16.mxu0 0
      %1379 = vmatpush1.bf16.msra.mxu0 0
      %1380 = vmatprep.subr.bf16.mxu0 0
      %1381 = vmatpush1.bf16.msra.mxu0 0
      %1382 = vmatprep.subr.bf16.mxu0 0
      %1383 = vmatpush1.bf16.msra.mxu0 0
      %1384 = vmatprep.subr.bf16.mxu0 0
      %1385 = vmatpush1.bf16.msra.mxu0 0
      %1386 = vmatprep.subr.bf16.mxu0 0
      %1387 = vmatpush1.bf16.msra.mxu0 0
      %1388 = vmatprep.subr.bf16.mxu0 0
      %1389 = vmatpush1.bf16.msra.mxu0 0
      %1390 = vmatprep.subr.bf16.mxu0 0
      %1391 = vmatpush1.bf16.msra.mxu0 0
      %1392 = vmatprep.subr.bf16.mxu0 0
      %1393 = vmatpush1.bf16.msra.mxu0 0
      %1394 = vmatprep.subr.bf16.mxu0 0
      %1395 = vmatpush1.bf16.msra.mxu0 0
      %1396 = vmatprep.subr.bf16.mxu0 0
      %1397 = vmatpush1.bf16.msra.mxu0 0
      %1398 = vmatprep.subr.bf16.mxu0 0
      %1399 = vmatpush1.bf16.msra.mxu0 0
      %1400 = vmatprep.subr.bf16.mxu0 0
      %1401 = vmatpush1.bf16.msra.mxu0 0
      %1402 = vmatprep.subr.bf16.mxu0 0
      %1403 = vmatpush1.bf16.msra.mxu0 0
      %1404 = vmatprep.subr.bf16.mxu0 0
      %1405 = vmatpush1.bf16.msra.mxu0 0
      %1406 = vmatprep.subr.bf16.mxu0 0
      %1407 = vmatpush1.bf16.msra.mxu0 0
      %1408 = vmatprep.mubr.bf16.mxu0 0
      %1409 = vmatmul.mubr.bf16.gmra.mrb[0].mxu0 %v836
      %v1410 = vpop.f32.mrb[0].mxu0
      %v1411 = vadd.f32 %v1370, %v1410
      %v1412 = vpop.f32.mrb[0].mxu0
      %v1413 = vpop.f32.mrb[0].mxu0
      %v1414 = vadd.f32 %v1373, %v1413
      %v1415 = vpop.f32.mrb[0].mxu0
      %1416 = vdwg.mxu0
      %1417 = vmatprep.subr.bf16.mxu0 0
      %1418 = vmatpush1.bf16.msra.mxu0 %v681
      %1419 = vmatprep.subr.bf16.mxu0 0
      %1420 = vmatpush1.bf16.msra.mxu0 0
      %1421 = vmatprep.subr.bf16.mxu0 0
      %1422 = vmatpush1.bf16.msra.mxu0 0
      %1423 = vmatprep.subr.bf16.mxu0 0
      %1424 = vmatpush1.bf16.msra.mxu0 0
      %1425 = vmatprep.subr.bf16.mxu0 0
      %1426 = vmatpush1.bf16.msra.mxu0 0
      %1427 = vmatprep.subr.bf16.mxu0 0
      %1428 = vmatpush1.bf16.msra.mxu0 0
      %1429 = vmatprep.subr.bf16.mxu0 0
      %1430 = vmatpush1.bf16.msra.mxu0 0
      %1431 = vmatprep.subr.bf16.mxu0 0
      %1432 = vmatpush1.bf16.msra.mxu0 0
      %1433 = vmatprep.subr.bf16.mxu0 0
      %1434 = vmatpush1.bf16.msra.mxu0 0
      %1435 = vmatprep.subr.bf16.mxu0 0
      %1436 = vmatpush1.bf16.msra.mxu0 0
      %1437 = vmatprep.subr.bf16.mxu0 0
      %1438 = vmatpush1.bf16.msra.mxu0 0
      %1439 = vmatprep.subr.bf16.mxu0 0
      %1440 = vmatpush1.bf16.msra.mxu0 0
      %1441 = vmatprep.subr.bf16.mxu0 0
      %1442 = vmatpush1.bf16.msra.mxu0 0
      %1443 = vmatprep.subr.bf16.mxu0 0
      %1444 = vmatpush1.bf16.msra.mxu0 0
      %1445 = vmatprep.subr.bf16.mxu0 0
      %1446 = vmatpush1.bf16.msra.mxu0 0
      %1447 = vmatprep.subr.bf16.mxu0 0
      %1448 = vmatpush1.bf16.msra.mxu0 0
      %1449 = vmatprep.mubr.bf16.mxu0 0
      %1450 = vmatmul.mubr.bf16.gmra.mrb[0].mxu0 %v885
      %v1451 = vpop.f32.mrb[0].mxu0
      %v1452 = vadd.f32 0.0, %v1451
      %v1453 = vpop.f32.mrb[0].mxu0
      %v1454 = vpop.f32.mrb[0].mxu0
      %v1455 = vadd.f32 0.0, %v1454
      %v1456 = vpop.f32.mrb[0].mxu0
      %1457 = vdwg.mxu0
      %v1458 = vadd.f32 %v1411, %v1452
      %v1459 = vadd.f32 %v1414, %v1455
      %v1460 = vadd.f32 %v1458, %v933
      %v1461 = vadd.f32 %v1459, %v938
      %v1462 = vmax.f32 %v1460, 0.0
      %v1463 = vmax.f32 %v1461, 0.0
      %v1464 = vpack.c.bf16 %v1463, %v1462
      %1465 = vmatprep.subr.bf16.mxu0 0
      %1466 = vmatpush1.bf16.msra.mxu0 %v681
      %1467 = vmatprep.subr.bf16.mxu0 0
      %1468 = vmatpush1.bf16.msra.mxu0 0
      %1469 = vmatprep.subr.bf16.mxu0 0
      %1470 = vmatpush1.bf16.msra.mxu0 0
      %1471 = vmatprep.subr.bf16.mxu0 0
      %1472 = vmatpush1.bf16.msra.mxu0 0
      %1473 = vmatprep.subr.bf16.mxu0 0
      %1474 = vmatpush1.bf16.msra.mxu0 0
      %1475 = vmatprep.subr.bf16.mxu0 0
      %1476 = vmatpush1.bf16.msra.mxu0 0
      %1477 = vmatprep.subr.bf16.mxu0 0
      %1478 = vmatpush1.bf16.msra.mxu0 0
      %1479 = vmatprep.subr.bf16.mxu0 0
      %1480 = vmatpush1.bf16.msra.mxu0 0
      %1481 = vmatprep.subr.bf16.mxu0 0
      %1482 = vmatpush1.bf16.msra.mxu0 0
      %1483 = vmatprep.subr.bf16.mxu0 0
      %1484 = vmatpush1.bf16.msra.mxu0 0
      %1485 = vmatprep.subr.bf16.mxu0 0
      %1486 = vmatpush1.bf16.msra.mxu0 0
      %1487 = vmatprep.subr.bf16.mxu0 0
      %1488 = vmatpush1.bf16.msra.mxu0 0
      %1489 = vmatprep.subr.bf16.mxu0 0
      %1490 = vmatpush1.bf16.msra.mxu0 0
      %1491 = vmatprep.subr.bf16.mxu0 0
      %1492 = vmatpush1.bf16.msra.mxu0 0
      %1493 = vmatprep.subr.bf16.mxu0 0
      %1494 = vmatpush1.bf16.msra.mxu0 0
      %1495 = vmatprep.subr.bf16.mxu0 0
      %1496 = vmatpush1.bf16.msra.mxu0 0
      %1497 = vmatprep.mubr.bf16.mxu0 0
      %1498 = vmatmul.mubr.bf16.gmra.mrb[0].mxu0 %v787
      %v1499 = vpop.f32.mrb[0].mxu0
      %v1500 = vadd.f32 0.0, %v1499
      %v1501 = vpop.f32.mrb[0].mxu0
      %v1502 = vpop.f32.mrb[0].mxu0
      %v1503 = vadd.f32 0.0, %v1502
      %v1504 = vpop.f32.mrb[0].mxu0
      %1505 = vdwg.mxu0
      %1506 = vmatprep.subr.bf16.mxu0 0
      %1507 = vmatpush1.bf16.msra.mxu0 %v636
      %1508 = vmatprep.subr.bf16.mxu0 0
      %1509 = vmatpush1.bf16.msra.mxu0 0
      %1510 = vmatprep.subr.bf16.mxu0 0
      %1511 = vmatpush1.bf16.msra.mxu0 0
      %1512 = vmatprep.subr.bf16.mxu0 0
      %1513 = vmatpush1.bf16.msra.mxu0 0
      %1514 = vmatprep.subr.bf16.mxu0 0
      %1515 = vmatpush1.bf16.msra.mxu0 0
      %1516 = vmatprep.subr.bf16.mxu0 0
      %1517 = vmatpush1.bf16.msra.mxu0 0
      %1518 = vmatprep.subr.bf16.mxu0 0
      %1519 = vmatpush1.bf16.msra.mxu0 0
      %1520 = vmatprep.subr.bf16.mxu0 0
      %1521 = vmatpush1.bf16.msra.mxu0 0
      %1522 = vmatprep.subr.bf16.mxu0 0
      %1523 = vmatpush1.bf16.msra.mxu0 0
      %1524 = vmatprep.subr.bf16.mxu0 0
      %1525 = vmatpush1.bf16.msra.mxu0 0
      %1526 = vmatprep.subr.bf16.mxu0 0
      %1527 = vmatpush1.bf16.msra.mxu0 0
      %1528 = vmatprep.subr.bf16.mxu0 0
      %1529 = vmatpush1.bf16.msra.mxu0 0
      %1530 = vmatprep.subr.bf16.mxu0 0
      %1531 = vmatpush1.bf16.msra.mxu0 0
      %1532 = vmatprep.subr.bf16.mxu0 0
      %1533 = vmatpush1.bf16.msra.mxu0 0
      %1534 = vmatprep.subr.bf16.mxu0 0
      %1535 = vmatpush1.bf16.msra.mxu0 0
      %1536 = vmatprep.subr.bf16.mxu0 0
      %1537 = vmatpush1.bf16.msra.mxu0 0
      %1538 = vmatprep.mubr.bf16.mxu0 0
      %1539 = vmatmul.mubr.bf16.gmra.mrb[0].mxu0 %v836
      %v1540 = vpop.f32.mrb[0].mxu0
      %v1541 = vadd.f32 %v1500, %v1540
      %v1542 = vpop.f32.mrb[0].mxu0
      %v1543 = vpop.f32.mrb[0].mxu0
      %v1544 = vadd.f32 %v1503, %v1543
      %v1545 = vpop.f32.mrb[0].mxu0
      %1546 = vdwg.mxu0
      %1547 = vmatprep.subr.bf16.mxu0 0
      %1548 = vmatpush1.bf16.msra.mxu0 %v726
      %1549 = vmatprep.subr.bf16.mxu0 0
      %1550 = vmatpush1.bf16.msra.mxu0 0
      %1551 = vmatprep.subr.bf16.mxu0 0
      %1552 = vmatpush1.bf16.msra.mxu0 0
      %1553 = vmatprep.subr.bf16.mxu0 0
      %1554 = vmatpush1.bf16.msra.mxu0 0
      %1555 = vmatprep.subr.bf16.mxu0 0
      %1556 = vmatpush1.bf16.msra.mxu0 0
      %1557 = vmatprep.subr.bf16.mxu0 0
      %1558 = vmatpush1.bf16.msra.mxu0 0
      %1559 = vmatprep.subr.bf16.mxu0 0
      %1560 = vmatpush1.bf16.msra.mxu0 0
      %1561 = vmatprep.subr.bf16.mxu0 0
      %1562 = vmatpush1.bf16.msra.mxu0 0
      %1563 = vmatprep.subr.bf16.mxu0 0
      %1564 = vmatpush1.bf16.msra.mxu0 0
      %1565 = vmatprep.subr.bf16.mxu0 0
      %1566 = vmatpush1.bf16.msra.mxu0 0
      %1567 = vmatprep.subr.bf16.mxu0 0
      %1568 = vmatpush1.bf16.msra.mxu0 0
      %1569 = vmatprep.subr.bf16.mxu0 0
      %1570 = vmatpush1.bf16.msra.mxu0 0
      %1571 = vmatprep.subr.bf16.mxu0 0
      %1572 = vmatpush1.bf16.msra.mxu0 0
      %1573 = vmatprep.subr.bf16.mxu0 0
      %1574 = vmatpush1.bf16.msra.mxu0 0
      %1575 = vmatprep.subr.bf16.mxu0 0
      %1576 = vmatpush1.bf16.msra.mxu0 0
      %1577 = vmatprep.subr.bf16.mxu0 0
      %1578 = vmatpush1.bf16.msra.mxu0 0
      %1579 = vmatprep.mubr.bf16.mxu0 0
      %1580 = vmatmul.mubr.bf16.gmra.mrb[0].mxu0 %v885
      %v1581 = vpop.f32.mrb[0].mxu0
      %v1582 = vadd.f32 0.0, %v1581
      %v1583 = vpop.f32.mrb[0].mxu0
      %v1584 = vpop.f32.mrb[0].mxu0
      %v1585 = vadd.f32 0.0, %v1584
      %v1586 = vpop.f32.mrb[0].mxu0
      %1587 = vdwg.mxu0
      %v1588 = vadd.f32 %v1541, %v1582
      %v1589 = vadd.f32 %v1544, %v1585
      %v1590 = vadd.f32 %v1588, %v933
      %v1591 = vadd.f32 %v1589, %v938
      %v1592 = vmax.f32 %v1590, 0.0
      %v1593 = vmax.f32 %v1591, 0.0
      %v1594 = vpack.c.bf16 %v1593, %v1592
      %1595 = vmatprep.subr.bf16.mxu0 0
      %1596 = vmatpush1.bf16.msra.mxu0 %v726
      %1597 = vmatprep.subr.bf16.mxu0 0
      %1598 = vmatpush1.bf16.msra.mxu0 0
      %1599 = vmatprep.subr.bf16.mxu0 0
      %1600 = vmatpush1.bf16.msra.mxu0 0
      %1601 = vmatprep.subr.bf16.mxu0 0
      %1602 = vmatpush1.bf16.msra.mxu0 0
      %1603 = vmatprep.subr.bf16.mxu0 0
      %1604 = vmatpush1.bf16.msra.mxu0 0
      %1605 = vmatprep.subr.bf16.mxu0 0
      %1606 = vmatpush1.bf16.msra.mxu0 0
      %1607 = vmatprep.subr.bf16.mxu0 0
      %1608 = vmatpush1.bf16.msra.mxu0 0
      %1609 = vmatprep.subr.bf16.mxu0 0
      %1610 = vmatpush1.bf16.msra.mxu0 0
      %1611 = vmatprep.subr.bf16.mxu0 0
      %1612 = vmatpush1.bf16.msra.mxu0 0
      %1613 = vmatprep.subr.bf16.mxu0 0
      %1614 = vmatpush1.bf16.msra.mxu0 0
      %1615 = vmatprep.subr.bf16.mxu0 0
      %1616 = vmatpush1.bf16.msra.mxu0 0
      %1617 = vmatprep.subr.bf16.mxu0 0
      %1618 = vmatpush1.bf16.msra.mxu0 0
      %1619 = vmatprep.subr.bf16.mxu0 0
      %1620 = vmatpush1.bf16.msra.mxu0 0
      %1621 = vmatprep.subr.bf16.mxu0 0
      %1622 = vmatpush1.bf16.msra.mxu0 0
      %1623 = vmatprep.subr.bf16.mxu0 0
      %1624 = vmatpush1.bf16.msra.mxu0 0
      %1625 = vmatprep.subr.bf16.mxu0 0
      %1626 = vmatpush1.bf16.msra.mxu0 0
      %1627 = vmatprep.mubr.bf16.mxu0 0
      %1628 = vmatmul.mubr.bf16.gmra.mrb[0].mxu0 %v787
      %v1629 = vpop.f32.mrb[0].mxu0
      %v1630 = vadd.f32 0.0, %v1629
      %v1631 = vpop.f32.mrb[0].mxu0
      %v1632 = vpop.f32.mrb[0].mxu0
      %v1633 = vadd.f32 0.0, %v1632
      %v1634 = vpop.f32.mrb[0].mxu0
      %1635 = vdwg.mxu0
      %1636 = vmatprep.subr.bf16.mxu0 0
      %1637 = vmatpush1.bf16.msra.mxu0 %v681
      %1638 = vmatprep.subr.bf16.mxu0 0
      %1639 = vmatpush1.bf16.msra.mxu0 0
      %1640 = vmatprep.subr.bf16.mxu0 0
      %1641 = vmatpush1.bf16.msra.mxu0 0
      %1642 = vmatprep.subr.bf16.mxu0 0
      %1643 = vmatpush1.bf16.msra.mxu0 0
      %1644 = vmatprep.subr.bf16.mxu0 0
      %1645 = vmatpush1.bf16.msra.mxu0 0
      %1646 = vmatprep.subr.bf16.mxu0 0
      %1647 = vmatpush1.bf16.msra.mxu0 0
      %1648 = vmatprep.subr.bf16.mxu0 0
      %1649 = vmatpush1.bf16.msra.mxu0 0
      %1650 = vmatprep.subr.bf16.mxu0 0
      %1651 = vmatpush1.bf16.msra.mxu0 0
      %1652 = vmatprep.subr.bf16.mxu0 0
      %1653 = vmatpush1.bf16.msra.mxu0 0
      %1654 = vmatprep.subr.bf16.mxu0 0
      %1655 = vmatpush1.bf16.msra.mxu0 0
      %1656 = vmatprep.subr.bf16.mxu0 0
      %1657 = vmatpush1.bf16.msra.mxu0 0
      %1658 = vmatprep.subr.bf16.mxu0 0
      %1659 = vmatpush1.bf16.msra.mxu0 0
      %1660 = vmatprep.subr.bf16.mxu0 0
      %1661 = vmatpush1.bf16.msra.mxu0 0
      %1662 = vmatprep.subr.bf16.mxu0 0
      %1663 = vmatpush1.bf16.msra.mxu0 0
      %1664 = vmatprep.subr.bf16.mxu0 0
      %1665 = vmatpush1.bf16.msra.mxu0 0
      %1666 = vmatprep.subr.bf16.mxu0 0
      %1667 = vmatpush1.bf16.msra.mxu0 0
      %1668 = vmatprep.mubr.bf16.mxu0 0
      %1669 = vmatmul.mubr.bf16.gmra.mrb[0].mxu0 %v836
      %v1670 = vpop.f32.mrb[0].mxu0
      %v1671 = vadd.f32 %v1630, %v1670
      %v1672 = vpop.f32.mrb[0].mxu0
      %v1673 = vpop.f32.mrb[0].mxu0
      %v1674 = vadd.f32 %v1633, %v1673
      %v1675 = vpop.f32.mrb[0].mxu0
      %1676 = vdwg.mxu0
      %1677 = vmatprep.subr.bf16.mxu0 0
      %1678 = vmatpush1.bf16.msra.mxu0 %v771
      %1679 = vmatprep.subr.bf16.mxu0 0
      %1680 = vmatpush1.bf16.msra.mxu0 0
      %1681 = vmatprep.subr.bf16.mxu0 0
      %1682 = vmatpush1.bf16.msra.mxu0 0
      %1683 = vmatprep.subr.bf16.mxu0 0
      %1684 = vmatpush1.bf16.msra.mxu0 0
      %1685 = vmatprep.subr.bf16.mxu0 0
      %1686 = vmatpush1.bf16.msra.mxu0 0
      %1687 = vmatprep.subr.bf16.mxu0 0
      %1688 = vmatpush1.bf16.msra.mxu0 0
      %1689 = vmatprep.subr.bf16.mxu0 0
      %1690 = vmatpush1.bf16.msra.mxu0 0
      %1691 = vmatprep.subr.bf16.mxu0 0
      %1692 = vmatpush1.bf16.msra.mxu0 0
      %1693 = vmatprep.subr.bf16.mxu0 0
      %1694 = vmatpush1.bf16.msra.mxu0 0
      %1695 = vmatprep.subr.bf16.mxu0 0
      %1696 = vmatpush1.bf16.msra.mxu0 0
      %1697 = vmatprep.subr.bf16.mxu0 0
      %1698 = vmatpush1.bf16.msra.mxu0 0
      %1699 = vmatprep.subr.bf16.mxu0 0
      %1700 = vmatpush1.bf16.msra.mxu0 0
      %1701 = vmatprep.subr.bf16.mxu0 0
      %1702 = vmatpush1.bf16.msra.mxu0 0
      %1703 = vmatprep.subr.bf16.mxu0 0
      %1704 = vmatpush1.bf16.msra.mxu0 0
      %1705 = vmatprep.subr.bf16.mxu0 0
      %1706 = vmatpush1.bf16.msra.mxu0 0
      %1707 = vmatprep.subr.bf16.mxu0 0
      %1708 = vmatpush1.bf16.msra.mxu0 0
      %1709 = vmatprep.mubr.bf16.mxu0 0
      %1710 = vmatmul.mubr.bf16.gmra.mrb[0].mxu0 %v885
      %v1711 = vpop.f32.mrb[0].mxu0
      %v1712 = vadd.f32 0.0, %v1711
      %v1713 = vpop.f32.mrb[0].mxu0
      %v1714 = vpop.f32.mrb[0].mxu0
      %v1715 = vadd.f32 0.0, %v1714
      %v1716 = vpop.f32.mrb[0].mxu0
      %1717 = vdwg.mxu0
      %v1718 = vadd.f32 %v1671, %v1712
      %v1719 = vadd.f32 %v1674, %v1715
      %v1720 = vadd.f32 %v1718, %v933
      %v1721 = vadd.f32 %v1719, %v938
      %v1722 = vmax.f32 %v1720, 0.0
      %v1723 = vmax.f32 %v1721, 0.0
      %v1724 = vpack.c.bf16 %v1723, %v1722
      %1725 = vmatprep.subr.bf16.mxu0 0
      %1726 = vmatpush1.bf16.msra.mxu0 %v771
      %1727 = vmatprep.subr.bf16.mxu0 0
      %1728 = vmatpush1.bf16.msra.mxu0 0
      %1729 = vmatprep.subr.bf16.mxu0 0
      %1730 = vmatpush1.bf16.msra.mxu0 0
      %1731 = vmatprep.subr.bf16.mxu0 0
      %1732 = vmatpush1.bf16.msra.mxu0 0
      %1733 = vmatprep.subr.bf16.mxu0 0
      %1734 = vmatpush1.bf16.msra.mxu0 0
      %1735 = vmatprep.subr.bf16.mxu0 0
      %1736 = vmatpush1.bf16.msra.mxu0 0
      %1737 = vmatprep.subr.bf16.mxu0 0
      %1738 = vmatpush1.bf16.msra.mxu0 0
      %1739 = vmatprep.subr.bf16.mxu0 0
      %1740 = vmatpush1.bf16.msra.mxu0 0
      %1741 = vmatprep.subr.bf16.mxu0 0
      %1742 = vmatpush1.bf16.msra.mxu0 0
      %1743 = vmatprep.subr.bf16.mxu0 0
      %1744 = vmatpush1.bf16.msra.mxu0 0
      %1745 = vmatprep.subr.bf16.mxu0 0
      %1746 = vmatpush1.bf16.msra.mxu0 0
      %1747 = vmatprep.subr.bf16.mxu0 0
      %1748 = vmatpush1.bf16.msra.mxu0 0
      %1749 = vmatprep.subr.bf16.mxu0 0
      %1750 = vmatpush1.bf16.msra.mxu0 0
      %1751 = vmatprep.subr.bf16.mxu0 0
      %1752 = vmatpush1.bf16.msra.mxu0 0
      %1753 = vmatprep.subr.bf16.mxu0 0
      %1754 = vmatpush1.bf16.msra.mxu0 0
      %1755 = vmatprep.subr.bf16.mxu0 0
      %1756 = vmatpush1.bf16.msra.mxu0 0
      %1757 = vmatprep.mubr.bf16.mxu0 0
      %1758 = vmatmul.mubr.bf16.gmra.mrb[0].mxu0 %v787
      %v1759 = vpop.f32.mrb[0].mxu0
      %v1760 = vadd.f32 0.0, %v1759
      %v1761 = vpop.f32.mrb[0].mxu0
      %v1762 = vpop.f32.mrb[0].mxu0
      %v1763 = vadd.f32 0.0, %v1762
      %v1764 = vpop.f32.mrb[0].mxu0
      %1765 = vdwg.mxu0
      %1766 = vmatprep.subr.bf16.mxu0 0
      %1767 = vmatpush1.bf16.msra.mxu0 %v726
      %1768 = vmatprep.subr.bf16.mxu0 0
      %1769 = vmatpush1.bf16.msra.mxu0 0
      %1770 = vmatprep.subr.bf16.mxu0 0
      %1771 = vmatpush1.bf16.msra.mxu0 0
      %1772 = vmatprep.subr.bf16.mxu0 0
      %1773 = vmatpush1.bf16.msra.mxu0 0
      %1774 = vmatprep.subr.bf16.mxu0 0
      %1775 = vmatpush1.bf16.msra.mxu0 0
      %1776 = vmatprep.subr.bf16.mxu0 0
      %1777 = vmatpush1.bf16.msra.mxu0 0
      %1778 = vmatprep.subr.bf16.mxu0 0
      %1779 = vmatpush1.bf16.msra.mxu0 0
      %1780 = vmatprep.subr.bf16.mxu0 0
      %1781 = vmatpush1.bf16.msra.mxu0 0
      %1782 = vmatprep.subr.bf16.mxu0 0
      %1783 = vmatpush1.bf16.msra.mxu0 0
      %1784 = vmatprep.subr.bf16.mxu0 0
      %1785 = vmatpush1.bf16.msra.mxu0 0
      %1786 = vmatprep.subr.bf16.mxu0 0
      %1787 = vmatpush1.bf16.msra.mxu0 0
      %1788 = vmatprep.subr.bf16.mxu0 0
      %1789 = vmatpush1.bf16.msra.mxu0 0
      %1790 = vmatprep.subr.bf16.mxu0 0
      %1791 = vmatpush1.bf16.msra.mxu0 0
      %1792 = vmatprep.subr.bf16.mxu0 0
      %1793 = vmatpush1.bf16.msra.mxu0 0
      %1794 = vmatprep.subr.bf16.mxu0 0
      %1795 = vmatpush1.bf16.msra.mxu0 0
      %1796 = vmatprep.subr.bf16.mxu0 0
      %1797 = vmatpush1.bf16.msra.mxu0 0
      %1798 = vmatprep.mubr.bf16.mxu0 0
      %1799 = vmatmul.mubr.bf16.gmra.mrb[0].mxu0 %v836
      %v1800 = vpop.f32.mrb[0].mxu0
      %v1801 = vadd.f32 %v1760, %v1800
      %v1802 = vpop.f32.mrb[0].mxu0
      %v1803 = vpop.f32.mrb[0].mxu0
      %v1804 = vadd.f32 %v1763, %v1803
      %v1805 = vpop.f32.mrb[0].mxu0
      %1806 = vdwg.mxu0
      %1808 = vrot.lane.b32.xlu0 %v411, 127
      %v1809 = vpop.permute.xlu0 %1808
      %1811 = vmatprep.subr.bf16.mxu0 0
      %1812 = vmatpush1.bf16.msra.mxu0 %v1809
      %1813 = vmatprep.subr.bf16.mxu0 0
      %1814 = vmatpush1.bf16.msra.mxu0 0
      %1815 = vmatprep.subr.bf16.mxu0 0
      %1816 = vmatpush1.bf16.msra.mxu0 0
      %1817 = vmatprep.subr.bf16.mxu0 0
      %1818 = vmatpush1.bf16.msra.mxu0 0
      %1819 = vmatprep.subr.bf16.mxu0 0
      %1820 = vmatpush1.bf16.msra.mxu0 0
      %1821 = vmatprep.subr.bf16.mxu0 0
      %1822 = vmatpush1.bf16.msra.mxu0 0
      %1823 = vmatprep.subr.bf16.mxu0 0
      %1824 = vmatpush1.bf16.msra.mxu0 0
      %1825 = vmatprep.subr.bf16.mxu0 0
      %1826 = vmatpush1.bf16.msra.mxu0 0
      %1827 = vmatprep.subr.bf16.mxu0 0
      %1828 = vmatpush1.bf16.msra.mxu0 0
      %1829 = vmatprep.subr.bf16.mxu0 0
      %1830 = vmatpush1.bf16.msra.mxu0 0
      %1831 = vmatprep.subr.bf16.mxu0 0
      %1832 = vmatpush1.bf16.msra.mxu0 0
      %1833 = vmatprep.subr.bf16.mxu0 0
      %1834 = vmatpush1.bf16.msra.mxu0 0
      %1835 = vmatprep.subr.bf16.mxu0 0
      %1836 = vmatpush1.bf16.msra.mxu0 0
      %1837 = vmatprep.subr.bf16.mxu0 0
      %1838 = vmatpush1.bf16.msra.mxu0 0
      %1839 = vmatprep.subr.bf16.mxu0 0
      %1840 = vmatpush1.bf16.msra.mxu0 0
      %1841 = vmatprep.subr.bf16.mxu0 0
      %1842 = vmatpush1.bf16.msra.mxu0 0
      %1843 = vmatprep.mubr.bf16.mxu0 0
      %1844 = vmatmul.mubr.bf16.gmra.mrb[0].mxu0 %v885
      %v1845 = vpop.f32.mrb[0].mxu0
      %v1846 = vadd.f32 0.0, %v1845
      %v1847 = vpop.f32.mrb[0].mxu0
      %v1848 = vpop.f32.mrb[0].mxu0
      %v1849 = vadd.f32 0.0, %v1848
      %v1850 = vpop.f32.mrb[0].mxu0
      %1851 = vdwg.mxu0
      %v1852 = vadd.f32 %v1801, %v1846
      %v1853 = vadd.f32 %v1804, %v1849
      %v1854 = vadd.f32 %v1852, %v933
      %v1855 = vadd.f32 %v1853, %v938
      %v1856 = vmax.f32 %v1854, 0.0
      %v1857 = vmax.f32 %v1855, 0.0
      %v1858 = vpack.c.bf16 %v1857, %v1856
      %1859 = vmatprep.subr.bf16.mxu0 0
      %1860 = vmatpush1.bf16.msra.mxu0 %v1809
      %1861 = vmatprep.subr.bf16.mxu0 0
      %1862 = vmatpush1.bf16.msra.mxu0 0
      %1863 = vmatprep.subr.bf16.mxu0 0
      %1864 = vmatpush1.bf16.msra.mxu0 0
      %1865 = vmatprep.subr.bf16.mxu0 0
      %1866 = vmatpush1.bf16.msra.mxu0 0
      %1867 = vmatprep.subr.bf16.mxu0 0
      %1868 = vmatpush1.bf16.msra.mxu0 0
      %1869 = vmatprep.subr.bf16.mxu0 0
      %1870 = vmatpush1.bf16.msra.mxu0 0
      %1871 = vmatprep.subr.bf16.mxu0 0
      %1872 = vmatpush1.bf16.msra.mxu0 0
      %1873 = vmatprep.subr.bf16.mxu0 0
      %1874 = vmatpush1.bf16.msra.mxu0 0
      %1875 = vmatprep.subr.bf16.mxu0 0
      %1876 = vmatpush1.bf16.msra.mxu0 0
      %1877 = vmatprep.subr.bf16.mxu0 0
      %1878 = vmatpush1.bf16.msra.mxu0 0
      %1879 = vmatprep.subr.bf16.mxu0 0
      %1880 = vmatpush1.bf16.msra.mxu0 0
      %1881 = vmatprep.subr.bf16.mxu0 0
      %1882 = vmatpush1.bf16.msra.mxu0 0
      %1883 = vmatprep.subr.bf16.mxu0 0
      %1884 = vmatpush1.bf16.msra.mxu0 0
      %1885 = vmatprep.subr.bf16.mxu0 0
      %1886 = vmatpush1.bf16.msra.mxu0 0
      %1887 = vmatprep.subr.bf16.mxu0 0
      %1888 = vmatpush1.bf16.msra.mxu0 0
      %1889 = vmatprep.subr.bf16.mxu0 0
      %1890 = vmatpush1.bf16.msra.mxu0 0
      %1891 = vmatprep.mubr.bf16.mxu0 0
      %1892 = vmatmul.mubr.bf16.gmra.mrb[0].mxu0 %v787
      %v1893 = vpop.f32.mrb[0].mxu0
      %v1894 = vadd.f32 0.0, %v1893
      %v1895 = vpop.f32.mrb[0].mxu0
      %v1896 = vpop.f32.mrb[0].mxu0
      %v1897 = vadd.f32 0.0, %v1896
      %v1898 = vpop.f32.mrb[0].mxu0
      %1899 = vdwg.mxu0
      %1900 = vmatprep.subr.bf16.mxu0 0
      %1901 = vmatpush1.bf16.msra.mxu0 %v771
      %1902 = vmatprep.subr.bf16.mxu0 0
      %1903 = vmatpush1.bf16.msra.mxu0 0
      %1904 = vmatprep.subr.bf16.mxu0 0
      %1905 = vmatpush1.bf16.msra.mxu0 0
      %1906 = vmatprep.subr.bf16.mxu0 0
      %1907 = vmatpush1.bf16.msra.mxu0 0
      %1908 = vmatprep.subr.bf16.mxu0 0
      %1909 = vmatpush1.bf16.msra.mxu0 0
      %1910 = vmatprep.subr.bf16.mxu0 0
      %1911 = vmatpush1.bf16.msra.mxu0 0
      %1912 = vmatprep.subr.bf16.mxu0 0
      %1913 = vmatpush1.bf16.msra.mxu0 0
      %1914 = vmatprep.subr.bf16.mxu0 0
      %1915 = vmatpush1.bf16.msra.mxu0 0
      %1916 = vmatprep.subr.bf16.mxu0 0
      %1917 = vmatpush1.bf16.msra.mxu0 0
      %1918 = vmatprep.subr.bf16.mxu0 0
      %1919 = vmatpush1.bf16.msra.mxu0 0
      %1920 = vmatprep.subr.bf16.mxu0 0
      %1921 = vmatpush1.bf16.msra.mxu0 0
      %1922 = vmatprep.subr.bf16.mxu0 0
      %1923 = vmatpush1.bf16.msra.mxu0 0
      %1924 = vmatprep.subr.bf16.mxu0 0
      %1925 = vmatpush1.bf16.msra.mxu0 0
      %1926 = vmatprep.subr.bf16.mxu0 0
      %1927 = vmatpush1.bf16.msra.mxu0 0
      %1928 = vmatprep.subr.bf16.mxu0 0
      %1929 = vmatpush1.bf16.msra.mxu0 0
      %1930 = vmatprep.subr.bf16.mxu0 0
      %1931 = vmatpush1.bf16.msra.mxu0 0
      %1932 = vmatprep.mubr.bf16.mxu0 0
      %1933 = vmatmul.mubr.bf16.gmra.mrb[0].mxu0 %v836
      %v1934 = vpop.f32.mrb[0].mxu0
      %v1935 = vadd.f32 %v1894, %v1934
      %v1936 = vpop.f32.mrb[0].mxu0
      %v1937 = vpop.f32.mrb[0].mxu0
      %v1938 = vadd.f32 %v1897, %v1937
      %v1939 = vpop.f32.mrb[0].mxu0
      %1940 = vdwg.mxu0
      %1942 = vrot.lane.b32.xlu0 %v456, 127
      %v1943 = vpop.permute.xlu0 %1942
      %1945 = vmatprep.subr.bf16.mxu0 0
      %1946 = vmatpush1.bf16.msra.mxu0 %v1943
      %1947 = vmatprep.subr.bf16.mxu0 0
      %1948 = vmatpush1.bf16.msra.mxu0 0
      %1949 = vmatprep.subr.bf16.mxu0 0
      %1950 = vmatpush1.bf16.msra.mxu0 0
      %1951 = vmatprep.subr.bf16.mxu0 0
      %1952 = vmatpush1.bf16.msra.mxu0 0
      %1953 = vmatprep.subr.bf16.mxu0 0
      %1954 = vmatpush1.bf16.msra.mxu0 0
      %1955 = vmatprep.subr.bf16.mxu0 0
      %1956 = vmatpush1.bf16.msra.mxu0 0
      %1957 = vmatprep.subr.bf16.mxu0 0
      %1958 = vmatpush1.bf16.msra.mxu0 0
      %1959 = vmatprep.subr.bf16.mxu0 0
      %1960 = vmatpush1.bf16.msra.mxu0 0
      %1961 = vmatprep.subr.bf16.mxu0 0
      %1962 = vmatpush1.bf16.msra.mxu0 0
      %1963 = vmatprep.subr.bf16.mxu0 0
      %1964 = vmatpush1.bf16.msra.mxu0 0
      %1965 = vmatprep.subr.bf16.mxu0 0
      %1966 = vmatpush1.bf16.msra.mxu0 0
      %1967 = vmatprep.subr.bf16.mxu0 0
      %1968 = vmatpush1.bf16.msra.mxu0 0
      %1969 = vmatprep.subr.bf16.mxu0 0
      %1970 = vmatpush1.bf16.msra.mxu0 0
      %1971 = vmatprep.subr.bf16.mxu0 0
      %1972 = vmatpush1.bf16.msra.mxu0 0
      %1973 = vmatprep.subr.bf16.mxu0 0
      %1974 = vmatpush1.bf16.msra.mxu0 0
      %1975 = vmatprep.subr.bf16.mxu0 0
      %1976 = vmatpush1.bf16.msra.mxu0 0
      %1977 = vmatprep.mubr.bf16.mxu0 0
      %1978 = vmatmul.mubr.bf16.gmra.mrb[0].mxu0 %v885
      %v1979 = vpop.f32.mrb[0].mxu0
      %v1980 = vadd.f32 0.0, %v1979
      %v1981 = vpop.f32.mrb[0].mxu0
      %v1982 = vpop.f32.mrb[0].mxu0
      %v1983 = vadd.f32 0.0, %v1982
      %v1984 = vpop.f32.mrb[0].mxu0
      %1985 = vdwg.mxu0
      %v1986 = vadd.f32 %v1935, %v1980
      %v1987 = vadd.f32 %v1938, %v1983
      %v1988 = vadd.f32 %v1986, %v933
      %v1989 = vadd.f32 %v1987, %v938
      %v1990 = vmax.f32 %v1988, 0.0
      %v1991 = vmax.f32 %v1989, 0.0
      %v1992 = vpack.c.bf16 %v1991, %v1990
      %v1993 = vld [vmem:[%s5] sm:$0xf]
      %v1994 = vld [vmem:[%s5 + $0x4] sm:$0xf]
      %v1995 = vld [vmem:[%s5 + $0x8] sm:$0xf]
      %v1996 = vld [vmem:[%s5 + $0xc] sm:$0xf]
      %v1997 = vld [vmem:[%s5 + $0x10] sm:$0xf]
      %v1998 = vld [vmem:[%s5 + $0x14] sm:$0xf]
      %v1999 = vld [vmem:[%s5 + $0x18] sm:$0xf]
      %v2000 = vld [vmem:[%s5 + $0x1c] sm:$0xf]
      %v2001 = vld [vmem:[%s5 + $0x20] sm:$0xf]
      %v2002 = vld [vmem:[%s5 + $0x24] sm:$0xf]
      %v2003 = vld [vmem:[%s5 + $0x28] sm:$0xf]
      %v2004 = vld [vmem:[%s5 + $0x2c] sm:$0xf]
      %v2005 = vld [vmem:[%s5 + $0x30] sm:$0xf]
      %v2006 = vld [vmem:[%s5 + $0x34] sm:$0xf]
      %v2007 = vld [vmem:[%s5 + $0x38] sm:$0xf]
      %v2008 = vld [vmem:[%s5 + $0x3c] sm:$0xf]
      %v2009 = vld [vmem:[%s5 + $0x40] sm:$0xf]
      %v2010 = vld [vmem:[%s5 + $0x44] sm:$0xf]
      %v2011 = vld [vmem:[%s5 + $0x48] sm:$0xf]
      %v2012 = vld [vmem:[%s5 + $0x4c] sm:$0xf]
      %v2013 = vld [vmem:[%s5 + $0x50] sm:$0xf]
      %v2014 = vld [vmem:[%s5 + $0x54] sm:$0xf]
      %v2015 = vld [vmem:[%s5 + $0x58] sm:$0xf]
      %v2016 = vld [vmem:[%s5 + $0x5c] sm:$0xf]
      %v2017 = vld [vmem:[%s6] sm:$0xff]
      %v2018 = vld [vmem:[%s6 + $0x8] sm:$0xff]
      %v2019 = vld [vmem:[%s6 + $0x10] sm:$0xff]
      %v2020 = vld [vmem:[%s6 + $0x18] sm:$0xff]
      %v2021 = vld [vmem:[%s6 + $0x20] sm:$0xff]
      %v2022 = vld [vmem:[%s6 + $0x28] sm:$0xff]
      %v2023 = vld [vmem:[%s6 + $0x30] sm:$0xff]
      %v2024 = vld [vmem:[%s6 + $0x38] sm:$0xff]
      %v2033 = vunpack.c.l.b16 %v2001
      %v2034 = vunpack.c.l.b16 %v2002
      %v2035 = vunpack.c.l.b16 %v2003
      %v2036 = vunpack.c.l.b16 %v2004
      %v2037 = vunpack.c.l.b16 %v2005
      %v2038 = vunpack.c.l.b16 %v2006
      %v2039 = vunpack.c.l.b16 %v2007
      %v2040 = vunpack.c.l.b16 %v2008
      %v2041 = vpack.c.b16 %v2034, %v2033
      %v2042 = vpack.c.b16 %v2036, %v2035
      %v2043 = vpack.c.b16 %v2038, %v2037
      %v2044 = vpack.c.b16 %v2040, %v2039
      %v2046 = vsel %vm785, %v2041, 0
      %v2049 = vsel %vm785, %v2042, 0
      %v2052 = vsel %vm785, %v2043, 0
      %v2055 = vsel %vm785, %v2044, 0
      %2057 = vmatprep.subr.bf16.mxu0 0
      %2058 = vmatpush1.bf16.msra.mxu0 %v1074
      %2059 = vmatprep.subr.bf16.mxu0 0
      %2060 = vmatpush1.bf16.msra.mxu0 0
      %2061 = vmatprep.subr.bf16.mxu0 0
      %2062 = vmatpush1.bf16.msra.mxu0 0
      %2063 = vmatprep.subr.bf16.mxu0 0
      %2064 = vmatpush1.bf16.msra.mxu0 0
      %2065 = vmatprep.subr.bf16.mxu0 0
      %2066 = vmatpush1.bf16.msra.mxu0 0
      %2067 = vmatprep.subr.bf16.mxu0 0
      %2068 = vmatpush1.bf16.msra.mxu0 0
      %2069 = vmatprep.subr.bf16.mxu0 0
      %2070 = vmatpush1.bf16.msra.mxu0 0
      %2071 = vmatprep.subr.bf16.mxu0 0
      %2072 = vmatpush1.bf16.msra.mxu0 0
      %2073 = vmatprep.subr.bf16.mxu0 0
      %2074 = vmatpush1.bf16.msra.mxu0 0
      %2075 = vmatprep.subr.bf16.mxu0 0
      %2076 = vmatpush1.bf16.msra.mxu0 0
      %2077 = vmatprep.subr.bf16.mxu0 0
      %2078 = vmatpush1.bf16.msra.mxu0 0
      %2079 = vmatprep.subr.bf16.mxu0 0
      %2080 = vmatpush1.bf16.msra.mxu0 0
      %2081 = vmatprep.subr.bf16.mxu0 0
      %2082 = vmatpush1.bf16.msra.mxu0 0
      %2083 = vmatprep.subr.bf16.mxu0 0
      %2084 = vmatpush1.bf16.msra.mxu0 0
      %2085 = vmatprep.subr.bf16.mxu0 0
      %2086 = vmatpush1.bf16.msra.mxu0 0
      %2087 = vmatprep.subr.bf16.mxu0 0
      %2088 = vmatpush1.bf16.msra.mxu0 0
      %2089 = vmatprep.mubr.bf16.mxu0 0
      %2090 = vmatmul.mubr.bf16.gmra.mrb[0].mxu0 %v2046
      %v2091 = vpop.f32.mrb[0].mxu0
      %v2092 = vadd.f32 0.0, %v2091
      %v2093 = vpop.f32.mrb[0].mxu0
      %v2094 = vpop.f32.mrb[0].mxu0
      %v2095 = vadd.f32 0.0, %v2094
      %v2096 = vpop.f32.mrb[0].mxu0
      %2097 = vmatprep.mubr.bf16.mxu0 0
      %2098 = vmatmul.mubr.bf16.gmra.mrb[0].mxu0 %v2049
      %v2099 = vpop.f32.mrb[0].mxu0
      %v2100 = vadd.f32 0.0, %v2099
      %v2101 = vpop.f32.mrb[0].mxu0
      %v2102 = vpop.f32.mrb[0].mxu0
      %v2103 = vadd.f32 0.0, %v2102
      %v2104 = vpop.f32.mrb[0].mxu0
      %2105 = vmatprep.mubr.bf16.mxu0 0
      %2106 = vmatmul.mubr.bf16.gmra.mrb[0].mxu0 %v2052
      %v2107 = vpop.f32.mrb[0].mxu0
      %v2108 = vadd.f32 0.0, %v2107
      %v2109 = vpop.f32.mrb[0].mxu0
      %v2110 = vpop.f32.mrb[0].mxu0
      %v2111 = vadd.f32 0.0, %v2110
      %v2112 = vpop.f32.mrb[0].mxu0
      %2113 = vmatprep.mubr.bf16.mxu0 0
      %2114 = vmatmul.mubr.bf16.gmra.mrb[0].mxu0 %v2055
      %v2115 = vpop.f32.mrb[0].mxu0
      %v2116 = vadd.f32 0.0, %v2115
      %v2117 = vpop.f32.mrb[0].mxu0
      %v2118 = vpop.f32.mrb[0].mxu0
      %v2119 = vadd.f32 0.0, %v2118
      %v2120 = vpop.f32.mrb[0].mxu0
      %2121 = vdwg.mxu0
      %v2130 = vunpack.c.l.b16 %v1993
      %v2131 = vunpack.c.l.b16 %v1994
      %v2132 = vunpack.c.l.b16 %v1995
      %v2133 = vunpack.c.l.b16 %v1996
      %v2134 = vunpack.c.l.b16 %v1997
      %v2135 = vunpack.c.l.b16 %v1998
      %v2136 = vunpack.c.l.b16 %v1999
      %v2137 = vunpack.c.l.b16 %v2000
      %v2138 = vpack.c.b16 %v2131, %v2130
      %v2139 = vpack.c.b16 %v2133, %v2132
      %v2140 = vpack.c.b16 %v2135, %v2134
      %v2141 = vpack.c.b16 %v2137, %v2136
      %v2143 = vsel %vm785, %v2138, 0
      %v2146 = vsel %vm785, %v2139, 0
      %v2149 = vsel %vm785, %v2140, 0
      %v2152 = vsel %vm785, %v2141, 0
      %2154 = vmatprep.subr.bf16.mxu0 0
      %2155 = vmatpush1.bf16.msra.mxu0 %v944
      %2156 = vmatprep.subr.bf16.mxu0 0
      %2157 = vmatpush1.bf16.msra.mxu0 0
      %2158 = vmatprep.subr.bf16.mxu0 0
      %2159 = vmatpush1.bf16.msra.mxu0 0
      %2160 = vmatprep.subr.bf16.mxu0 0
      %2161 = vmatpush1.bf16.msra.mxu0 0
      %2162 = vmatprep.subr.bf16.mxu0 0
      %2163 = vmatpush1.bf16.msra.mxu0 0
      %2164 = vmatprep.subr.bf16.mxu0 0
      %2165 = vmatpush1.bf16.msra.mxu0 0
      %2166 = vmatprep.subr.bf16.mxu0 0
      %2167 = vmatpush1.bf16.msra.mxu0 0
      %2168 = vmatprep.subr.bf16.mxu0 0
      %2169 = vmatpush1.bf16.msra.mxu0 0
      %2170 = vmatprep.subr.bf16.mxu0 0
      %2171 = vmatpush1.bf16.msra.mxu0 0
      %2172 = vmatprep.subr.bf16.mxu0 0
      %2173 = vmatpush1.bf16.msra.mxu0 0
      %2174 = vmatprep.subr.bf16.mxu0 0
      %2175 = vmatpush1.bf16.msra.mxu0 0
      %2176 = vmatprep.subr.bf16.mxu0 0
      %2177 = vmatpush1.bf16.msra.mxu0 0
      %2178 = vmatprep.subr.bf16.mxu0 0
      %2179 = vmatpush1.bf16.msra.mxu0 0
      %2180 = vmatprep.subr.bf16.mxu0 0
      %2181 = vmatpush1.bf16.msra.mxu0 0
      %2182 = vmatprep.subr.bf16.mxu0 0
      %2183 = vmatpush1.bf16.msra.mxu0 0
      %2184 = vmatprep.subr.bf16.mxu0 0
      %2185 = vmatpush1.bf16.msra.mxu0 0
      %2186 = vmatprep.mubr.bf16.mxu0 0
      %2187 = vmatmul.mubr.bf16.gmra.mrb[0].mxu0 %v2143
      %v2188 = vpop.f32.mrb[0].mxu0
      %v2189 = vadd.f32 %v2092, %v2188
      %v2190 = vpop.f32.mrb[0].mxu0
      %v2191 = vpop.f32.mrb[0].mxu0
      %v2192 = vadd.f32 %v2095, %v2191
      %v2193 = vpop.f32.mrb[0].mxu0
      %2194 = vmatprep.mubr.bf16.mxu0 0
      %2195 = vmatmul.mubr.bf16.gmra.mrb[0].mxu0 %v2146
      %v2196 = vpop.f32.mrb[0].mxu0
      %v2197 = vadd.f32 %v2100, %v2196
      %v2198 = vpop.f32.mrb[0].mxu0
      %v2199 = vpop.f32.mrb[0].mxu0
      %v2200 = vadd.f32 %v2103, %v2199
      %v2201 = vpop.f32.mrb[0].mxu0
      %2202 = vmatprep.mubr.bf16.mxu0 0
      %2203 = vmatmul.mubr.bf16.gmra.mrb[0].mxu0 %v2149
      %v2204 = vpop.f32.mrb[0].mxu0
      %v2205 = vadd.f32 %v2108, %v2204
      %v2206 = vpop.f32.mrb[0].mxu0
      %v2207 = vpop.f32.mrb[0].mxu0
      %v2208 = vadd.f32 %v2111, %v2207
      %v2209 = vpop.f32.mrb[0].mxu0
      %2210 = vmatprep.mubr.bf16.mxu0 0
      %2211 = vmatmul.mubr.bf16.gmra.mrb[0].mxu0 %v2152
      %v2212 = vpop.f32.mrb[0].mxu0
      %v2213 = vadd.f32 %v2116, %v2212
      %v2214 = vpop.f32.mrb[0].mxu0
      %v2215 = vpop.f32.mrb[0].mxu0
      %v2216 = vadd.f32 %v2119, %v2215
      %v2217 = vpop.f32.mrb[0].mxu0
      %2218 = vdwg.mxu0
      %v2227 = vunpack.c.l.b16 %v2009
      %v2228 = vunpack.c.l.b16 %v2010
      %v2229 = vunpack.c.l.b16 %v2011
      %v2230 = vunpack.c.l.b16 %v2012
      %v2231 = vunpack.c.l.b16 %v2013
      %v2232 = vunpack.c.l.b16 %v2014
      %v2233 = vunpack.c.l.b16 %v2015
      %v2234 = vunpack.c.l.b16 %v2016
      %v2235 = vpack.c.b16 %v2228, %v2227
      %v2236 = vpack.c.b16 %v2230, %v2229
      %v2237 = vpack.c.b16 %v2232, %v2231
      %v2238 = vpack.c.b16 %v2234, %v2233
      %v2240 = vsel %vm785, %v2235, 0
      %v2243 = vsel %vm785, %v2236, 0
      %v2246 = vsel %vm785, %v2237, 0
      %v2249 = vsel %vm785, %v2238, 0
      %2251 = vmatprep.subr.bf16.mxu0 0
      %2252 = vmatpush1.bf16.msra.mxu0 %v1204
      %2253 = vmatprep.subr.bf16.mxu0 0
      %2254 = vmatpush1.bf16.msra.mxu0 0
      %2255 = vmatprep.subr.bf16.mxu0 0
      %2256 = vmatpush1.bf16.msra.mxu0 0
      %2257 = vmatprep.subr.bf16.mxu0 0
      %2258 = vmatpush1.bf16.msra.mxu0 0
      %2259 = vmatprep.subr.bf16.mxu0 0
      %2260 = vmatpush1.bf16.msra.mxu0 0
      %2261 = vmatprep.subr.bf16.mxu0 0
      %2262 = vmatpush1.bf16.msra.mxu0 0
      %2263 = vmatprep.subr.bf16.mxu0 0
      %2264 = vmatpush1.bf16.msra.mxu0 0
      %2265 = vmatprep.subr.bf16.mxu0 0
      %2266 = vmatpush1.bf16.msra.mxu0 0
      %2267 = vmatprep.subr.bf16.mxu0 0
      %2268 = vmatpush1.bf16.msra.mxu0 0
      %2269 = vmatprep.subr.bf16.mxu0 0
      %2270 = vmatpush1.bf16.msra.mxu0 0
      %2271 = vmatprep.subr.bf16.mxu0 0
      %2272 = vmatpush1.bf16.msra.mxu0 0
      %2273 = vmatprep.subr.bf16.mxu0 0
      %2274 = vmatpush1.bf16.msra.mxu0 0
      %2275 = vmatprep.subr.bf16.mxu0 0
      %2276 = vmatpush1.bf16.msra.mxu0 0
      %2277 = vmatprep.subr.bf16.mxu0 0
      %2278 = vmatpush1.bf16.msra.mxu0 0
      %2279 = vmatprep.subr.bf16.mxu0 0
      %2280 = vmatpush1.bf16.msra.mxu0 0
      %2281 = vmatprep.subr.bf16.mxu0 0
      %2282 = vmatpush1.bf16.msra.mxu0 0
      %2283 = vmatprep.mubr.bf16.mxu0 0
      %2284 = vmatmul.mubr.bf16.gmra.mrb[0].mxu0 %v2240
      %v2285 = vpop.f32.mrb[0].mxu0
      %v2286 = vadd.f32 0.0, %v2285
      %v2287 = vpop.f32.mrb[0].mxu0
      %v2288 = vpop.f32.mrb[0].mxu0
      %v2289 = vadd.f32 0.0, %v2288
      %v2290 = vpop.f32.mrb[0].mxu0
      %2291 = vmatprep.mubr.bf16.mxu0 0
      %2292 = vmatmul.mubr.bf16.gmra.mrb[0].mxu0 %v2243
      %v2293 = vpop.f32.mrb[0].mxu0
      %v2294 = vadd.f32 0.0, %v2293
      %v2295 = vpop.f32.mrb[0].mxu0
      %v2296 = vpop.f32.mrb[0].mxu0
      %v2297 = vadd.f32 0.0, %v2296
      %v2298 = vpop.f32.mrb[0].mxu0
      %2299 = vmatprep.mubr.bf16.mxu0 0
      %2300 = vmatmul.mubr.bf16.gmra.mrb[0].mxu0 %v2246
      %v2301 = vpop.f32.mrb[0].mxu0
      %v2302 = vadd.f32 0.0, %v2301
      %v2303 = vpop.f32.mrb[0].mxu0
      %v2304 = vpop.f32.mrb[0].mxu0
      %v2305 = vadd.f32 0.0, %v2304
      %v2306 = vpop.f32.mrb[0].mxu0
      %2307 = vmatprep.mubr.bf16.mxu0 0
      %2308 = vmatmul.mubr.bf16.gmra.mrb[0].mxu0 %v2249
      %v2309 = vpop.f32.mrb[0].mxu0
      %v2310 = vadd.f32 0.0, %v2309
      %v2311 = vpop.f32.mrb[0].mxu0
      %v2312 = vpop.f32.mrb[0].mxu0
      %v2313 = vadd.f32 0.0, %v2312
      %v2314 = vpop.f32.mrb[0].mxu0
      %2315 = vdwg.mxu0
      %v2316 = vadd.f32 %v2189, %v2286
      %v2317 = vadd.f32 %v2192, %v2289
      %v2318 = vadd.f32 %v2197, %v2294
      %v2319 = vadd.f32 %v2200, %v2297
      %v2320 = vadd.f32 %v2205, %v2302
      %v2321 = vadd.f32 %v2208, %v2305
      %v2322 = vadd.f32 %v2213, %v2310
      %v2323 = vadd.f32 %v2216, %v2313
      %2325 = vset.pattern.permute.xlu0 0
      %2326 = vperm.xlu0 %2325, %v2017
      %v2327 = vpop.permute.xlu0 %2326
      %2330 = vset.pattern.permute.xlu0 0
      %2331 = vperm.xlu0 %2330, %v2018
      %v2332 = vpop.permute.xlu0 %2331
      %2335 = vset.pattern.permute.xlu0 0
      %2336 = vperm.xlu0 %2335, %v2019
      %v2337 = vpop.permute.xlu0 %2336
      %2340 = vset.pattern.permute.xlu0 0
      %2341 = vperm.xlu0 %2340, %v2020
      %v2342 = vpop.permute.xlu0 %2341
      %2345 = vset.pattern.permute.xlu0 0
      %2346 = vperm.xlu0 %2345, %v2021
      %v2347 = vpop.permute.xlu0 %2346
      %2350 = vset.pattern.permute.xlu0 0
      %2351 = vperm.xlu0 %2350, %v2022
      %v2352 = vpop.permute.xlu0 %2351
      %2355 = vset.pattern.permute.xlu0 0
      %2356 = vperm.xlu0 %2355, %v2023
      %v2357 = vpop.permute.xlu0 %2356
      %2360 = vset.pattern.permute.xlu0 0
      %2361 = vperm.xlu0 %2360, %v2024
      %v2362 = vpop.permute.xlu0 %2361
      %v2364 = vadd.f32 %v2316, %v2327
      %v2365 = vadd.f32 %v2317, %v2332
      %v2366 = vadd.f32 %v2318, %v2337
      %v2367 = vadd.f32 %v2319, %v2342
      %v2368 = vadd.f32 %v2320, %v2347
      %v2369 = vadd.f32 %v2321, %v2352
      %v2370 = vadd.f32 %v2322, %v2357
      %v2371 = vadd.f32 %v2323, %v2362
      %v2372 = vpack.c.bf16 %v2365, %v2364
      %v2373 = vpack.c.bf16 %v2367, %v2366
      %v2374 = vpack.c.bf16 %v2369, %v2368
      %v2375 = vpack.c.bf16 %v2371, %v2370
      %2376 = vmatprep.subr.bf16.mxu0 0
      %2377 = vmatpush1.bf16.msra.mxu0 %v1464
      %2378 = vmatprep.subr.bf16.mxu0 0
      %2379 = vmatpush1.bf16.msra.mxu0 0
      %2380 = vmatprep.subr.bf16.mxu0 0
      %2381 = vmatpush1.bf16.msra.mxu0 0
      %2382 = vmatprep.subr.bf16.mxu0 0
      %2383 = vmatpush1.bf16.msra.mxu0 0
      %2384 = vmatprep.subr.bf16.mxu0 0
      %2385 = vmatpush1.bf16.msra.mxu0 0
      %2386 = vmatprep.subr.bf16.mxu0 0
      %2387 = vmatpush1.bf16.msra.mxu0 0
      %2388 = vmatprep.subr.bf16.mxu0 0
      %2389 = vmatpush1.bf16.msra.mxu0 0
      %2390 = vmatprep.subr.bf16.mxu0 0
      %2391 = vmatpush1.bf16.msra.mxu0 0
      %2392 = vmatprep.subr.bf16.mxu0 0
      %2393 = vmatpush1.bf16.msra.mxu0 0
      %2394 = vmatprep.subr.bf16.mxu0 0
      %2395 = vmatpush1.bf16.msra.mxu0 0
      %2396 = vmatprep.subr.bf16.mxu0 0
      %2397 = vmatpush1.bf16.msra.mxu0 0
      %2398 = vmatprep.subr.bf16.mxu0 0
      %2399 = vmatpush1.bf16.msra.mxu0 0
      %2400 = vmatprep.subr.bf16.mxu0 0
      %2401 = vmatpush1.bf16.msra.mxu0 0
      %2402 = vmatprep.subr.bf16.mxu0 0
      %2403 = vmatpush1.bf16.msra.mxu0 0
      %2404 = vmatprep.subr.bf16.mxu0 0
      %2405 = vmatpush1.bf16.msra.mxu0 0
      %2406 = vmatprep.subr.bf16.mxu0 0
      %2407 = vmatpush1.bf16.msra.mxu0 0
      %2408 = vmatprep.mubr.bf16.mxu0 0
      %2409 = vmatmul.mubr.bf16.gmra.mrb[0].mxu0 %v2046
      %v2410 = vpop.f32.mrb[0].mxu0
      %v2411 = vadd.f32 0.0, %v2410
      %v2412 = vpop.f32.mrb[0].mxu0
      %v2413 = vpop.f32.mrb[0].mxu0
      %v2414 = vadd.f32 0.0, %v2413
      %v2415 = vpop.f32.mrb[0].mxu0
      %2416 = vmatprep.mubr.bf16.mxu0 0
      %2417 = vmatmul.mubr.bf16.gmra.mrb[0].mxu0 %v2049
      %v2418 = vpop.f32.mrb[0].mxu0
      %v2419 = vadd.f32 0.0, %v2418
      %v2420 = vpop.f32.mrb[0].mxu0
      %v2421 = vpop.f32.mrb[0].mxu0
      %v2422 = vadd.f32 0.0, %v2421
      %v2423 = vpop.f32.mrb[0].mxu0
      %2424 = vmatprep.mubr.bf16.mxu0 0
      %2425 = vmatmul.mubr.bf16.gmra.mrb[0].mxu0 %v2052
      %v2426 = vpop.f32.mrb[0].mxu0
      %v2427 = vadd.f32 0.0, %v2426
      %v2428 = vpop.f32.mrb[0].mxu0
      %v2429 = vpop.f32.mrb[0].mxu0
      %v2430 = vadd.f32 0.0, %v2429
      %v2431 = vpop.f32.mrb[0].mxu0
      %2432 = vmatprep.mubr.bf16.mxu0 0
      %2433 = vmatmul.mubr.bf16.gmra.mrb[0].mxu0 %v2055
      %v2434 = vpop.f32.mrb[0].mxu0
      %v2435 = vadd.f32 0.0, %v2434
      %v2436 = vpop.f32.mrb[0].mxu0
      %v2437 = vpop.f32.mrb[0].mxu0
      %v2438 = vadd.f32 0.0, %v2437
      %v2439 = vpop.f32.mrb[0].mxu0
      %2440 = vdwg.mxu0
      %2441 = vmatprep.subr.bf16.mxu0 0
      %2442 = vmatpush1.bf16.msra.mxu0 %v1334
      %2443 = vmatprep.subr.bf16.mxu0 0
      %2444 = vmatpush1.bf16.msra.mxu0 0
      %2445 = vmatprep.subr.bf16.mxu0 0
      %2446 = vmatpush1.bf16.msra.mxu0 0
      %2447 = vmatprep.subr.bf16.mxu0 0
      %2448 = vmatpush1.bf16.msra.mxu0 0
      %2449 = vmatprep.subr.bf16.mxu0 0
      %2450 = vmatpush1.bf16.msra.mxu0 0
      %2451 = vmatprep.subr.bf16.mxu0 0
      %2452 = vmatpush1.bf16.msra.mxu0 0
      %2453 = vmatprep.subr.bf16.mxu0 0
      %2454 = vmatpush1.bf16.msra.mxu0 0
      %2455 = vmatprep.subr.bf16.mxu0 0
      %2456 = vmatpush1.bf16.msra.mxu0 0
      %2457 = vmatprep.subr.bf16.mxu0 0
      %2458 = vmatpush1.bf16.msra.mxu0 0
      %2459 = vmatprep.subr.bf16.mxu0 0
      %2460 = vmatpush1.bf16.msra.mxu0 0
      %2461 = vmatprep.subr.bf16.mxu0 0
      %2462 = vmatpush1.bf16.msra.mxu0 0
      %2463 = vmatprep.subr.bf16.mxu0 0
      %2464 = vmatpush1.bf16.msra.mxu0 0
      %2465 = vmatprep.subr.bf16.mxu0 0
      %2466 = vmatpush1.bf16.msra.mxu0 0
      %2467 = vmatprep.subr.bf16.mxu0 0
      %2468 = vmatpush1.bf16.msra.mxu0 0
      %2469 = vmatprep.subr.bf16.mxu0 0
      %2470 = vmatpush1.bf16.msra.mxu0 0
      %2471 = vmatprep.subr.bf16.mxu0 0
      %2472 = vmatpush1.bf16.msra.mxu0 0
      %2473 = vmatprep.mubr.bf16.mxu0 0
      %2474 = vmatmul.mubr.bf16.gmra.mrb[0].mxu0 %v2143
      %v2475 = vpop.f32.mrb[0].mxu0
      %v2476 = vadd.f32 %v2411, %v2475
      %v2477 = vpop.f32.mrb[0].mxu0
      %v2478 = vpop.f32.mrb[0].mxu0
      %v2479 = vadd.f32 %v2414, %v2478
      %v2480 = vpop.f32.mrb[0].mxu0
      %2481 = vmatprep.mubr.bf16.mxu0 0
      %2482 = vmatmul.mubr.bf16.gmra.mrb[0].mxu0 %v2146
      %v2483 = vpop.f32.mrb[0].mxu0
      %v2484 = vadd.f32 %v2419, %v2483
      %v2485 = vpop.f32.mrb[0].mxu0
      %v2486 = vpop.f32.mrb[0].mxu0
      %v2487 = vadd.f32 %v2422, %v2486
      %v2488 = vpop.f32.mrb[0].mxu0
      %2489 = vmatprep.mubr.bf16.mxu0 0
      %2490 = vmatmul.mubr.bf16.gmra.mrb[0].mxu0 %v2149
      %v2491 = vpop.f32.mrb[0].mxu0
      %v2492 = vadd.f32 %v2427, %v2491
      %v2493 = vpop.f32.mrb[0].mxu0
      %v2494 = vpop.f32.mrb[0].mxu0
      %v2495 = vadd.f32 %v2430, %v2494
      %v2496 = vpop.f32.mrb[0].mxu0
      %2497 = vmatprep.mubr.bf16.mxu0 0
      %2498 = vmatmul.mubr.bf16.gmra.mrb[0].mxu0 %v2152
      %v2499 = vpop.f32.mrb[0].mxu0
      %v2500 = vadd.f32 %v2435, %v2499
      %v2501 = vpop.f32.mrb[0].mxu0
      %v2502 = vpop.f32.mrb[0].mxu0
      %v2503 = vadd.f32 %v2438, %v2502
      %v2504 = vpop.f32.mrb[0].mxu0
      %2505 = vdwg.mxu0
      %2506 = vmatprep.subr.bf16.mxu0 0
      %2507 = vmatpush1.bf16.msra.mxu0 %v1594
      %2508 = vmatprep.subr.bf16.mxu0 0
      %2509 = vmatpush1.bf16.msra.mxu0 0
      %2510 = vmatprep.subr.bf16.mxu0 0
      %2511 = vmatpush1.bf16.msra.mxu0 0
      %2512 = vmatprep.subr.bf16.mxu0 0
      %2513 = vmatpush1.bf16.msra.mxu0 0
      %2514 = vmatprep.subr.bf16.mxu0 0
      %2515 = vmatpush1.bf16.msra.mxu0 0
      %2516 = vmatprep.subr.bf16.mxu0 0
      %2517 = vmatpush1.bf16.msra.mxu0 0
      %2518 = vmatprep.subr.bf16.mxu0 0
      %2519 = vmatpush1.bf16.msra.mxu0 0
      %2520 = vmatprep.subr.bf16.mxu0 0
      %2521 = vmatpush1.bf16.msra.mxu0 0
      %2522 = vmatprep.subr.bf16.mxu0 0
      %2523 = vmatpush1.bf16.msra.mxu0 0
      %2524 = vmatprep.subr.bf16.mxu0 0
      %2525 = vmatpush1.bf16.msra.mxu0 0
      %2526 = vmatprep.subr.bf16.mxu0 0
      %2527 = vmatpush1.bf16.msra.mxu0 0
      %2528 = vmatprep.subr.bf16.mxu0 0
      %2529 = vmatpush1.bf16.msra.mxu0 0
      %2530 = vmatprep.subr.bf16.mxu0 0
      %2531 = vmatpush1.bf16.msra.mxu0 0
      %2532 = vmatprep.subr.bf16.mxu0 0
      %2533 = vmatpush1.bf16.msra.mxu0 0
      %2534 = vmatprep.subr.bf16.mxu0 0
      %2535 = vmatpush1.bf16.msra.mxu0 0
      %2536 = vmatprep.subr.bf16.mxu0 0
      %2537 = vmatpush1.bf16.msra.mxu0 0
      %2538 = vmatprep.mubr.bf16.mxu0 0
      %2539 = vmatmul.mubr.bf16.gmra.mrb[0].mxu0 %v2240
      %v2540 = vpop.f32.mrb[0].mxu0
      %v2541 = vadd.f32 0.0, %v2540
      %v2542 = vpop.f32.mrb[0].mxu0
      %v2543 = vpop.f32.mrb[0].mxu0
      %v2544 = vadd.f32 0.0, %v2543
      %v2545 = vpop.f32.mrb[0].mxu0
      %2546 = vmatprep.mubr.bf16.mxu0 0
      %2547 = vmatmul.mubr.bf16.gmra.mrb[0].mxu0 %v2243
      %v2548 = vpop.f32.mrb[0].mxu0
      %v2549 = vadd.f32 0.0, %v2548
      %v2550 = vpop.f32.mrb[0].mxu0
      %v2551 = vpop.f32.mrb[0].mxu0
      %v2552 = vadd.f32 0.0, %v2551
      %v2553 = vpop.f32.mrb[0].mxu0
      %2554 = vmatprep.mubr.bf16.mxu0 0
      %2555 = vmatmul.mubr.bf16.gmra.mrb[0].mxu0 %v2246
      %v2556 = vpop.f32.mrb[0].mxu0
      %v2557 = vadd.f32 0.0, %v2556
      %v2558 = vpop.f32.mrb[0].mxu0
      %v2559 = vpop.f32.mrb[0].mxu0
      %v2560 = vadd.f32 0.0, %v2559
      %v2561 = vpop.f32.mrb[0].mxu0
      %2562 = vmatprep.mubr.bf16.mxu0 0
      %2563 = vmatmul.mubr.bf16.gmra.mrb[0].mxu0 %v2249
      %v2564 = vpop.f32.mrb[0].mxu0
      %v2565 = vadd.f32 0.0, %v2564
      %v2566 = vpop.f32.mrb[0].mxu0
      %v2567 = vpop.f32.mrb[0].mxu0
      %v2568 = vadd.f32 0.0, %v2567
      %v2569 = vpop.f32.mrb[0].mxu0
      %2570 = vdwg.mxu0
      %v2571 = vadd.f32 %v2476, %v2541
      %v2572 = vadd.f32 %v2479, %v2544
      %v2573 = vadd.f32 %v2484, %v2549
      %v2574 = vadd.f32 %v2487, %v2552
      %v2575 = vadd.f32 %v2492, %v2557
      %v2576 = vadd.f32 %v2495, %v2560
      %v2577 = vadd.f32 %v2500, %v2565
      %v2578 = vadd.f32 %v2503, %v2568
      %v2579 = vadd.f32 %v2571, %v2327
      %v2580 = vadd.f32 %v2572, %v2332
      %v2581 = vadd.f32 %v2573, %v2337
      %v2582 = vadd.f32 %v2574, %v2342
      %v2583 = vadd.f32 %v2575, %v2347
      %v2584 = vadd.f32 %v2576, %v2352
      %v2585 = vadd.f32 %v2577, %v2357
      %v2586 = vadd.f32 %v2578, %v2362
      %v2587 = vpack.c.bf16 %v2580, %v2579
      %v2588 = vpack.c.bf16 %v2582, %v2581
      %v2589 = vpack.c.bf16 %v2584, %v2583
      %v2590 = vpack.c.bf16 %v2586, %v2585
      %2591 = vmatprep.subr.bf16.mxu0 0
      %2592 = vmatpush1.bf16.msra.mxu0 %v1858
      %2593 = vmatprep.subr.bf16.mxu0 0
      %2594 = vmatpush1.bf16.msra.mxu0 0
      %2595 = vmatprep.subr.bf16.mxu0 0
      %2596 = vmatpush1.bf16.msra.mxu0 0
      %2597 = vmatprep.subr.bf16.mxu0 0
      %2598 = vmatpush1.bf16.msra.mxu0 0
      %2599 = vmatprep.subr.bf16.mxu0 0
      %2600 = vmatpush1.bf16.msra.mxu0 0
      %2601 = vmatprep.subr.bf16.mxu0 0
      %2602 = vmatpush1.bf16.msra.mxu0 0
      %2603 = vmatprep.subr.bf16.mxu0 0
      %2604 = vmatpush1.bf16.msra.mxu0 0
      %2605 = vmatprep.subr.bf16.mxu0 0
      %2606 = vmatpush1.bf16.msra.mxu0 0
      %2607 = vmatprep.subr.bf16.mxu0 0
      %2608 = vmatpush1.bf16.msra.mxu0 0
      %2609 = vmatprep.subr.bf16.mxu0 0
      %2610 = vmatpush1.bf16.msra.mxu0 0
      %2611 = vmatprep.subr.bf16.mxu0 0
      %2612 = vmatpush1.bf16.msra.mxu0 0
      %2613 = vmatprep.subr.bf16.mxu0 0
      %2614 = vmatpush1.bf16.msra.mxu0 0
      %2615 = vmatprep.subr.bf16.mxu0 0
      %2616 = vmatpush1.bf16.msra.mxu0 0
      %2617 = vmatprep.subr.bf16.mxu0 0
      %2618 = vmatpush1.bf16.msra.mxu0 0
      %2619 = vmatprep.subr.bf16.mxu0 0
      %2620 = vmatpush1.bf16.msra.mxu0 0
      %2621 = vmatprep.subr.bf16.mxu0 0
      %2622 = vmatpush1.bf16.msra.mxu0 0
      %2623 = vmatprep.mubr.bf16.mxu0 0
      %2624 = vmatmul.mubr.bf16.gmra.mrb[0].mxu0 %v2046
      %v2625 = vpop.f32.mrb[0].mxu0
      %v2626 = vadd.f32 0.0, %v2625
      %v2627 = vpop.f32.mrb[0].mxu0
      %v2628 = vpop.f32.mrb[0].mxu0
      %v2629 = vadd.f32 0.0, %v2628
      %v2630 = vpop.f32.mrb[0].mxu0
      %2631 = vmatprep.mubr.bf16.mxu0 0
      %2632 = vmatmul.mubr.bf16.gmra.mrb[0].mxu0 %v2049
      %v2633 = vpop.f32.mrb[0].mxu0
      %v2634 = vadd.f32 0.0, %v2633
      %v2635 = vpop.f32.mrb[0].mxu0
      %v2636 = vpop.f32.mrb[0].mxu0
      %v2637 = vadd.f32 0.0, %v2636
      %v2638 = vpop.f32.mrb[0].mxu0
      %2639 = vmatprep.mubr.bf16.mxu0 0
      %2640 = vmatmul.mubr.bf16.gmra.mrb[0].mxu0 %v2052
      %v2641 = vpop.f32.mrb[0].mxu0
      %v2642 = vadd.f32 0.0, %v2641
      %v2643 = vpop.f32.mrb[0].mxu0
      %v2644 = vpop.f32.mrb[0].mxu0
      %v2645 = vadd.f32 0.0, %v2644
      %v2646 = vpop.f32.mrb[0].mxu0
      %2647 = vmatprep.mubr.bf16.mxu0 0
      %2648 = vmatmul.mubr.bf16.gmra.mrb[0].mxu0 %v2055
      %v2649 = vpop.f32.mrb[0].mxu0
      %v2650 = vadd.f32 0.0, %v2649
      %v2651 = vpop.f32.mrb[0].mxu0
      %v2652 = vpop.f32.mrb[0].mxu0
      %v2653 = vadd.f32 0.0, %v2652
      %v2654 = vpop.f32.mrb[0].mxu0
      %2655 = vdwg.mxu0
      %2656 = vmatprep.subr.bf16.mxu0 0
      %2657 = vmatpush1.bf16.msra.mxu0 %v1724
      %2658 = vmatprep.subr.bf16.mxu0 0
      %2659 = vmatpush1.bf16.msra.mxu0 0
      %2660 = vmatprep.subr.bf16.mxu0 0
      %2661 = vmatpush1.bf16.msra.mxu0 0
      %2662 = vmatprep.subr.bf16.mxu0 0
      %2663 = vmatpush1.bf16.msra.mxu0 0
      %2664 = vmatprep.subr.bf16.mxu0 0
      %2665 = vmatpush1.bf16.msra.mxu0 0
      %2666 = vmatprep.subr.bf16.mxu0 0
      %2667 = vmatpush1.bf16.msra.mxu0 0
      %2668 = vmatprep.subr.bf16.mxu0 0
      %2669 = vmatpush1.bf16.msra.mxu0 0
      %2670 = vmatprep.subr.bf16.mxu0 0
      %2671 = vmatpush1.bf16.msra.mxu0 0
      %2672 = vmatprep.subr.bf16.mxu0 0
      %2673 = vmatpush1.bf16.msra.mxu0 0
      %2674 = vmatprep.subr.bf16.mxu0 0
      %2675 = vmatpush1.bf16.msra.mxu0 0
      %2676 = vmatprep.subr.bf16.mxu0 0
      %2677 = vmatpush1.bf16.msra.mxu0 0
      %2678 = vmatprep.subr.bf16.mxu0 0
      %2679 = vmatpush1.bf16.msra.mxu0 0
      %2680 = vmatprep.subr.bf16.mxu0 0
      %2681 = vmatpush1.bf16.msra.mxu0 0
      %2682 = vmatprep.subr.bf16.mxu0 0
      %2683 = vmatpush1.bf16.msra.mxu0 0
      %2684 = vmatprep.subr.bf16.mxu0 0
      %2685 = vmatpush1.bf16.msra.mxu0 0
      %2686 = vmatprep.subr.bf16.mxu0 0
      %2687 = vmatpush1.bf16.msra.mxu0 0
      %2688 = vmatprep.mubr.bf16.mxu0 0
      %2689 = vmatmul.mubr.bf16.gmra.mrb[0].mxu0 %v2143
      %v2690 = vpop.f32.mrb[0].mxu0
      %v2691 = vadd.f32 %v2626, %v2690
      %v2692 = vpop.f32.mrb[0].mxu0
      %v2693 = vpop.f32.mrb[0].mxu0
      %v2694 = vadd.f32 %v2629, %v2693
      %v2695 = vpop.f32.mrb[0].mxu0
      %2696 = vmatprep.mubr.bf16.mxu0 0
      %2697 = vmatmul.mubr.bf16.gmra.mrb[0].mxu0 %v2146
      %v2698 = vpop.f32.mrb[0].mxu0
      %v2699 = vadd.f32 %v2634, %v2698
      %v2700 = vpop.f32.mrb[0].mxu0
      %v2701 = vpop.f32.mrb[0].mxu0
      %v2702 = vadd.f32 %v2637, %v2701
      %v2703 = vpop.f32.mrb[0].mxu0
      %2704 = vmatprep.mubr.bf16.mxu0 0
      %2705 = vmatmul.mubr.bf16.gmra.mrb[0].mxu0 %v2149
      %v2706 = vpop.f32.mrb[0].mxu0
      %v2707 = vadd.f32 %v2642, %v2706
      %v2708 = vpop.f32.mrb[0].mxu0
      %v2709 = vpop.f32.mrb[0].mxu0
      %v2710 = vadd.f32 %v2645, %v2709
      %v2711 = vpop.f32.mrb[0].mxu0
      %2712 = vmatprep.mubr.bf16.mxu0 0
      %2713 = vmatmul.mubr.bf16.gmra.mrb[0].mxu0 %v2152
      %v2714 = vpop.f32.mrb[0].mxu0
      %v2715 = vadd.f32 %v2650, %v2714
      %v2716 = vpop.f32.mrb[0].mxu0
      %v2717 = vpop.f32.mrb[0].mxu0
      %v2718 = vadd.f32 %v2653, %v2717
      %v2719 = vpop.f32.mrb[0].mxu0
      %2720 = vdwg.mxu0
      %2721 = vmatprep.subr.bf16.mxu0 0
      %2722 = vmatpush1.bf16.msra.mxu0 %v1992
      %2723 = vmatprep.subr.bf16.mxu0 0
      %2724 = vmatpush1.bf16.msra.mxu0 0
      %2725 = vmatprep.subr.bf16.mxu0 0
      %2726 = vmatpush1.bf16.msra.mxu0 0
      %2727 = vmatprep.subr.bf16.mxu0 0
      %2728 = vmatpush1.bf16.msra.mxu0 0
      %2729 = vmatprep.subr.bf16.mxu0 0
      %2730 = vmatpush1.bf16.msra.mxu0 0
      %2731 = vmatprep.subr.bf16.mxu0 0
      %2732 = vmatpush1.bf16.msra.mxu0 0
      %2733 = vmatprep.subr.bf16.mxu0 0
      %2734 = vmatpush1.bf16.msra.mxu0 0
      %2735 = vmatprep.subr.bf16.mxu0 0
      %2736 = vmatpush1.bf16.msra.mxu0 0
      %2737 = vmatprep.subr.bf16.mxu0 0
      %2738 = vmatpush1.bf16.msra.mxu0 0
      %2739 = vmatprep.subr.bf16.mxu0 0
      %2740 = vmatpush1.bf16.msra.mxu0 0
      %2741 = vmatprep.subr.bf16.mxu0 0
      %2742 = vmatpush1.bf16.msra.mxu0 0
      %2743 = vmatprep.subr.bf16.mxu0 0
      %2744 = vmatpush1.bf16.msra.mxu0 0
      %2745 = vmatprep.subr.bf16.mxu0 0
      %2746 = vmatpush1.bf16.msra.mxu0 0
      %2747 = vmatprep.subr.bf16.mxu0 0
      %2748 = vmatpush1.bf16.msra.mxu0 0
      %2749 = vmatprep.subr.bf16.mxu0 0
      %2750 = vmatpush1.bf16.msra.mxu0 0
      %2751 = vmatprep.subr.bf16.mxu0 0
      %2752 = vmatpush1.bf16.msra.mxu0 0
      %2753 = vmatprep.mubr.bf16.mxu0 0
      %2754 = vmatmul.mubr.bf16.gmra.mrb[0].mxu0 %v2240
      %v2755 = vpop.f32.mrb[0].mxu0
      %v2756 = vadd.f32 0.0, %v2755
      %v2757 = vpop.f32.mrb[0].mxu0
      %v2758 = vpop.f32.mrb[0].mxu0
      %v2759 = vadd.f32 0.0, %v2758
      %v2760 = vpop.f32.mrb[0].mxu0
      %2761 = vmatprep.mubr.bf16.mxu0 0
      %2762 = vmatmul.mubr.bf16.gmra.mrb[0].mxu0 %v2243
      %v2763 = vpop.f32.mrb[0].mxu0
      %v2764 = vadd.f32 0.0, %v2763
      %v2765 = vpop.f32.mrb[0].mxu0
      %v2766 = vpop.f32.mrb[0].mxu0
      %v2767 = vadd.f32 0.0, %v2766
      %v2768 = vpop.f32.mrb[0].mxu0
      %2769 = vmatprep.mubr.bf16.mxu0 0
      %2770 = vmatmul.mubr.bf16.gmra.mrb[0].mxu0 %v2246
      %v2771 = vpop.f32.mrb[0].mxu0
      %v2772 = vadd.f32 0.0, %v2771
      %v2773 = vpop.f32.mrb[0].mxu0
      %v2774 = vpop.f32.mrb[0].mxu0
      %v2775 = vadd.f32 0.0, %v2774
      %v2776 = vpop.f32.mrb[0].mxu0
      %2777 = vmatprep.mubr.bf16.mxu0 0
      %2778 = vmatmul.mubr.bf16.gmra.mrb[0].mxu0 %v2249
      %v2779 = vpop.f32.mrb[0].mxu0
      %v2780 = vadd.f32 0.0, %v2779
      %v2781 = vpop.f32.mrb[0].mxu0
      %v2782 = vpop.f32.mrb[0].mxu0
      %v2783 = vadd.f32 0.0, %v2782
      %v2784 = vpop.f32.mrb[0].mxu0
      %2785 = vdwg.mxu0
      %v2786 = vadd.f32 %v2691, %v2756
      %v2787 = vadd.f32 %v2694, %v2759
      %v2788 = vadd.f32 %v2699, %v2764
      %v2789 = vadd.f32 %v2702, %v2767
      %v2790 = vadd.f32 %v2707, %v2772
      %v2791 = vadd.f32 %v2710, %v2775
      %v2792 = vadd.f32 %v2715, %v2780
      %v2793 = vadd.f32 %v2718, %v2783
      %v2794 = vadd.f32 %v2786, %v2327
      %v2795 = vadd.f32 %v2787, %v2332
      %v2796 = vadd.f32 %v2788, %v2337
      %v2797 = vadd.f32 %v2789, %v2342
      %v2798 = vadd.f32 %v2790, %v2347
      %v2799 = vadd.f32 %v2791, %v2352
      %v2800 = vadd.f32 %v2792, %v2357
      %v2801 = vadd.f32 %v2793, %v2362
      %v2802 = vpack.c.bf16 %v2795, %v2794
      %v2803 = vpack.c.bf16 %v2797, %v2796
      %v2804 = vpack.c.bf16 %v2799, %v2798
      %v2805 = vpack.c.bf16 %v2801, %v2800
      %v2806 = vld [vmem:[%s7] sm:$0xf]
      %v2807 = vld [vmem:[%s7 + $0x4] sm:$0xf]
      %v2808 = vld [vmem:[%s7 + $0x8] sm:$0xf]
      %v2809 = vld [vmem:[%s7 + $0xc] sm:$0xf]
      %v2810 = vld [vmem:[%s7 + $0x10] sm:$0xf]
      %v2811 = vld [vmem:[%s7 + $0x14] sm:$0xf]
      %v2812 = vld [vmem:[%s7 + $0x18] sm:$0xf]
      %v2813 = vld [vmem:[%s7 + $0x1c] sm:$0xf]
      %v2814 = vld [vmem:[%s7 + $0x20] sm:$0xf]
      %v2815 = vld [vmem:[%s7 + $0x24] sm:$0xf]
      %v2816 = vld [vmem:[%s7 + $0x28] sm:$0xf]
      %v2817 = vld [vmem:[%s7 + $0x2c] sm:$0xf]
      %v2818 = vld [vmem:[%s7 + $0x30] sm:$0xf]
      %v2819 = vld [vmem:[%s7 + $0x34] sm:$0xf]
      %v2820 = vld [vmem:[%s7 + $0x38] sm:$0xf]
      %v2821 = vld [vmem:[%s7 + $0x3c] sm:$0xf]
      %v2822 = vld [vmem:[%s7 + $0x40] sm:$0xf]
      %v2823 = vld [vmem:[%s7 + $0x44] sm:$0xf]
      %v2824 = vld [vmem:[%s7 + $0x48] sm:$0xf]
      %v2825 = vld [vmem:[%s7 + $0x4c] sm:$0xf]
      %v2826 = vld [vmem:[%s7 + $0x50] sm:$0xf]
      %v2827 = vld [vmem:[%s7 + $0x54] sm:$0xf]
      %v2828 = vld [vmem:[%s7 + $0x58] sm:$0xf]
      %v2829 = vld [vmem:[%s7 + $0x5c] sm:$0xf]
      %v2830 = vld [vmem:[%s8] sm:$0xff]
      %v2831 = vld [vmem:[%s8 + $0x8] sm:$0xff]
      %v2832 = vld [vmem:[%s8 + $0x10] sm:$0xff]
      %v2833 = vld [vmem:[%s8 + $0x18] sm:$0xff]
      %v2834 = vld [vmem:[%s8 + $0x20] sm:$0xff]
      %v2835 = vld [vmem:[%s8 + $0x28] sm:$0xff]
      %v2836 = vld [vmem:[%s8 + $0x30] sm:$0xff]
      %v2837 = vld [vmem:[%s8 + $0x38] sm:$0xff]
      %v2846 = vunpack.c.l.b16 %v2814
      %v2847 = vunpack.c.l.b16 %v2815
      %v2848 = vunpack.c.l.b16 %v2816
      %v2849 = vunpack.c.l.b16 %v2817
      %v2850 = vunpack.c.l.b16 %v2818
      %v2851 = vunpack.c.l.b16 %v2819
      %v2852 = vunpack.c.l.b16 %v2820
      %v2853 = vunpack.c.l.b16 %v2821
      %v2854 = vpack.c.b16 %v2847, %v2846
      %v2855 = vpack.c.b16 %v2849, %v2848
      %v2856 = vpack.c.b16 %v2851, %v2850
      %v2857 = vpack.c.b16 %v2853, %v2852
      %vm2858 = vcmask 523264
      %v2860 = vsel %vm2858, %v2854, 0
      %v2863 = vsel %vm2858, %v2855, 0
      %v2866 = vsel %vm2858, %v2856, 0
      %v2869 = vsel %vm2858, %v2857, 0
      %2871 = vmatprep.subr.bf16.mxu0 0
      %2872 = vmatpush1.bf16.msra.mxu0 %v2587
      %2873 = vmatprep.subr.bf16.mxu0 0
      %2874 = vmatpush1.bf16.msra.mxu0 %v2588
      %2875 = vmatprep.subr.bf16.mxu0 0
      %2876 = vmatpush1.bf16.msra.mxu0 %v2589
      %2877 = vmatprep.subr.bf16.mxu0 0
      %2878 = vmatpush1.bf16.msra.mxu0 %v2590
      %2879 = vmatprep.subr.bf16.mxu0 0
      %2880 = vmatpush1.bf16.msra.mxu0 0
      %2881 = vmatprep.subr.bf16.mxu0 0
      %2882 = vmatpush1.bf16.msra.mxu0 0
      %2883 = vmatprep.subr.bf16.mxu0 0
      %2884 = vmatpush1.bf16.msra.mxu0 0
      %2885 = vmatprep.subr.bf16.mxu0 0
      %2886 = vmatpush1.bf16.msra.mxu0 0
      %2887 = vmatprep.subr.bf16.mxu0 0
      %2888 = vmatpush1.bf16.msra.mxu0 0
      %2889 = vmatprep.subr.bf16.mxu0 0
      %2890 = vmatpush1.bf16.msra.mxu0 0
      %2891 = vmatprep.subr.bf16.mxu0 0
      %2892 = vmatpush1.bf16.msra.mxu0 0
      %2893 = vmatprep.subr.bf16.mxu0 0
      %2894 = vmatpush1.bf16.msra.mxu0 0
      %2895 = vmatprep.subr.bf16.mxu0 0
      %2896 = vmatpush1.bf16.msra.mxu0 0
      %2897 = vmatprep.subr.bf16.mxu0 0
      %2898 = vmatpush1.bf16.msra.mxu0 0
      %2899 = vmatprep.subr.bf16.mxu0 0
      %2900 = vmatpush1.bf16.msra.mxu0 0
      %2901 = vmatprep.subr.bf16.mxu0 0
      %2902 = vmatpush1.bf16.msra.mxu0 0
      %2903 = vmatprep.mubr.bf16.mxu0 0
      %2904 = vmatmul.mubr.bf16.gmra.mrb[0].mxu0 %v2860
      %v2905 = vpop.f32.mrb[0].mxu0
      %v2906 = vadd.f32 0.0, %v2905
      %v2907 = vpop.f32.mrb[0].mxu0
      %v2908 = vpop.f32.mrb[0].mxu0
      %v2909 = vadd.f32 0.0, %v2908
      %v2910 = vpop.f32.mrb[0].mxu0
      %2911 = vmatprep.mubr.bf16.mxu0 0
      %2912 = vmatmul.mubr.bf16.gmra.mrb[0].mxu0 %v2863
      %v2913 = vpop.f32.mrb[0].mxu0
      %v2914 = vadd.f32 0.0, %v2913
      %v2915 = vpop.f32.mrb[0].mxu0
      %v2916 = vpop.f32.mrb[0].mxu0
      %v2917 = vadd.f32 0.0, %v2916
      %v2918 = vpop.f32.mrb[0].mxu0
      %2919 = vmatprep.mubr.bf16.mxu0 0
      %2920 = vmatmul.mubr.bf16.gmra.mrb[0].mxu0 %v2866
      %v2921 = vpop.f32.mrb[0].mxu0
      %v2922 = vadd.f32 0.0, %v2921
      %v2923 = vpop.f32.mrb[0].mxu0
      %v2924 = vpop.f32.mrb[0].mxu0
      %v2925 = vadd.f32 0.0, %v2924
      %v2926 = vpop.f32.mrb[0].mxu0
      %2927 = vmatprep.mubr.bf16.mxu0 0
      %2928 = vmatmul.mubr.bf16.gmra.mrb[0].mxu0 %v2869
      %v2929 = vpop.f32.mrb[0].mxu0
      %v2930 = vadd.f32 0.0, %v2929
      %v2931 = vpop.f32.mrb[0].mxu0
      %v2932 = vpop.f32.mrb[0].mxu0
      %v2933 = vadd.f32 0.0, %v2932
      %v2934 = vpop.f32.mrb[0].mxu0
      %2935 = vdwg.mxu0
      %v2944 = vunpack.c.l.b16 %v2806
      %v2945 = vunpack.c.l.b16 %v2807
      %v2946 = vunpack.c.l.b16 %v2808
      %v2947 = vunpack.c.l.b16 %v2809
      %v2948 = vunpack.c.l.b16 %v2810
      %v2949 = vunpack.c.l.b16 %v2811
      %v2950 = vunpack.c.l.b16 %v2812
      %v2951 = vunpack.c.l.b16 %v2813
      %v2952 = vpack.c.b16 %v2945, %v2944
      %v2953 = vpack.c.b16 %v2947, %v2946
      %v2954 = vpack.c.b16 %v2949, %v2948
      %v2955 = vpack.c.b16 %v2951, %v2950
      %v2957 = vsel %vm2858, %v2952, 0
      %v2960 = vsel %vm2858, %v2953, 0
      %v2963 = vsel %vm2858, %v2954, 0
      %v2966 = vsel %vm2858, %v2955, 0
      %2968 = vmatprep.subr.bf16.mxu0 0
      %2969 = vmatpush1.bf16.msra.mxu0 %v2372
      %2970 = vmatprep.subr.bf16.mxu0 0
      %2971 = vmatpush1.bf16.msra.mxu0 %v2373
      %2972 = vmatprep.subr.bf16.mxu0 0
      %2973 = vmatpush1.bf16.msra.mxu0 %v2374
      %2974 = vmatprep.subr.bf16.mxu0 0
      %2975 = vmatpush1.bf16.msra.mxu0 %v2375
      %2976 = vmatprep.subr.bf16.mxu0 0
      %2977 = vmatpush1.bf16.msra.mxu0 0
      %2978 = vmatprep.subr.bf16.mxu0 0
      %2979 = vmatpush1.bf16.msra.mxu0 0
      %2980 = vmatprep.subr.bf16.mxu0 0
      %2981 = vmatpush1.bf16.msra.mxu0 0
      %2982 = vmatprep.subr.bf16.mxu0 0
      %2983 = vmatpush1.bf16.msra.mxu0 0
      %2984 = vmatprep.subr.bf16.mxu0 0
      %2985 = vmatpush1.bf16.msra.mxu0 0
      %2986 = vmatprep.subr.bf16.mxu0 0
      %2987 = vmatpush1.bf16.msra.mxu0 0
      %2988 = vmatprep.subr.bf16.mxu0 0
      %2989 = vmatpush1.bf16.msra.mxu0 0
      %2990 = vmatprep.subr.bf16.mxu0 0
      %2991 = vmatpush1.bf16.msra.mxu0 0
      %2992 = vmatprep.subr.bf16.mxu0 0
      %2993 = vmatpush1.bf16.msra.mxu0 0
      %2994 = vmatprep.subr.bf16.mxu0 0
      %2995 = vmatpush1.bf16.msra.mxu0 0
      %2996 = vmatprep.subr.bf16.mxu0 0
      %2997 = vmatpush1.bf16.msra.mxu0 0
      %2998 = vmatprep.subr.bf16.mxu0 0
      %2999 = vmatpush1.bf16.msra.mxu0 0
      %3000 = vmatprep.mubr.bf16.mxu0 0
      %3001 = vmatmul.mubr.bf16.gmra.mrb[0].mxu0 %v2957
      %v3002 = vpop.f32.mrb[0].mxu0
      %v3003 = vadd.f32 %v2906, %v3002
      %v3004 = vpop.f32.mrb[0].mxu0
      %v3005 = vpop.f32.mrb[0].mxu0
      %v3006 = vadd.f32 %v2909, %v3005
      %v3007 = vpop.f32.mrb[0].mxu0
      %3008 = vmatprep.mubr.bf16.mxu0 0
      %3009 = vmatmul.mubr.bf16.gmra.mrb[0].mxu0 %v2960
      %v3010 = vpop.f32.mrb[0].mxu0
      %v3011 = vadd.f32 %v2914, %v3010
      %v3012 = vpop.f32.mrb[0].mxu0
      %v3013 = vpop.f32.mrb[0].mxu0
      %v3014 = vadd.f32 %v2917, %v3013
      %v3015 = vpop.f32.mrb[0].mxu0
      %3016 = vmatprep.mubr.bf16.mxu0 0
      %3017 = vmatmul.mubr.bf16.gmra.mrb[0].mxu0 %v2963
      %v3018 = vpop.f32.mrb[0].mxu0
      %v3019 = vadd.f32 %v2922, %v3018
      %v3020 = vpop.f32.mrb[0].mxu0
      %v3021 = vpop.f32.mrb[0].mxu0
      %v3022 = vadd.f32 %v2925, %v3021
      %v3023 = vpop.f32.mrb[0].mxu0
      %3024 = vmatprep.mubr.bf16.mxu0 0
      %3025 = vmatmul.mubr.bf16.gmra.mrb[0].mxu0 %v2966
      %v3026 = vpop.f32.mrb[0].mxu0
      %v3027 = vadd.f32 %v2930, %v3026
      %v3028 = vpop.f32.mrb[0].mxu0
      %v3029 = vpop.f32.mrb[0].mxu0
      %v3030 = vadd.f32 %v2933, %v3029
      %v3031 = vpop.f32.mrb[0].mxu0
      %3032 = vdwg.mxu0
      %v3041 = vunpack.c.l.b16 %v2822
      %v3042 = vunpack.c.l.b16 %v2823
      %v3043 = vunpack.c.l.b16 %v2824
      %v3044 = vunpack.c.l.b16 %v2825
      %v3045 = vunpack.c.l.b16 %v2826
      %v3046 = vunpack.c.l.b16 %v2827
      %v3047 = vunpack.c.l.b16 %v2828
      %v3048 = vunpack.c.l.b16 %v2829
      %v3049 = vpack.c.b16 %v3042, %v3041
      %v3050 = vpack.c.b16 %v3044, %v3043
      %v3051 = vpack.c.b16 %v3046, %v3045
      %v3052 = vpack.c.b16 %v3048, %v3047
      %v3054 = vsel %vm2858, %v3049, 0
      %v3057 = vsel %vm2858, %v3050, 0
      %v3060 = vsel %vm2858, %v3051, 0
      %v3063 = vsel %vm2858, %v3052, 0
      %3065 = vmatprep.subr.bf16.mxu0 0
      %3066 = vmatpush1.bf16.msra.mxu0 %v2802
      %3067 = vmatprep.subr.bf16.mxu0 0
      %3068 = vmatpush1.bf16.msra.mxu0 %v2803
      %3069 = vmatprep.subr.bf16.mxu0 0
      %3070 = vmatpush1.bf16.msra.mxu0 %v2804
      %3071 = vmatprep.subr.bf16.mxu0 0
      %3072 = vmatpush1.bf16.msra.mxu0 %v2805
      %3073 = vmatprep.subr.bf16.mxu0 0
      %3074 = vmatpush1.bf16.msra.mxu0 0
      %3075 = vmatprep.subr.bf16.mxu0 0
      %3076 = vmatpush1.bf16.msra.mxu0 0
      %3077 = vmatprep.subr.bf16.mxu0 0
      %3078 = vmatpush1.bf16.msra.mxu0 0
      %3079 = vmatprep.subr.bf16.mxu0 0
      %3080 = vmatpush1.bf16.msra.mxu0 0
      %3081 = vmatprep.subr.bf16.mxu0 0
      %3082 = vmatpush1.bf16.msra.mxu0 0
      %3083 = vmatprep.subr.bf16.mxu0 0
      %3084 = vmatpush1.bf16.msra.mxu0 0
      %3085 = vmatprep.subr.bf16.mxu0 0
      %3086 = vmatpush1.bf16.msra.mxu0 0
      %3087 = vmatprep.subr.bf16.mxu0 0
      %3088 = vmatpush1.bf16.msra.mxu0 0
      %3089 = vmatprep.subr.bf16.mxu0 0
      %3090 = vmatpush1.bf16.msra.mxu0 0
      %3091 = vmatprep.subr.bf16.mxu0 0
      %3092 = vmatpush1.bf16.msra.mxu0 0
      %3093 = vmatprep.subr.bf16.mxu0 0
      %3094 = vmatpush1.bf16.msra.mxu0 0
      %3095 = vmatprep.subr.bf16.mxu0 0
      %3096 = vmatpush1.bf16.msra.mxu0 0
      %3097 = vmatprep.mubr.bf16.mxu0 0
      %3098 = vmatmul.mubr.bf16.gmra.mrb[0].mxu0 %v3054
      %v3099 = vpop.f32.mrb[0].mxu0
      %v3100 = vadd.f32 0.0, %v3099
      %v3101 = vpop.f32.mrb[0].mxu0
      %v3102 = vpop.f32.mrb[0].mxu0
      %v3103 = vadd.f32 0.0, %v3102
      %v3104 = vpop.f32.mrb[0].mxu0
      %3105 = vmatprep.mubr.bf16.mxu0 0
      %3106 = vmatmul.mubr.bf16.gmra.mrb[0].mxu0 %v3057
      %v3107 = vpop.f32.mrb[0].mxu0
      %v3108 = vadd.f32 0.0, %v3107
      %v3109 = vpop.f32.mrb[0].mxu0
      %v3110 = vpop.f32.mrb[0].mxu0
      %v3111 = vadd.f32 0.0, %v3110
      %v3112 = vpop.f32.mrb[0].mxu0
      %3113 = vmatprep.mubr.bf16.mxu0 0
      %3114 = vmatmul.mubr.bf16.gmra.mrb[0].mxu0 %v3060
      %v3115 = vpop.f32.mrb[0].mxu0
      %v3116 = vadd.f32 0.0, %v3115
      %v3117 = vpop.f32.mrb[0].mxu0
      %v3118 = vpop.f32.mrb[0].mxu0
      %v3119 = vadd.f32 0.0, %v3118
      %v3120 = vpop.f32.mrb[0].mxu0
      %3121 = vmatprep.mubr.bf16.mxu0 0
      %3122 = vmatmul.mubr.bf16.gmra.mrb[0].mxu0 %v3063
      %v3123 = vpop.f32.mrb[0].mxu0
      %v3124 = vadd.f32 0.0, %v3123
      %v3125 = vpop.f32.mrb[0].mxu0
      %v3126 = vpop.f32.mrb[0].mxu0
      %v3127 = vadd.f32 0.0, %v3126
      %v3128 = vpop.f32.mrb[0].mxu0
      %3129 = vdwg.mxu0
      %v3130 = vadd.f32 %v3003, %v3100
      %v3131 = vadd.f32 %v3006, %v3103
      %v3132 = vadd.f32 %v3011, %v3108
      %v3133 = vadd.f32 %v3014, %v3111
      %v3134 = vadd.f32 %v3019, %v3116
      %v3135 = vadd.f32 %v3022, %v3119
      %v3136 = vadd.f32 %v3027, %v3124
      %v3137 = vadd.f32 %v3030, %v3127
      %3138 = vmatprep.subr.bf16.mxu0 0
      %3139 = vmatpush1.bf16.msra.mxu0 %v2802
      %3140 = vmatprep.subr.bf16.mxu0 0
      %3141 = vmatpush1.bf16.msra.mxu0 %v2803
      %3142 = vmatprep.subr.bf16.mxu0 0
      %3143 = vmatpush1.bf16.msra.mxu0 %v2804
      %3144 = vmatprep.subr.bf16.mxu0 0
      %3145 = vmatpush1.bf16.msra.mxu0 %v2805
      %3146 = vmatprep.subr.bf16.mxu0 0
      %3147 = vmatpush1.bf16.msra.mxu0 0
      %3148 = vmatprep.subr.bf16.mxu0 0
      %3149 = vmatpush1.bf16.msra.mxu0 0
      %3150 = vmatprep.subr.bf16.mxu0 0
      %3151 = vmatpush1.bf16.msra.mxu0 0
      %3152 = vmatprep.subr.bf16.mxu0 0
      %3153 = vmatpush1.bf16.msra.mxu0 0
      %3154 = vmatprep.subr.bf16.mxu0 0
      %3155 = vmatpush1.bf16.msra.mxu0 0
      %3156 = vmatprep.subr.bf16.mxu0 0
      %3157 = vmatpush1.bf16.msra.mxu0 0
      %3158 = vmatprep.subr.bf16.mxu0 0
      %3159 = vmatpush1.bf16.msra.mxu0 0
      %3160 = vmatprep.subr.bf16.mxu0 0
      %3161 = vmatpush1.bf16.msra.mxu0 0
      %3162 = vmatprep.subr.bf16.mxu0 0
      %3163 = vmatpush1.bf16.msra.mxu0 0
      %3164 = vmatprep.subr.bf16.mxu0 0
      %3165 = vmatpush1.bf16.msra.mxu0 0
      %3166 = vmatprep.subr.bf16.mxu0 0
      %3167 = vmatpush1.bf16.msra.mxu0 0
      %3168 = vmatprep.subr.bf16.mxu0 0
      %3169 = vmatpush1.bf16.msra.mxu0 0
      %3170 = vmatprep.mubr.bf16.mxu0 0
      %3171 = vmatmul.mubr.bf16.gmra.mrb[0].mxu0 %v2860
      %v3172 = vpop.f32.mrb[0].mxu0
      %v3173 = vadd.f32 0.0, %v3172
      %v3174 = vpop.f32.mrb[0].mxu0
      %v3175 = vpop.f32.mrb[0].mxu0
      %v3176 = vadd.f32 0.0, %v3175
      %v3177 = vpop.f32.mrb[0].mxu0
      %3178 = vmatprep.mubr.bf16.mxu0 0
      %3179 = vmatmul.mubr.bf16.gmra.mrb[0].mxu0 %v2863
      %v3180 = vpop.f32.mrb[0].mxu0
      %v3181 = vadd.f32 0.0, %v3180
      %v3182 = vpop.f32.mrb[0].mxu0
      %v3183 = vpop.f32.mrb[0].mxu0
      %v3184 = vadd.f32 0.0, %v3183
      %v3185 = vpop.f32.mrb[0].mxu0
      %3186 = vmatprep.mubr.bf16.mxu0 0
      %3187 = vmatmul.mubr.bf16.gmra.mrb[0].mxu0 %v2866
      %v3188 = vpop.f32.mrb[0].mxu0
      %v3189 = vadd.f32 0.0, %v3188
      %v3190 = vpop.f32.mrb[0].mxu0
      %v3191 = vpop.f32.mrb[0].mxu0
      %v3192 = vadd.f32 0.0, %v3191
      %v3193 = vpop.f32.mrb[0].mxu0
      %3194 = vmatprep.mubr.bf16.mxu0 0
      %3195 = vmatmul.mubr.bf16.gmra.mrb[0].mxu0 %v2869
      %v3196 = vpop.f32.mrb[0].mxu0
      %v3197 = vadd.f32 0.0, %v3196
      %v3198 = vpop.f32.mrb[0].mxu0
      %v3199 = vpop.f32.mrb[0].mxu0
      %v3200 = vadd.f32 0.0, %v3199
      %v3201 = vpop.f32.mrb[0].mxu0
      %3202 = vdwg.mxu0
      %3203 = vmatprep.subr.bf16.mxu0 0
      %3204 = vmatpush1.bf16.msra.mxu0 %v2587
      %3205 = vmatprep.subr.bf16.mxu0 0
      %3206 = vmatpush1.bf16.msra.mxu0 %v2588
      %3207 = vmatprep.subr.bf16.mxu0 0
      %3208 = vmatpush1.bf16.msra.mxu0 %v2589
      %3209 = vmatprep.subr.bf16.mxu0 0
      %3210 = vmatpush1.bf16.msra.mxu0 %v2590
      %3211 = vmatprep.subr.bf16.mxu0 0
      %3212 = vmatpush1.bf16.msra.mxu0 0
      %3213 = vmatprep.subr.bf16.mxu0 0
      %3214 = vmatpush1.bf16.msra.mxu0 0
      %3215 = vmatprep.subr.bf16.mxu0 0
      %3216 = vmatpush1.bf16.msra.mxu0 0
      %3217 = vmatprep.subr.bf16.mxu0 0
      %3218 = vmatpush1.bf16.msra.mxu0 0
      %3219 = vmatprep.subr.bf16.mxu0 0
      %3220 = vmatpush1.bf16.msra.mxu0 0
      %3221 = vmatprep.subr.bf16.mxu0 0
      %3222 = vmatpush1.bf16.msra.mxu0 0
      %3223 = vmatprep.subr.bf16.mxu0 0
      %3224 = vmatpush1.bf16.msra.mxu0 0
      %3225 = vmatprep.subr.bf16.mxu0 0
      %3226 = vmatpush1.bf16.msra.mxu0 0
      %3227 = vmatprep.subr.bf16.mxu0 0
      %3228 = vmatpush1.bf16.msra.mxu0 0
      %3229 = vmatprep.subr.bf16.mxu0 0
      %3230 = vmatpush1.bf16.msra.mxu0 0
      %3231 = vmatprep.subr.bf16.mxu0 0
      %3232 = vmatpush1.bf16.msra.mxu0 0
      %3233 = vmatprep.subr.bf16.mxu0 0
      %3234 = vmatpush1.bf16.msra.mxu0 0
      %3235 = vmatprep.mubr.bf16.mxu0 0
      %3236 = vmatmul.mubr.bf16.gmra.mrb[0].mxu0 %v2957
      %v3237 = vpop.f32.mrb[0].mxu0
      %v3238 = vadd.f32 %v3173, %v3237
      %v3239 = vpop.f32.mrb[0].mxu0
      %v3240 = vpop.f32.mrb[0].mxu0
      %v3241 = vadd.f32 %v3176, %v3240
      %v3242 = vpop.f32.mrb[0].mxu0
      %3243 = vmatprep.mubr.bf16.mxu0 0
      %3244 = vmatmul.mubr.bf16.gmra.mrb[0].mxu0 %v2960
      %v3245 = vpop.f32.mrb[0].mxu0
      %v3246 = vadd.f32 %v3181, %v3245
      %v3247 = vpop.f32.mrb[0].mxu0
      %v3248 = vpop.f32.mrb[0].mxu0
      %v3249 = vadd.f32 %v3184, %v3248
      %v3250 = vpop.f32.mrb[0].mxu0
      %3251 = vmatprep.mubr.bf16.mxu0 0
      %3252 = vmatmul.mubr.bf16.gmra.mrb[0].mxu0 %v2963
      %v3253 = vpop.f32.mrb[0].mxu0
      %v3254 = vadd.f32 %v3189, %v3253
      %v3255 = vpop.f32.mrb[0].mxu0
      %v3256 = vpop.f32.mrb[0].mxu0
      %v3257 = vadd.f32 %v3192, %v3256
      %v3258 = vpop.f32.mrb[0].mxu0
      %3259 = vmatprep.mubr.bf16.mxu0 0
      %3260 = vmatmul.mubr.bf16.gmra.mrb[0].mxu0 %v2966
      %v3261 = vpop.f32.mrb[0].mxu0
      %v3262 = vadd.f32 %v3197, %v3261
      %v3263 = vpop.f32.mrb[0].mxu0
      %v3264 = vpop.f32.mrb[0].mxu0
      %v3265 = vadd.f32 %v3200, %v3264
      %v3266 = vpop.f32.mrb[0].mxu0
      %3267 = vdwg.mxu0
      %3272 = vrot.lane.b32.xlu0 %v2372, 127
      %v3273 = vpop.permute.xlu0 %3272
      %3274 = vrot.lane.b32.xlu0 %v2373, 127
      %v3275 = vpop.permute.xlu0 %3274
      %3276 = vrot.lane.b32.xlu0 %v2374, 127
      %v3277 = vpop.permute.xlu0 %3276
      %3278 = vrot.lane.b32.xlu0 %v2375, 127
      %v3279 = vpop.permute.xlu0 %3278
      %3284 = vmatprep.subr.bf16.mxu0 0
      %3285 = vmatpush1.bf16.msra.mxu0 %v3273
      %3286 = vmatprep.subr.bf16.mxu0 0
      %3287 = vmatpush1.bf16.msra.mxu0 %v3275
      %3288 = vmatprep.subr.bf16.mxu0 0
      %3289 = vmatpush1.bf16.msra.mxu0 %v3277
      %3290 = vmatprep.subr.bf16.mxu0 0
      %3291 = vmatpush1.bf16.msra.mxu0 %v3279
      %3292 = vmatprep.subr.bf16.mxu0 0
      %3293 = vmatpush1.bf16.msra.mxu0 0
      %3294 = vmatprep.subr.bf16.mxu0 0
      %3295 = vmatpush1.bf16.msra.mxu0 0
      %3296 = vmatprep.subr.bf16.mxu0 0
      %3297 = vmatpush1.bf16.msra.mxu0 0
      %3298 = vmatprep.subr.bf16.mxu0 0
      %3299 = vmatpush1.bf16.msra.mxu0 0
      %3300 = vmatprep.subr.bf16.mxu0 0
      %3301 = vmatpush1.bf16.msra.mxu0 0
      %3302 = vmatprep.subr.bf16.mxu0 0
      %3303 = vmatpush1.bf16.msra.mxu0 0
      %3304 = vmatprep.subr.bf16.mxu0 0
      %3305 = vmatpush1.bf16.msra.mxu0 0
      %3306 = vmatprep.subr.bf16.mxu0 0
      %3307 = vmatpush1.bf16.msra.mxu0 0
      %3308 = vmatprep.subr.bf16.mxu0 0
      %3309 = vmatpush1.bf16.msra.mxu0 0
      %3310 = vmatprep.subr.bf16.mxu0 0
      %3311 = vmatpush1.bf16.msra.mxu0 0
      %3312 = vmatprep.subr.bf16.mxu0 0
      %3313 = vmatpush1.bf16.msra.mxu0 0
      %3314 = vmatprep.subr.bf16.mxu0 0
      %3315 = vmatpush1.bf16.msra.mxu0 0
      %3316 = vmatprep.mubr.bf16.mxu0 0
      %3317 = vmatmul.mubr.bf16.gmra.mrb[0].mxu0 %v3054
      %v3318 = vpop.f32.mrb[0].mxu0
      %v3319 = vadd.f32 0.0, %v3318
      %v3320 = vpop.f32.mrb[0].mxu0
      %v3321 = vpop.f32.mrb[0].mxu0
      %v3322 = vadd.f32 0.0, %v3321
      %v3323 = vpop.f32.mrb[0].mxu0
      %3324 = vmatprep.mubr.bf16.mxu0 0
      %3325 = vmatmul.mubr.bf16.gmra.mrb[0].mxu0 %v3057
      %v3326 = vpop.f32.mrb[0].mxu0
      %v3327 = vadd.f32 0.0, %v3326
      %v3328 = vpop.f32.mrb[0].mxu0
      %v3329 = vpop.f32.mrb[0].mxu0
      %v3330 = vadd.f32 0.0, %v3329
      %v3331 = vpop.f32.mrb[0].mxu0
      %3332 = vmatprep.mubr.bf16.mxu0 0
      %3333 = vmatmul.mubr.bf16.gmra.mrb[0].mxu0 %v3060
      %v3334 = vpop.f32.mrb[0].mxu0
      %v3335 = vadd.f32 0.0, %v3334
      %v3336 = vpop.f32.mrb[0].mxu0
      %v3337 = vpop.f32.mrb[0].mxu0
      %v3338 = vadd.f32 0.0, %v3337
      %v3339 = vpop.f32.mrb[0].mxu0
      %3340 = vmatprep.mubr.bf16.mxu0 0
      %3341 = vmatmul.mubr.bf16.gmra.mrb[0].mxu0 %v3063
      %v3342 = vpop.f32.mrb[0].mxu0
      %v3343 = vadd.f32 0.0, %v3342
      %v3344 = vpop.f32.mrb[0].mxu0
      %v3345 = vpop.f32.mrb[0].mxu0
      %v3346 = vadd.f32 0.0, %v3345
      %v3347 = vpop.f32.mrb[0].mxu0
      %3348 = vdwg.mxu0
      %v3349 = vadd.f32 %v3238, %v3319
      %v3350 = vadd.f32 %v3241, %v3322
      %v3351 = vadd.f32 %v3246, %v3327
      %v3352 = vadd.f32 %v3249, %v3330
      %v3353 = vadd.f32 %v3254, %v3335
      %v3354 = vadd.f32 %v3257, %v3338
      %v3355 = vadd.f32 %v3262, %v3343
      %v3356 = vadd.f32 %v3265, %v3346
      %v3357 = vmax.f32 %v3130, %v3349
      %v3358 = vmax.f32 %v3131, %v3350
      %v3359 = vmax.f32 %v3132, %v3351
      %v3360 = vmax.f32 %v3133, %v3352
      %v3361 = vmax.f32 %v3134, %v3353
      %v3362 = vmax.f32 %v3135, %v3354
      %v3363 = vmax.f32 %v3136, %v3355
      %v3364 = vmax.f32 %v3137, %v3356
      %3365 = vmatprep.subr.bf16.mxu0 0
      %3366 = vmatpush1.bf16.msra.mxu0 %v3273
      %3367 = vmatprep.subr.bf16.mxu0 0
      %3368 = vmatpush1.bf16.msra.mxu0 %v3275
      %3369 = vmatprep.subr.bf16.mxu0 0
      %3370 = vmatpush1.bf16.msra.mxu0 %v3277
      %3371 = vmatprep.subr.bf16.mxu0 0
      %3372 = vmatpush1.bf16.msra.mxu0 %v3279
      %3373 = vmatprep.subr.bf16.mxu0 0
      %3374 = vmatpush1.bf16.msra.mxu0 0
      %3375 = vmatprep.subr.bf16.mxu0 0
      %3376 = vmatpush1.bf16.msra.mxu0 0
      %3377 = vmatprep.subr.bf16.mxu0 0
      %3378 = vmatpush1.bf16.msra.mxu0 0
      %3379 = vmatprep.subr.bf16.mxu0 0
      %3380 = vmatpush1.bf16.msra.mxu0 0
      %3381 = vmatprep.subr.bf16.mxu0 0
      %3382 = vmatpush1.bf16.msra.mxu0 0
      %3383 = vmatprep.subr.bf16.mxu0 0
      %3384 = vmatpush1.bf16.msra.mxu0 0
      %3385 = vmatprep.subr.bf16.mxu0 0
      %3386 = vmatpush1.bf16.msra.mxu0 0
      %3387 = vmatprep.subr.bf16.mxu0 0
      %3388 = vmatpush1.bf16.msra.mxu0 0
      %3389 = vmatprep.subr.bf16.mxu0 0
      %3390 = vmatpush1.bf16.msra.mxu0 0
      %3391 = vmatprep.subr.bf16.mxu0 0
      %3392 = vmatpush1.bf16.msra.mxu0 0
      %3393 = vmatprep.subr.bf16.mxu0 0
      %3394 = vmatpush1.bf16.msra.mxu0 0
      %3395 = vmatprep.subr.bf16.mxu0 0
      %3396 = vmatpush1.bf16.msra.mxu0 0
      %3397 = vmatprep.mubr.bf16.mxu0 0
      %3398 = vmatmul.mubr.bf16.gmra.mrb[0].mxu0 %v2860
      %v3399 = vpop.f32.mrb[0].mxu0
      %v3400 = vadd.f32 0.0, %v3399
      %v3401 = vpop.f32.mrb[0].mxu0
      %v3402 = vpop.f32.mrb[0].mxu0
      %v3403 = vadd.f32 0.0, %v3402
      %v3404 = vpop.f32.mrb[0].mxu0
      %3405 = vmatprep.mubr.bf16.mxu0 0
      %3406 = vmatmul.mubr.bf16.gmra.mrb[0].mxu0 %v2863
      %v3407 = vpop.f32.mrb[0].mxu0
      %v3408 = vadd.f32 0.0, %v3407
      %v3409 = vpop.f32.mrb[0].mxu0
      %v3410 = vpop.f32.mrb[0].mxu0
      %v3411 = vadd.f32 0.0, %v3410
      %v3412 = vpop.f32.mrb[0].mxu0
      %3413 = vmatprep.mubr.bf16.mxu0 0
      %3414 = vmatmul.mubr.bf16.gmra.mrb[0].mxu0 %v2866
      %v3415 = vpop.f32.mrb[0].mxu0
      %v3416 = vadd.f32 0.0, %v3415
      %v3417 = vpop.f32.mrb[0].mxu0
      %v3418 = vpop.f32.mrb[0].mxu0
      %v3419 = vadd.f32 0.0, %v3418
      %v3420 = vpop.f32.mrb[0].mxu0
      %3421 = vmatprep.mubr.bf16.mxu0 0
      %3422 = vmatmul.mubr.bf16.gmra.mrb[0].mxu0 %v2869
      %v3423 = vpop.f32.mrb[0].mxu0
      %v3424 = vadd.f32 0.0, %v3423
      %v3425 = vpop.f32.mrb[0].mxu0
      %v3426 = vpop.f32.mrb[0].mxu0
      %v3427 = vadd.f32 0.0, %v3426
      %v3428 = vpop.f32.mrb[0].mxu0
      %3429 = vdwg.mxu0
      %3430 = vmatprep.subr.bf16.mxu0 0
      %3431 = vmatpush1.bf16.msra.mxu0 %v2802
      %3432 = vmatprep.subr.bf16.mxu0 0
      %3433 = vmatpush1.bf16.msra.mxu0 %v2803
      %3434 = vmatprep.subr.bf16.mxu0 0
      %3435 = vmatpush1.bf16.msra.mxu0 %v2804
      %3436 = vmatprep.subr.bf16.mxu0 0
      %3437 = vmatpush1.bf16.msra.mxu0 %v2805
      %3438 = vmatprep.subr.bf16.mxu0 0
      %3439 = vmatpush1.bf16.msra.mxu0 0
      %3440 = vmatprep.subr.bf16.mxu0 0
      %3441 = vmatpush1.bf16.msra.mxu0 0
      %3442 = vmatprep.subr.bf16.mxu0 0
      %3443 = vmatpush1.bf16.msra.mxu0 0
      %3444 = vmatprep.subr.bf16.mxu0 0
      %3445 = vmatpush1.bf16.msra.mxu0 0
      %3446 = vmatprep.subr.bf16.mxu0 0
      %3447 = vmatpush1.bf16.msra.mxu0 0
      %3448 = vmatprep.subr.bf16.mxu0 0
      %3449 = vmatpush1.bf16.msra.mxu0 0
      %3450 = vmatprep.subr.bf16.mxu0 0
      %3451 = vmatpush1.bf16.msra.mxu0 0
      %3452 = vmatprep.subr.bf16.mxu0 0
      %3453 = vmatpush1.bf16.msra.mxu0 0
      %3454 = vmatprep.subr.bf16.mxu0 0
      %3455 = vmatpush1.bf16.msra.mxu0 0
      %3456 = vmatprep.subr.bf16.mxu0 0
      %3457 = vmatpush1.bf16.msra.mxu0 0
      %3458 = vmatprep.subr.bf16.mxu0 0
      %3459 = vmatpush1.bf16.msra.mxu0 0
      %3460 = vmatprep.subr.bf16.mxu0 0
      %3461 = vmatpush1.bf16.msra.mxu0 0
      %3462 = vmatprep.mubr.bf16.mxu0 0
      %3463 = vmatmul.mubr.bf16.gmra.mrb[0].mxu0 %v2957
      %v3464 = vpop.f32.mrb[0].mxu0
      %v3465 = vadd.f32 %v3400, %v3464
      %v3466 = vpop.f32.mrb[0].mxu0
      %v3467 = vpop.f32.mrb[0].mxu0
      %v3468 = vadd.f32 %v3403, %v3467
      %v3469 = vpop.f32.mrb[0].mxu0
      %3470 = vmatprep.mubr.bf16.mxu0 0
      %3471 = vmatmul.mubr.bf16.gmra.mrb[0].mxu0 %v2960
      %v3472 = vpop.f32.mrb[0].mxu0
      %v3473 = vadd.f32 %v3408, %v3472
      %v3474 = vpop.f32.mrb[0].mxu0
      %v3475 = vpop.f32.mrb[0].mxu0
      %v3476 = vadd.f32 %v3411, %v3475
      %v3477 = vpop.f32.mrb[0].mxu0
      %3478 = vmatprep.mubr.bf16.mxu0 0
      %3479 = vmatmul.mubr.bf16.gmra.mrb[0].mxu0 %v2963
      %v3480 = vpop.f32.mrb[0].mxu0
      %v3481 = vadd.f32 %v3416, %v3480
      %v3482 = vpop.f32.mrb[0].mxu0
      %v3483 = vpop.f32.mrb[0].mxu0
      %v3484 = vadd.f32 %v3419, %v3483
      %v3485 = vpop.f32.mrb[0].mxu0
      %3486 = vmatprep.mubr.bf16.mxu0 0
      %3487 = vmatmul.mubr.bf16.gmra.mrb[0].mxu0 %v2966
      %v3488 = vpop.f32.mrb[0].mxu0
      %v3489 = vadd.f32 %v3424, %v3488
      %v3490 = vpop.f32.mrb[0].mxu0
      %v3491 = vpop.f32.mrb[0].mxu0
      %v3492 = vadd.f32 %v3427, %v3491
      %v3493 = vpop.f32.mrb[0].mxu0
      %3494 = vdwg.mxu0
      %3499 = vrot.lane.b32.xlu0 %v2587, 127
      %v3500 = vpop.permute.xlu0 %3499
      %3501 = vrot.lane.b32.xlu0 %v2588, 127
      %v3502 = vpop.permute.xlu0 %3501
      %3503 = vrot.lane.b32.xlu0 %v2589, 127
      %v3504 = vpop.permute.xlu0 %3503
      %3505 = vrot.lane.b32.xlu0 %v2590, 127
      %v3506 = vpop.permute.xlu0 %3505
      %3511 = vmatprep.subr.bf16.mxu0 0
      %3512 = vmatpush1.bf16.msra.mxu0 %v3500
      %3513 = vmatprep.subr.bf16.mxu0 0
      %3514 = vmatpush1.bf16.msra.mxu0 %v3502
      %3515 = vmatprep.subr.bf16.mxu0 0
      %3516 = vmatpush1.bf16.msra.mxu0 %v3504
      %3517 = vmatprep.subr.bf16.mxu0 0
      %3518 = vmatpush1.bf16.msra.mxu0 %v3506
      %3519 = vmatprep.subr.bf16.mxu0 0
      %3520 = vmatpush1.bf16.msra.mxu0 0
      %3521 = vmatprep.subr.bf16.mxu0 0
      %3522 = vmatpush1.bf16.msra.mxu0 0
      %3523 = vmatprep.subr.bf16.mxu0 0
      %3524 = vmatpush1.bf16.msra.mxu0 0
      %3525 = vmatprep.subr.bf16.mxu0 0
      %3526 = vmatpush1.bf16.msra.mxu0 0
      %3527 = vmatprep.subr.bf16.mxu0 0
      %3528 = vmatpush1.bf16.msra.mxu0 0
      %3529 = vmatprep.subr.bf16.mxu0 0
      %3530 = vmatpush1.bf16.msra.mxu0 0
      %3531 = vmatprep.subr.bf16.mxu0 0
      %3532 = vmatpush1.bf16.msra.mxu0 0
      %3533 = vmatprep.subr.bf16.mxu0 0
      %3534 = vmatpush1.bf16.msra.mxu0 0
      %3535 = vmatprep.subr.bf16.mxu0 0
      %3536 = vmatpush1.bf16.msra.mxu0 0
      %3537 = vmatprep.subr.bf16.mxu0 0
      %3538 = vmatpush1.bf16.msra.mxu0 0
      %3539 = vmatprep.subr.bf16.mxu0 0
      %3540 = vmatpush1.bf16.msra.mxu0 0
      %3541 = vmatprep.subr.bf16.mxu0 0
      %3542 = vmatpush1.bf16.msra.mxu0 0
      %3543 = vmatprep.mubr.bf16.mxu0 0
      %3544 = vmatmul.mubr.bf16.gmra.mrb[0].mxu0 %v3054
      %v3545 = vpop.f32.mrb[0].mxu0
      %v3546 = vadd.f32 0.0, %v3545
      %v3547 = vpop.f32.mrb[0].mxu0
      %v3548 = vpop.f32.mrb[0].mxu0
      %v3549 = vadd.f32 0.0, %v3548
      %v3550 = vpop.f32.mrb[0].mxu0
      %3551 = vmatprep.mubr.bf16.mxu0 0
      %3552 = vmatmul.mubr.bf16.gmra.mrb[0].mxu0 %v3057
      %v3553 = vpop.f32.mrb[0].mxu0
      %v3554 = vadd.f32 0.0, %v3553
      %v3555 = vpop.f32.mrb[0].mxu0
      %v3556 = vpop.f32.mrb[0].mxu0
      %v3557 = vadd.f32 0.0, %v3556
      %v3558 = vpop.f32.mrb[0].mxu0
      %3559 = vmatprep.mubr.bf16.mxu0 0
      %3560 = vmatmul.mubr.bf16.gmra.mrb[0].mxu0 %v3060
      %v3561 = vpop.f32.mrb[0].mxu0
      %v3562 = vadd.f32 0.0, %v3561
      %v3563 = vpop.f32.mrb[0].mxu0
      %v3564 = vpop.f32.mrb[0].mxu0
      %v3565 = vadd.f32 0.0, %v3564
      %v3566 = vpop.f32.mrb[0].mxu0
      %3567 = vmatprep.mubr.bf16.mxu0 0
      %3568 = vmatmul.mubr.bf16.gmra.mrb[0].mxu0 %v3063
      %v3569 = vpop.f32.mrb[0].mxu0
      %v3570 = vadd.f32 0.0, %v3569
      %v3571 = vpop.f32.mrb[0].mxu0
      %v3572 = vpop.f32.mrb[0].mxu0
      %v3573 = vadd.f32 0.0, %v3572
      %v3574 = vpop.f32.mrb[0].mxu0
      %3575 = vdwg.mxu0
      %v3576 = vadd.f32 %v3465, %v3546
      %v3577 = vadd.f32 %v3468, %v3549
      %v3578 = vadd.f32 %v3473, %v3554
      %v3579 = vadd.f32 %v3476, %v3557
      %v3580 = vadd.f32 %v3481, %v3562
      %v3581 = vadd.f32 %v3484, %v3565
      %v3582 = vadd.f32 %v3489, %v3570
      %v3583 = vadd.f32 %v3492, %v3573
      %v3584 = vmax.f32 %v3357, %v3576
      %v3585 = vmax.f32 %v3358, %v3577
      %v3586 = vmax.f32 %v3359, %v3578
      %v3587 = vmax.f32 %v3360, %v3579
      %v3588 = vmax.f32 %v3361, %v3580
      %v3589 = vmax.f32 %v3362, %v3581
      %v3590 = vmax.f32 %v3363, %v3582
      %v3591 = vmax.f32 %v3364, %v3583
      %3593 = vset.pattern.permute.xlu0 0
      %3594 = vperm.xlu0 %3593, %v2830
      %v3595 = vpop.permute.xlu0 %3594
      %3598 = vset.pattern.permute.xlu0 0
      %3599 = vperm.xlu0 %3598, %v2831
      %v3600 = vpop.permute.xlu0 %3599
      %3603 = vset.pattern.permute.xlu0 0
      %3604 = vperm.xlu0 %3603, %v2832
      %v3605 = vpop.permute.xlu0 %3604
      %3608 = vset.pattern.permute.xlu0 0
      %3609 = vperm.xlu0 %3608, %v2833
      %v3610 = vpop.permute.xlu0 %3609
      %3613 = vset.pattern.permute.xlu0 0
      %3614 = vperm.xlu0 %3613, %v2834
      %v3615 = vpop.permute.xlu0 %3614
      %3618 = vset.pattern.permute.xlu0 0
      %3619 = vperm.xlu0 %3618, %v2835
      %v3620 = vpop.permute.xlu0 %3619
      %3623 = vset.pattern.permute.xlu0 0
      %3624 = vperm.xlu0 %3623, %v2836
      %v3625 = vpop.permute.xlu0 %3624
      %3628 = vset.pattern.permute.xlu0 0
      %3629 = vperm.xlu0 %3628, %v2837
      %v3630 = vpop.permute.xlu0 %3629
      %v3632 = vadd.f32 %v3584, %v3595
      %v3633 = vadd.f32 %v3585, %v3600
      %v3634 = vadd.f32 %v3586, %v3605
      %v3635 = vadd.f32 %v3587, %v3610
      %v3636 = vadd.f32 %v3588, %v3615
      %v3637 = vadd.f32 %v3589, %v3620
      %v3638 = vadd.f32 %v3590, %v3625
      %v3639 = vadd.f32 %v3591, %v3630
      %v3640 = vmax.f32 %v3632, 0.0
      %v3641 = vmax.f32 %v3633, 0.0
      %v3642 = vmax.f32 %v3634, 0.0
      %v3643 = vmax.f32 %v3635, 0.0
      %v3644 = vmax.f32 %v3636, 0.0
      %v3645 = vmax.f32 %v3637, 0.0
      %v3646 = vmax.f32 %v3638, 0.0
      %v3647 = vmax.f32 %v3639, 0.0
      %v3648 = vpack.c.bf16 %v3641, %v3640
      %v3649 = vpack.c.bf16 %v3643, %v3642
      %v3650 = vpack.c.bf16 %v3645, %v3644
      %v3651 = vpack.c.bf16 %v3647, %v3646
      %v3656 = vunpack.c.l.b16 %v3648
      %v3657 = vunpack.c.h.b16 %v3648
      %v3658 = vunpack.c.l.b16 %v3649
      %v3659 = vunpack.c.h.b16 %v3649
      %v3660 = vunpack.c.l.b16 %v3650
      %v3661 = vunpack.c.h.b16 %v3650
      %v3662 = vunpack.c.l.b16 %v3651
      %v3663 = vunpack.c.h.b16 %v3651
      %v3664 = vpack.c.b16 %v3656, %v3656
      %v3665 = vpack.c.b16 %v3657, %v3657
      %v3666 = vpack.c.b16 %v3658, %v3658
      %v3667 = vpack.c.b16 %v3659, %v3659
      %v3668 = vpack.c.b16 %v3660, %v3660
      %v3669 = vpack.c.b16 %v3661, %v3661
      %v3670 = vpack.c.b16 %v3662, %v3662
      %v3671 = vpack.c.b16 %v3663, %v3663
      %vm3680 = vcmask 289792
      %3681 = vst.msk [vmem:[%s332] sm:$0xf] %vm3680, %v3664
      %3682 = vst.msk [vmem:[%s332 + $0x4] sm:$0xf] %vm3680, %v3665
      %3683 = vst.msk [vmem:[%s332 + $0x8] sm:$0xf] %vm3680, %v3666
      %3684 = vst.msk [vmem:[%s332 + $0xc] sm:$0xf] %vm3680, %v3667
      %3685 = vst.msk [vmem:[%s332 + $0x10] sm:$0xf] %vm3680, %v3668
      %3686 = vst.msk [vmem:[%s332 + $0x14] sm:$0xf] %vm3680, %v3669
      %3687 = vst.msk [vmem:[%s332 + $0x18] sm:$0xf] %vm3680, %v3670
      %3688 = vst.msk [vmem:[%s332 + $0x1c] sm:$0xf] %vm3680, %v3671
      %p3689 = scmp.lt.s32.totalorder %s20, 1
      %s3690 = scalar_select %p3689, %s20, 1
      %s3691 = smul.addr %s3690, 8
      %s3692 = smul.addr %s3691, 4
      %s3693 = scalar_lea.vmem %s9, %s3692
      // Predicated region
      $region57: #{cnn_forward.2} parent=55 // pred_check
        %p3694 = pneg %p232
      $region58: #{cnn_forward.2} parent=55 // pred_check_branch
        %3696 = sbr.rel (%p3694) target = $region60
      $region59: #{cnn_forward.2} parent=55 // pred_region
        _
      $region60: #{cnn_forward.2} parent=55 // pred_fallthru
        _
    $region56: #{cnn_forward.2} parent=5 // pred_fallthru
      _
    %p3697 = scmp.le.s32.totalorder 2, %s15
    // Predicated region
    $region61: #{cnn_forward.2} parent=5 // pred_check
      %p3698 = pneg %p3697
    $region62: #{cnn_forward.2} parent=5 // pred_check_branch
      %3700 = sbr.rel (%p3698) target = $region64
    $region63: #{cnn_forward.2} parent=5 // pred_region
      %s3701 = ssub.s32 %s15, 2
      // Predicated region
      $region65: #{cnn_forward.2} parent=63 // pred_check
        %p3702 = pneg %p238
      $region66: #{cnn_forward.2} parent=63 // pred_check_branch
        %3704 = sbr.rel (%p3702) target = $region68
      $region67: #{cnn_forward.2} parent=63 // pred_region
        %p3705 = scmp.lt.s32.totalorder %s21, 1
        %s3706 = scalar_select %p3705, %s21, 1
        %s3707 = smul.addr %s3706, 8
        %s3708 = smul.addr %s3707, 4
        %s3709 = scalar_lea.vmem %s9, %s3708
      $region68: #{cnn_forward.2} parent=63 // pred_fallthru
        _
    $region64: #{cnn_forward.2} parent=5 // pred_fallthru
      _
  $region6: #{cnn_forward.2} parent=0 // loop_footer
    %s19 = sadd.s32 1, %s15
  $region7: #{cnn_forward.2} parent=0 // loop_footer_branch
    %14 = sbr.rel target = $region3
  $region8: #{cnn_forward.2} parent=0 // loop_exit
    _

// kernel: cnn_forward.3
$region0: #{cnn_forward.3}
  #allocation0 [shape = 'u32[]', space=smem, size = 0x4, offset = 0x4, fixed_abs, tag = 'smem constant byte address 0x4 - core index']
  #allocation1 [shape = 'u32[144,128]{1,0:T(1,128)}', space=vmem, size = 0x12000, scoped, tag = 'internal scratch']
  #allocation2 [shape = 'f32[8,128]{1,0:T(8,128)}', space=vmem, size = 0x1000, scoped, tag = 'scratch operand']
  #allocation3 [shape = 'f32[1,1]{1,0:T(1,128)S(1)}', space=vmem, size = 0x200, scoped, tag = 'scoped memory for cnn_forward.3']
  %s0 = inlined_call_operand.vmem [shape: bf16[8,2304], index: 0, kind: input, shape index: {}]
  %s1 = inlined_call_operand.vmem [shape: bf16[2304,128], index: 1, kind: input, shape index: {}]
  %s2 = inlined_call_operand.vmem [shape: f32[1,128], index: 2, kind: input, shape index: {}]
  %s3 = inlined_call_operand.vmem [shape: bf16[128,64], index: 3, kind: input, shape index: {}]
  %s4 = inlined_call_operand.vmem [shape: f32[1,64], index: 4, kind: input, shape index: {}]
  %s5 = inlined_call_operand.vmem [shape: bf16[64,1], index: 5, kind: input, shape index: {}]
  %s6 = inlined_call_operand.<no memory space> [shape: f32[1,1], index: 6, kind: input, shape index: {}]
  %s7 = inlined_call_operand.vmem [shape: f32[8,1], index: 7, kind: output, shape index: {}]
  %s8 = sld [smem:[#allocation0]]
  $region46: #{cnn_forward.3} parent=0
    _
  %s10 = ssub.s32 1, %s8
  %s11 = scalar_select 0, %s10, %s8
  %v12 = vstv %s6
  %13 = vst [vmem:[#allocation3] sm:$0x1] %v12
  // Predicated region
  $region2: #{cnn_forward.3} parent=0 // pred_check
    _
  $region3: #{cnn_forward.3} parent=0 // pred_check_branch
    %15 = sbr.rel (0) target = $region5
  $region4: #{cnn_forward.3} parent=0 // pred_region
    _
  $region5: #{cnn_forward.3} parent=0 // pred_fallthru
    _
  // Predicated region
  $region6: #{cnn_forward.3} parent=0 // pred_check
    _
  $region7: #{cnn_forward.3} parent=0 // pred_check_branch
    %17 = sbr.rel (0) target = $region9
  $region8: #{cnn_forward.3} parent=0 // pred_region
    _
  $region9: #{cnn_forward.3} parent=0 // pred_fallthru
    _
  // Predicated region
  $region10: #{cnn_forward.3} parent=0 // pred_check
    _
  $region11: #{cnn_forward.3} parent=0 // pred_check_branch
    %19 = sbr.rel (0) target = $region13
  $region12: #{cnn_forward.3} parent=0 // pred_region
    _
  $region13: #{cnn_forward.3} parent=0 // pred_fallthru
    _
  // Predicated region
  $region14: #{cnn_forward.3} parent=0 // pred_check
    _
  $region15: #{cnn_forward.3} parent=0 // pred_check_branch
    %21 = sbr.rel (0) target = $region17
  $region16: #{cnn_forward.3} parent=0 // pred_region
    _
  $region17: #{cnn_forward.3} parent=0 // pred_fallthru
    _
  // Predicated region
  $region18: #{cnn_forward.3} parent=0 // pred_check
    _
  $region19: #{cnn_forward.3} parent=0 // pred_check_branch
    %23 = sbr.rel (0) target = $region21
  $region20: #{cnn_forward.3} parent=0 // pred_region
    _
  $region21: #{cnn_forward.3} parent=0 // pred_fallthru
    _
  // Predicated region
  $region22: #{cnn_forward.3} parent=0 // pred_check
    _
  $region23: #{cnn_forward.3} parent=0 // pred_check_branch
    %25 = sbr.rel (0) target = $region25
  $region24: #{cnn_forward.3} parent=0 // pred_region
    _
  $region25: #{cnn_forward.3} parent=0 // pred_fallthru
    _
  // Predicated region
  $region26: #{cnn_forward.3} parent=0 // pred_check
    _
  $region27: #{cnn_forward.3} parent=0 // pred_check_branch
    %27 = sbr.rel (0) target = $region29
  $region28: #{cnn_forward.3} parent=0 // pred_region
    _
  $region29: #{cnn_forward.3} parent=0 // pred_fallthru
    _
  %p29 = scmp.eq.s32.totalorder 0, 0
  // Predicated region
  $region30: #{cnn_forward.3} parent=0 // pred_check
    %p30 = pneg %p29
  $region31: #{cnn_forward.3} parent=0 // pred_check_branch
    %32 = sbr.rel (%p30) target = $region33
  $region32: #{cnn_forward.3} parent=0 // pred_region
    %33 = vst [vmem:[#allocation2] sm:$0xff] 0.0
  $region33: #{cnn_forward.3} parent=0 // pred_fallthru
    _
  %v34 = vld [vmem:[#allocation2] sm:$0xff]
  %v35 = vld [vmem:[%s0] sm:$0xff]
  %v36 = vld [vmem:[%s0 + $0x8] sm:$0xff]
  %v37 = vld [vmem:[%s0 + $0x10] sm:$0xff]
  %v38 = vld [vmem:[%s0 + $0x18] sm:$0xff]
  %v39 = vld [vmem:[%s0 + $0x20] sm:$0xff]
  %v40 = vld [vmem:[%s0 + $0x28] sm:$0xff]
  %v41 = vld [vmem:[%s0 + $0x30] sm:$0xff]
  %v42 = vld [vmem:[%s0 + $0x38] sm:$0xff]
  %v43 = vld [vmem:[%s0 + $0x40] sm:$0xff]
  %v44 = vld [vmem:[%s1] sm:$0xf]
  %v45 = vld [vmem:[%s1 + $0x4] sm:$0xf]
  %v46 = vld [vmem:[%s1 + $0x8] sm:$0xf]
  %v47 = vld [vmem:[%s1 + $0xc] sm:$0xf]
  %v48 = vld [vmem:[%s1 + $0x10] sm:$0xf]
  %v49 = vld [vmem:[%s1 + $0x14] sm:$0xf]
  %v50 = vld [vmem:[%s1 + $0x18] sm:$0xf]
  %v51 = vld [vmem:[%s1 + $0x1c] sm:$0xf]
  %v52 = vld [vmem:[%s1 + $0x20] sm:$0xf]
  %v53 = vld [vmem:[%s1 + $0x24] sm:$0xf]
  %v54 = vld [vmem:[%s1 + $0x28] sm:$0xf]
  %v55 = vld [vmem:[%s1 + $0x2c] sm:$0xf]
  %v56 = vld [vmem:[%s1 + $0x30] sm:$0xf]
  %v57 = vld [vmem:[%s1 + $0x34] sm:$0xf]
  %v58 = vld [vmem:[%s1 + $0x38] sm:$0xf]
  %v59 = vld [vmem:[%s1 + $0x3c] sm:$0xf]
  %v60 = vld [vmem:[%s1 + $0x40] sm:$0xf]
  %v61 = vld [vmem:[%s1 + $0x44] sm:$0xf]
  %v62 = vld [vmem:[%s1 + $0x48] sm:$0xf]
  %v63 = vld [vmem:[%s1 + $0x4c] sm:$0xf]
  %v64 = vld [vmem:[%s1 + $0x50] sm:$0xf]
  %v65 = vld [vmem:[%s1 + $0x54] sm:$0xf]
  %v66 = vld [vmem:[%s1 + $0x58] sm:$0xf]
  %v67 = vld [vmem:[%s1 + $0x5c] sm:$0xf]
  %v68 = vld [vmem:[%s1 + $0x60] sm:$0xf]
  %v69 = vld [vmem:[%s1 + $0x64] sm:$0xf]
  %v70 = vld [vmem:[%s1 + $0x68] sm:$0xf]
  %v71 = vld [vmem:[%s1 + $0x6c] sm:$0xf]
  %v72 = vld [vmem:[%s1 + $0x70] sm:$0xf]
  %v73 = vld [vmem:[%s1 + $0x74] sm:$0xf]
  %v74 = vld [vmem:[%s1 + $0x78] sm:$0xf]
  %v75 = vld [vmem:[%s1 + $0x7c] sm:$0xf]
  %v76 = vld [vmem:[%s1 + $0x80] sm:$0xf]
  %v77 = vld [vmem:[%s1 + $0x84] sm:$0xf]
  %v78 = vld [vmem:[%s1 + $0x88] sm:$0xf]
  %v79 = vld [vmem:[%s1 + $0x8c] sm:$0xf]
  %v80 = vld [vmem:[%s1 + $0x90] sm:$0xf]
  %v81 = vld [vmem:[%s1 + $0x94] sm:$0xf]
  %v82 = vld [vmem:[%s1 + $0x98] sm:$0xf]
  %v83 = vld [vmem:[%s1 + $0x9c] sm:$0xf]
  %v84 = vld [vmem:[%s1 + $0xa0] sm:$0xf]
  %v85 = vld [vmem:[%s1 + $0xa4] sm:$0xf]
  %v86 = vld [vmem:[%s1 + $0xa8] sm:$0xf]
  %v87 = vld [vmem:[%s1 + $0xac] sm:$0xf]
  %v88 = vld [vmem:[%s1 + $0xb0] sm:$0xf]
  %v89 = vld [vmem:[%s1 + $0xb4] sm:$0xf]
  %v90 = vld [vmem:[%s1 + $0xb8] sm:$0xf]
  %v91 = vld [vmem:[%s1 + $0xbc] sm:$0xf]
  %v92 = vld [vmem:[%s1 + $0xc0] sm:$0xf]
  %v93 = vld [vmem:[%s1 + $0xc4] sm:$0xf]
  %v94 = vld [vmem:[%s1 + $0xc8] sm:$0xf]
  %v95 = vld [vmem:[%s1 + $0xcc] sm:$0xf]
  %v96 = vld [vmem:[%s1 + $0xd0] sm:$0xf]
  %v97 = vld [vmem:[%s1 + $0xd4] sm:$0xf]
  %v98 = vld [vmem:[%s1 + $0xd8] sm:$0xf]
  %v99 = vld [vmem:[%s1 + $0xdc] sm:$0xf]
  %v100 = vld [vmem:[%s1 + $0xe0] sm:$0xf]
  %v101 = vld [vmem:[%s1 + $0xe4] sm:$0xf]
  %v102 = vld [vmem:[%s1 + $0xe8] sm:$0xf]
  %v103 = vld [vmem:[%s1 + $0xec] sm:$0xf]
  %v104 = vld [vmem:[%s1 + $0xf0] sm:$0xf]
  %v105 = vld [vmem:[%s1 + $0xf4] sm:$0xf]
  %v106 = vld [vmem:[%s1 + $0xf8] sm:$0xf]
  %v107 = vld [vmem:[%s1 + $0xfc] sm:$0xf]
  %v108 = vld [vmem:[%s1 + $0x100] sm:$0xf]
  %v109 = vld [vmem:[%s1 + $0x104] sm:$0xf]
  %v110 = vld [vmem:[%s1 + $0x108] sm:$0xf]
  %v111 = vld [vmem:[%s1 + $0x10c] sm:$0xf]
  %v112 = vld [vmem:[%s1 + $0x110] sm:$0xf]
  %v113 = vld [vmem:[%s1 + $0x114] sm:$0xf]
  %v114 = vld [vmem:[%s1 + $0x118] sm:$0xf]
  %v115 = vld [vmem:[%s1 + $0x11c] sm:$0xf]
  %v116 = vld [vmem:[%s1 + $0x120] sm:$0xf]
  %v117 = vld [vmem:[%s1 + $0x124] sm:$0xf]
  %v118 = vld [vmem:[%s1 + $0x128] sm:$0xf]
  %v119 = vld [vmem:[%s1 + $0x12c] sm:$0xf]
  %v120 = vld [vmem:[%s1 + $0x130] sm:$0xf]
  %v121 = vld [vmem:[%s1 + $0x134] sm:$0xf]
  %v122 = vld [vmem:[%s1 + $0x138] sm:$0xf]
  %v123 = vld [vmem:[%s1 + $0x13c] sm:$0xf]
  %v124 = vld [vmem:[%s1 + $0x140] sm:$0xf]
  %v125 = vld [vmem:[%s1 + $0x144] sm:$0xf]
  %v126 = vld [vmem:[%s1 + $0x148] sm:$0xf]
  %v127 = vld [vmem:[%s1 + $0x14c] sm:$0xf]
  %v128 = vld [vmem:[%s1 + $0x150] sm:$0xf]
  %v129 = vld [vmem:[%s1 + $0x154] sm:$0xf]
  %v130 = vld [vmem:[%s1 + $0x158] sm:$0xf]
  %v131 = vld [vmem:[%s1 + $0x15c] sm:$0xf]
  %v132 = vld [vmem:[%s1 + $0x160] sm:$0xf]
  %v133 = vld [vmem:[%s1 + $0x164] sm:$0xf]
  %v134 = vld [vmem:[%s1 + $0x168] sm:$0xf]
  %v135 = vld [vmem:[%s1 + $0x16c] sm:$0xf]
  %v136 = vld [vmem:[%s1 + $0x170] sm:$0xf]
  %v137 = vld [vmem:[%s1 + $0x174] sm:$0xf]
  %v138 = vld [vmem:[%s1 + $0x178] sm:$0xf]
  %v139 = vld [vmem:[%s1 + $0x17c] sm:$0xf]
  %v140 = vld [vmem:[%s1 + $0x180] sm:$0xf]
  %v141 = vld [vmem:[%s1 + $0x184] sm:$0xf]
  %v142 = vld [vmem:[%s1 + $0x188] sm:$0xf]
  %v143 = vld [vmem:[%s1 + $0x18c] sm:$0xf]
  %v144 = vld [vmem:[%s1 + $0x190] sm:$0xf]
  %v145 = vld [vmem:[%s1 + $0x194] sm:$0xf]
  %v146 = vld [vmem:[%s1 + $0x198] sm:$0xf]
  %v147 = vld [vmem:[%s1 + $0x19c] sm:$0xf]
  %v148 = vld [vmem:[%s1 + $0x1a0] sm:$0xf]
  %v149 = vld [vmem:[%s1 + $0x1a4] sm:$0xf]
  %v150 = vld [vmem:[%s1 + $0x1a8] sm:$0xf]
  %v151 = vld [vmem:[%s1 + $0x1ac] sm:$0xf]
  %v152 = vld [vmem:[%s1 + $0x1b0] sm:$0xf]
  %v153 = vld [vmem:[%s1 + $0x1b4] sm:$0xf]
  %v154 = vld [vmem:[%s1 + $0x1b8] sm:$0xf]
  %v155 = vld [vmem:[%s1 + $0x1bc] sm:$0xf]
  %v156 = vld [vmem:[%s1 + $0x1c0] sm:$0xf]
  %v157 = vld [vmem:[%s1 + $0x1c4] sm:$0xf]
  %v158 = vld [vmem:[%s1 + $0x1c8] sm:$0xf]
  %v159 = vld [vmem:[%s1 + $0x1cc] sm:$0xf]
  %v160 = vld [vmem:[%s1 + $0x1d0] sm:$0xf]
  %v161 = vld [vmem:[%s1 + $0x1d4] sm:$0xf]
  %v162 = vld [vmem:[%s1 + $0x1d8] sm:$0xf]
  %v163 = vld [vmem:[%s1 + $0x1dc] sm:$0xf]
  %v164 = vld [vmem:[%s1 + $0x1e0] sm:$0xf]
  %v165 = vld [vmem:[%s1 + $0x1e4] sm:$0xf]
  %v166 = vld [vmem:[%s1 + $0x1e8] sm:$0xf]
  %v167 = vld [vmem:[%s1 + $0x1ec] sm:$0xf]
  %v168 = vld [vmem:[%s1 + $0x1f0] sm:$0xf]
  %v169 = vld [vmem:[%s1 + $0x1f4] sm:$0xf]
  %v170 = vld [vmem:[%s1 + $0x1f8] sm:$0xf]
  %v171 = vld [vmem:[%s1 + $0x1fc] sm:$0xf]
  %v172 = vld [vmem:[%s1 + $0x200] sm:$0xf]
  %v173 = vld [vmem:[%s1 + $0x204] sm:$0xf]
  %v174 = vld [vmem:[%s1 + $0x208] sm:$0xf]
  %v175 = vld [vmem:[%s1 + $0x20c] sm:$0xf]
  %v176 = vld [vmem:[%s1 + $0x210] sm:$0xf]
  %v177 = vld [vmem:[%s1 + $0x214] sm:$0xf]
  %v178 = vld [vmem:[%s1 + $0x218] sm:$0xf]
  %v179 = vld [vmem:[%s1 + $0x21c] sm:$0xf]
  %v180 = vld [vmem:[%s1 + $0x220] sm:$0xf]
  %v181 = vld [vmem:[%s1 + $0x224] sm:$0xf]
  %v182 = vld [vmem:[%s1 + $0x228] sm:$0xf]
  %v183 = vld [vmem:[%s1 + $0x22c] sm:$0xf]
  %v184 = vld [vmem:[%s1 + $0x230] sm:$0xf]
  %v185 = vld [vmem:[%s1 + $0x234] sm:$0xf]
  %v186 = vld [vmem:[%s1 + $0x238] sm:$0xf]
  %v187 = vld [vmem:[%s1 + $0x23c] sm:$0xf]
  %v188 = vld [vmem:[%s1 + $0x240] sm:$0xf]
  %v189 = vld [vmem:[%s1 + $0x244] sm:$0xf]
  %v190 = vld [vmem:[%s1 + $0x248] sm:$0xf]
  %v191 = vld [vmem:[%s1 + $0x24c] sm:$0xf]
  %v192 = vld [vmem:[%s1 + $0x250] sm:$0xf]
  %v193 = vld [vmem:[%s1 + $0x254] sm:$0xf]
  %v194 = vld [vmem:[%s1 + $0x258] sm:$0xf]
  %v195 = vld [vmem:[%s1 + $0x25c] sm:$0xf]
  %v196 = vld [vmem:[%s1 + $0x260] sm:$0xf]
  %v197 = vld [vmem:[%s1 + $0x264] sm:$0xf]
  %v198 = vld [vmem:[%s1 + $0x268] sm:$0xf]
  %v199 = vld [vmem:[%s1 + $0x26c] sm:$0xf]
  %v200 = vld [vmem:[%s1 + $0x270] sm:$0xf]
  %v201 = vld [vmem:[%s1 + $0x274] sm:$0xf]
  %v202 = vld [vmem:[%s1 + $0x278] sm:$0xf]
  %v203 = vld [vmem:[%s1 + $0x27c] sm:$0xf]
  %v204 = vld [vmem:[%s1 + $0x280] sm:$0xf]
  %v205 = vld [vmem:[%s1 + $0x284] sm:$0xf]
  %v206 = vld [vmem:[%s1 + $0x288] sm:$0xf]
  %v207 = vld [vmem:[%s1 + $0x28c] sm:$0xf]
  %v208 = vld [vmem:[%s1 + $0x290] sm:$0xf]
  %v209 = vld [vmem:[%s1 + $0x294] sm:$0xf]
  %v210 = vld [vmem:[%s1 + $0x298] sm:$0xf]
  %v211 = vld [vmem:[%s1 + $0x29c] sm:$0xf]
  %v212 = vld [vmem:[%s1 + $0x2a0] sm:$0xf]
  %v213 = vld [vmem:[%s1 + $0x2a4] sm:$0xf]
  %v214 = vld [vmem:[%s1 + $0x2a8] sm:$0xf]
  %v215 = vld [vmem:[%s1 + $0x2ac] sm:$0xf]
  %v216 = vld [vmem:[%s1 + $0x2b0] sm:$0xf]
  %v217 = vld [vmem:[%s1 + $0x2b4] sm:$0xf]
  %v218 = vld [vmem:[%s1 + $0x2b8] sm:$0xf]
  %v219 = vld [vmem:[%s1 + $0x2bc] sm:$0xf]
  %v220 = vld [vmem:[%s1 + $0x2c0] sm:$0xf]
  %v221 = vld [vmem:[%s1 + $0x2c4] sm:$0xf]
  %v222 = vld [vmem:[%s1 + $0x2c8] sm:$0xf]
  %v223 = vld [vmem:[%s1 + $0x2cc] sm:$0xf]
  %v224 = vld [vmem:[%s1 + $0x2d0] sm:$0xf]
  %v225 = vld [vmem:[%s1 + $0x2d4] sm:$0xf]
  %v226 = vld [vmem:[%s1 + $0x2d8] sm:$0xf]
  %v227 = vld [vmem:[%s1 + $0x2dc] sm:$0xf]
  %v228 = vld [vmem:[%s1 + $0x2e0] sm:$0xf]
  %v229 = vld [vmem:[%s1 + $0x2e4] sm:$0xf]
  %v230 = vld [vmem:[%s1 + $0x2e8] sm:$0xf]
  %v231 = vld [vmem:[%s1 + $0x2ec] sm:$0xf]
  %v232 = vld [vmem:[%s1 + $0x2f0] sm:$0xf]
  %v233 = vld [vmem:[%s1 + $0x2f4] sm:$0xf]
  %v234 = vld [vmem:[%s1 + $0x2f8] sm:$0xf]
  %v235 = vld [vmem:[%s1 + $0x2fc] sm:$0xf]
  %v236 = vld [vmem:[%s1 + $0x300] sm:$0xf]
  %v237 = vld [vmem:[%s1 + $0x304] sm:$0xf]
  %v238 = vld [vmem:[%s1 + $0x308] sm:$0xf]
  %v239 = vld [vmem:[%s1 + $0x30c] sm:$0xf]
  %v240 = vld [vmem:[%s1 + $0x310] sm:$0xf]
  %v241 = vld [vmem:[%s1 + $0x314] sm:$0xf]
  %v242 = vld [vmem:[%s1 + $0x318] sm:$0xf]
  %v243 = vld [vmem:[%s1 + $0x31c] sm:$0xf]
  %v244 = vld [vmem:[%s1 + $0x320] sm:$0xf]
  %v245 = vld [vmem:[%s1 + $0x324] sm:$0xf]
  %v246 = vld [vmem:[%s1 + $0x328] sm:$0xf]
  %v247 = vld [vmem:[%s1 + $0x32c] sm:$0xf]
  %v248 = vld [vmem:[%s1 + $0x330] sm:$0xf]
  %v249 = vld [vmem:[%s1 + $0x334] sm:$0xf]
  %v250 = vld [vmem:[%s1 + $0x338] sm:$0xf]
  %v251 = vld [vmem:[%s1 + $0x33c] sm:$0xf]
  %v252 = vld [vmem:[%s1 + $0x340] sm:$0xf]
  %v253 = vld [vmem:[%s1 + $0x344] sm:$0xf]
  %v254 = vld [vmem:[%s1 + $0x348] sm:$0xf]
  %v255 = vld [vmem:[%s1 + $0x34c] sm:$0xf]
  %v256 = vld [vmem:[%s1 + $0x350] sm:$0xf]
  %v257 = vld [vmem:[%s1 + $0x354] sm:$0xf]
  %v258 = vld [vmem:[%s1 + $0x358] sm:$0xf]
  %v259 = vld [vmem:[%s1 + $0x35c] sm:$0xf]
  %v260 = vld [vmem:[%s1 + $0x360] sm:$0xf]
  %v261 = vld [vmem:[%s1 + $0x364] sm:$0xf]
  %v262 = vld [vmem:[%s1 + $0x368] sm:$0xf]
  %v263 = vld [vmem:[%s1 + $0x36c] sm:$0xf]
  %v264 = vld [vmem:[%s1 + $0x370] sm:$0xf]
  %v265 = vld [vmem:[%s1 + $0x374] sm:$0xf]
  %v266 = vld [vmem:[%s1 + $0x378] sm:$0xf]
  %v267 = vld [vmem:[%s1 + $0x37c] sm:$0xf]
  %v268 = vld [vmem:[%s1 + $0x380] sm:$0xf]
  %v269 = vld [vmem:[%s1 + $0x384] sm:$0xf]
  %v270 = vld [vmem:[%s1 + $0x388] sm:$0xf]
  %v271 = vld [vmem:[%s1 + $0x38c] sm:$0xf]
  %v272 = vld [vmem:[%s1 + $0x390] sm:$0xf]
  %v273 = vld [vmem:[%s1 + $0x394] sm:$0xf]
  %v274 = vld [vmem:[%s1 + $0x398] sm:$0xf]
  %v275 = vld [vmem:[%s1 + $0x39c] sm:$0xf]
  %v276 = vld [vmem:[%s1 + $0x3a0] sm:$0xf]
  %v277 = vld [vmem:[%s1 + $0x3a4] sm:$0xf]
  %v278 = vld [vmem:[%s1 + $0x3a8] sm:$0xf]
  %v279 = vld [vmem:[%s1 + $0x3ac] sm:$0xf]
  %v280 = vld [vmem:[%s1 + $0x3b0] sm:$0xf]
  %v281 = vld [vmem:[%s1 + $0x3b4] sm:$0xf]
  %v282 = vld [vmem:[%s1 + $0x3b8] sm:$0xf]
  %v283 = vld [vmem:[%s1 + $0x3bc] sm:$0xf]
  %v284 = vld [vmem:[%s1 + $0x3c0] sm:$0xf]
  %v285 = vld [vmem:[%s1 + $0x3c4] sm:$0xf]
  %v286 = vld [vmem:[%s1 + $0x3c8] sm:$0xf]
  %v287 = vld [vmem:[%s1 + $0x3cc] sm:$0xf]
  %v288 = vld [vmem:[%s1 + $0x3d0] sm:$0xf]
  %v289 = vld [vmem:[%s1 + $0x3d4] sm:$0xf]
  %v290 = vld [vmem:[%s1 + $0x3d8] sm:$0xf]
  %v291 = vld [vmem:[%s1 + $0x3dc] sm:$0xf]
  %v292 = vld [vmem:[%s1 + $0x3e0] sm:$0xf]
  %v293 = vld [vmem:[%s1 + $0x3e4] sm:$0xf]
  %v294 = vld [vmem:[%s1 + $0x3e8] sm:$0xf]
  %v295 = vld [vmem:[%s1 + $0x3ec] sm:$0xf]
  %v296 = vld [vmem:[%s1 + $0x3f0] sm:$0xf]
  %v297 = vld [vmem:[%s1 + $0x3f4] sm:$0xf]
  %v298 = vld [vmem:[%s1 + $0x3f8] sm:$0xf]
  %v299 = vld [vmem:[%s1 + $0x3fc] sm:$0xf]
  %v300 = vld [vmem:[%s1 + $0x400] sm:$0xf]
  %v301 = vld [vmem:[%s1 + $0x404] sm:$0xf]
  %v302 = vld [vmem:[%s1 + $0x408] sm:$0xf]
  %v303 = vld [vmem:[%s1 + $0x40c] sm:$0xf]
  %v304 = vld [vmem:[%s1 + $0x410] sm:$0xf]
  %v305 = vld [vmem:[%s1 + $0x414] sm:$0xf]
  %v306 = vld [vmem:[%s1 + $0x418] sm:$0xf]
  %v307 = vld [vmem:[%s1 + $0x41c] sm:$0xf]
  %v308 = vld [vmem:[%s1 + $0x420] sm:$0xf]
  %v309 = vld [vmem:[%s1 + $0x424] sm:$0xf]
  %v310 = vld [vmem:[%s1 + $0x428] sm:$0xf]
  %v311 = vld [vmem:[%s1 + $0x42c] sm:$0xf]
  %v312 = vld [vmem:[%s1 + $0x430] sm:$0xf]
  %v313 = vld [vmem:[%s1 + $0x434] sm:$0xf]
  %v314 = vld [vmem:[%s1 + $0x438] sm:$0xf]
  %v315 = vld [vmem:[%s1 + $0x43c] sm:$0xf]
  %v316 = vld [vmem:[%s1 + $0x440] sm:$0xf]
  %v317 = vld [vmem:[%s1 + $0x444] sm:$0xf]
  %v318 = vld [vmem:[%s1 + $0x448] sm:$0xf]
  %v319 = vld [vmem:[%s1 + $0x44c] sm:$0xf]
  %v320 = vld [vmem:[%s1 + $0x450] sm:$0xf]
  %v321 = vld [vmem:[%s1 + $0x454] sm:$0xf]
  %v322 = vld [vmem:[%s1 + $0x458] sm:$0xf]
  %v323 = vld [vmem:[%s1 + $0x45c] sm:$0xf]
  %v324 = vld [vmem:[%s1 + $0x460] sm:$0xf]
  %v325 = vld [vmem:[%s1 + $0x464] sm:$0xf]
  %v326 = vld [vmem:[%s1 + $0x468] sm:$0xf]
  %v327 = vld [vmem:[%s1 + $0x46c] sm:$0xf]
  %v328 = vld [vmem:[%s1 + $0x470] sm:$0xf]
  %v329 = vld [vmem:[%s1 + $0x474] sm:$0xf]
  %v330 = vld [vmem:[%s1 + $0x478] sm:$0xf]
  %v331 = vld [vmem:[%s1 + $0x47c] sm:$0xf]
  %v341 = vunpack.c.l.b16 %v35
  %v342 = vunpack.c.h.b16 %v35
  %v343 = vunpack.c.l.b16 %v36
  %v344 = vunpack.c.h.b16 %v36
  %v345 = vunpack.c.l.b16 %v37
  %v346 = vunpack.c.h.b16 %v37
  %v347 = vunpack.c.l.b16 %v38
  %v348 = vunpack.c.h.b16 %v38
  %v349 = vunpack.c.l.b16 %v39
  %v350 = vunpack.c.h.b16 %v39
  %v351 = vunpack.c.l.b16 %v40
  %v352 = vunpack.c.h.b16 %v40
  %v353 = vunpack.c.l.b16 %v41
  %v354 = vunpack.c.h.b16 %v41
  %v355 = vunpack.c.l.b16 %v42
  %v356 = vunpack.c.h.b16 %v42
  %v357 = vunpack.c.l.b16 %v43
  %v358 = vunpack.c.h.b16 %v43
  %v359 = vpack.c.b16 %v341, %v341
  %v360 = vpack.c.b16 %v342, %v342
  %v361 = vpack.c.b16 %v343, %v343
  %v362 = vpack.c.b16 %v344, %v344
  %v363 = vpack.c.b16 %v345, %v345
  %v364 = vpack.c.b16 %v346, %v346
  %v365 = vpack.c.b16 %v347, %v347
  %v366 = vpack.c.b16 %v348, %v348
  %v367 = vpack.c.b16 %v349, %v349
  %v368 = vpack.c.b16 %v350, %v350
  %v369 = vpack.c.b16 %v351, %v351
  %v370 = vpack.c.b16 %v352, %v352
  %v371 = vpack.c.b16 %v353, %v353
  %v372 = vpack.c.b16 %v354, %v354
  %v373 = vpack.c.b16 %v355, %v355
  %v374 = vpack.c.b16 %v356, %v356
  %v375 = vpack.c.b16 %v357, %v357
  %v376 = vpack.c.b16 %v358, %v358
  %v683 = vunpack.c.l.b16 %v44
  %v684 = vunpack.c.l.b16 %v45
  %v685 = vunpack.c.l.b16 %v46
  %v686 = vunpack.c.l.b16 %v47
  %v687 = vunpack.c.l.b16 %v48
  %v688 = vunpack.c.l.b16 %v49
  %v689 = vunpack.c.l.b16 %v50
  %v690 = vunpack.c.l.b16 %v51
  %v691 = vunpack.c.l.b16 %v52
  %v692 = vunpack.c.l.b16 %v53
  %v693 = vunpack.c.l.b16 %v54
  %v694 = vunpack.c.l.b16 %v55
  %v695 = vunpack.c.l.b16 %v56
  %v696 = vunpack.c.l.b16 %v57
  %v697 = vunpack.c.l.b16 %v58
  %v698 = vunpack.c.l.b16 %v59
  %v699 = vunpack.c.l.b16 %v60
  %v700 = vunpack.c.l.b16 %v61
  %v701 = vunpack.c.l.b16 %v62
  %v702 = vunpack.c.l.b16 %v63
  %v703 = vunpack.c.l.b16 %v64
  %v704 = vunpack.c.l.b16 %v65
  %v705 = vunpack.c.l.b16 %v66
  %v706 = vunpack.c.l.b16 %v67
  %v707 = vunpack.c.l.b16 %v68
  %v708 = vunpack.c.l.b16 %v69
  %v709 = vunpack.c.l.b16 %v70
  %v710 = vunpack.c.l.b16 %v71
  %v711 = vunpack.c.l.b16 %v72
  %v712 = vunpack.c.l.b16 %v73
  %v713 = vunpack.c.l.b16 %v74
  %v714 = vunpack.c.l.b16 %v75
  %v715 = vunpack.c.l.b16 %v76
  %v716 = vunpack.c.l.b16 %v77
  %v717 = vunpack.c.l.b16 %v78
  %v718 = vunpack.c.l.b16 %v79
  %v719 = vunpack.c.l.b16 %v80
  %v720 = vunpack.c.l.b16 %v81
  %v721 = vunpack.c.l.b16 %v82
  %v722 = vunpack.c.l.b16 %v83
  %v723 = vunpack.c.l.b16 %v84
  %v724 = vunpack.c.l.b16 %v85
  %v725 = vunpack.c.l.b16 %v86
  %v726 = vunpack.c.l.b16 %v87
  %v727 = vunpack.c.l.b16 %v88
  %v728 = vunpack.c.l.b16 %v89
  %v729 = vunpack.c.l.b16 %v90
  %v730 = vunpack.c.l.b16 %v91
  %v731 = vunpack.c.l.b16 %v92
  %v732 = vunpack.c.l.b16 %v93
  %v733 = vunpack.c.l.b16 %v94
  %v734 = vunpack.c.l.b16 %v95
  %v735 = vunpack.c.l.b16 %v96
  %v736 = vunpack.c.l.b16 %v97
  %v737 = vunpack.c.l.b16 %v98
  %v738 = vunpack.c.l.b16 %v99
  %v739 = vunpack.c.l.b16 %v100
  %v740 = vunpack.c.l.b16 %v101
  %v741 = vunpack.c.l.b16 %v102
  %v742 = vunpack.c.l.b16 %v103
  %v743 = vunpack.c.l.b16 %v104
  %v744 = vunpack.c.l.b16 %v105
  %v745 = vunpack.c.l.b16 %v106
  %v746 = vunpack.c.l.b16 %v107
  %v747 = vunpack.c.l.b16 %v108
  %v748 = vunpack.c.l.b16 %v109
  %v749 = vunpack.c.l.b16 %v110
  %v750 = vunpack.c.l.b16 %v111
  %v751 = vunpack.c.l.b16 %v112
  %v752 = vunpack.c.l.b16 %v113
  %v753 = vunpack.c.l.b16 %v114
  %v754 = vunpack.c.l.b16 %v115
  %v755 = vunpack.c.l.b16 %v116
  %v756 = vunpack.c.l.b16 %v117
  %v757 = vunpack.c.l.b16 %v118
  %v758 = vunpack.c.l.b16 %v119
  %v759 = vunpack.c.l.b16 %v120
  %v760 = vunpack.c.l.b16 %v121
  %v761 = vunpack.c.l.b16 %v122
  %v762 = vunpack.c.l.b16 %v123
  %v763 = vunpack.c.l.b16 %v124
  %v764 = vunpack.c.l.b16 %v125
  %v765 = vunpack.c.l.b16 %v126
  %v766 = vunpack.c.l.b16 %v127
  %v767 = vunpack.c.l.b16 %v128
  %v768 = vunpack.c.l.b16 %v129
  %v769 = vunpack.c.l.b16 %v130
  %v770 = vunpack.c.l.b16 %v131
  %v771 = vunpack.c.l.b16 %v132
  %v772 = vunpack.c.l.b16 %v133
  %v773 = vunpack.c.l.b16 %v134
  %v774 = vunpack.c.l.b16 %v135
  %v775 = vunpack.c.l.b16 %v136
  %v776 = vunpack.c.l.b16 %v137
  %v777 = vunpack.c.l.b16 %v138
  %v778 = vunpack.c.l.b16 %v139
  %v779 = vunpack.c.l.b16 %v140
  %v780 = vunpack.c.l.b16 %v141
  %v781 = vunpack.c.l.b16 %v142
  %v782 = vunpack.c.l.b16 %v143
  %v783 = vunpack.c.l.b16 %v144
  %v784 = vunpack.c.l.b16 %v145
  %v785 = vunpack.c.l.b16 %v146
  %v786 = vunpack.c.l.b16 %v147
  %v787 = vunpack.c.l.b16 %v148
  %v788 = vunpack.c.l.b16 %v149
  %v789 = vunpack.c.l.b16 %v150
  %v790 = vunpack.c.l.b16 %v151
  %v791 = vunpack.c.l.b16 %v152
  %v792 = vunpack.c.l.b16 %v153
  %v793 = vunpack.c.l.b16 %v154
  %v794 = vunpack.c.l.b16 %v155
  %v795 = vunpack.c.l.b16 %v156
  %v796 = vunpack.c.l.b16 %v157
  %v797 = vunpack.c.l.b16 %v158
  %v798 = vunpack.c.l.b16 %v159
  %v799 = vunpack.c.l.b16 %v160
  %v800 = vunpack.c.l.b16 %v161
  %v801 = vunpack.c.l.b16 %v162
  %v802 = vunpack.c.l.b16 %v163
  %v803 = vunpack.c.l.b16 %v164
  %v804 = vunpack.c.l.b16 %v165
  %v805 = vunpack.c.l.b16 %v166
  %v806 = vunpack.c.l.b16 %v167
  %v807 = vunpack.c.l.b16 %v168
  %v808 = vunpack.c.l.b16 %v169
  %v809 = vunpack.c.l.b16 %v170
  %v810 = vunpack.c.l.b16 %v171
  %v811 = vunpack.c.l.b16 %v172
  %v812 = vunpack.c.l.b16 %v173
  %v813 = vunpack.c.l.b16 %v174
  %v814 = vunpack.c.l.b16 %v175
  %v815 = vunpack.c.l.b16 %v176
  %v816 = vunpack.c.l.b16 %v177
  %v817 = vunpack.c.l.b16 %v178
  %v818 = vunpack.c.l.b16 %v179
  %v819 = vunpack.c.l.b16 %v180
  %v820 = vunpack.c.l.b16 %v181
  %v821 = vunpack.c.l.b16 %v182
  %v822 = vunpack.c.l.b16 %v183
  %v823 = vunpack.c.l.b16 %v184
  %v824 = vunpack.c.l.b16 %v185
  %v825 = vunpack.c.l.b16 %v186
  %v826 = vunpack.c.l.b16 %v187
  %v827 = vunpack.c.l.b16 %v188
  %v828 = vunpack.c.l.b16 %v189
  %v829 = vunpack.c.l.b16 %v190
  %v830 = vunpack.c.l.b16 %v191
  %v831 = vunpack.c.l.b16 %v192
  %v832 = vunpack.c.l.b16 %v193
  %v833 = vunpack.c.l.b16 %v194
  %v834 = vunpack.c.l.b16 %v195
  %v835 = vunpack.c.l.b16 %v196
  %v836 = vunpack.c.l.b16 %v197
  %v837 = vunpack.c.l.b16 %v198
  %v838 = vunpack.c.l.b16 %v199
  %v839 = vunpack.c.l.b16 %v200
  %v840 = vunpack.c.l.b16 %v201
  %v841 = vunpack.c.l.b16 %v202
  %v842 = vunpack.c.l.b16 %v203
  %v843 = vunpack.c.l.b16 %v204
  %v844 = vunpack.c.l.b16 %v205
  %v845 = vunpack.c.l.b16 %v206
  %v846 = vunpack.c.l.b16 %v207
  %v847 = vunpack.c.l.b16 %v208
  %v848 = vunpack.c.l.b16 %v209
  %v849 = vunpack.c.l.b16 %v210
  %v850 = vunpack.c.l.b16 %v211
  %v851 = vunpack.c.l.b16 %v212
  %v852 = vunpack.c.l.b16 %v213
  %v853 = vunpack.c.l.b16 %v214
  %v854 = vunpack.c.l.b16 %v215
  %v855 = vunpack.c.l.b16 %v216
  %v856 = vunpack.c.l.b16 %v217
  %v857 = vunpack.c.l.b16 %v218
  %v858 = vunpack.c.l.b16 %v219
  %v859 = vunpack.c.l.b16 %v220
  %v860 = vunpack.c.l.b16 %v221
  %v861 = vunpack.c.l.b16 %v222
  %v862 = vunpack.c.l.b16 %v223
  %v863 = vunpack.c.l.b16 %v224
  %v864 = vunpack.c.l.b16 %v225
  %v865 = vunpack.c.l.b16 %v226
  %v866 = vunpack.c.l.b16 %v227
  %v867 = vunpack.c.l.b16 %v228
  %v868 = vunpack.c.l.b16 %v229
  %v869 = vunpack.c.l.b16 %v230
  %v870 = vunpack.c.l.b16 %v231
  %v871 = vunpack.c.l.b16 %v232
  %v872 = vunpack.c.l.b16 %v233
  %v873 = vunpack.c.l.b16 %v234
  %v874 = vunpack.c.l.b16 %v235
  %v875 = vunpack.c.l.b16 %v236
  %v876 = vunpack.c.l.b16 %v237
  %v877 = vunpack.c.l.b16 %v238
  %v878 = vunpack.c.l.b16 %v239
  %v879 = vunpack.c.l.b16 %v240
  %v880 = vunpack.c.l.b16 %v241
  %v881 = vunpack.c.l.b16 %v242
  %v882 = vunpack.c.l.b16 %v243
  %v883 = vunpack.c.l.b16 %v244
  %v884 = vunpack.c.l.b16 %v245
  %v885 = vunpack.c.l.b16 %v246
  %v886 = vunpack.c.l.b16 %v247
  %v887 = vunpack.c.l.b16 %v248
  %v888 = vunpack.c.l.b16 %v249
  %v889 = vunpack.c.l.b16 %v250
  %v890 = vunpack.c.l.b16 %v251
  %v891 = vunpack.c.l.b16 %v252
  %v892 = vunpack.c.l.b16 %v253
  %v893 = vunpack.c.l.b16 %v254
  %v894 = vunpack.c.l.b16 %v255
  %v895 = vunpack.c.l.b16 %v256
  %v896 = vunpack.c.l.b16 %v257
  %v897 = vunpack.c.l.b16 %v258
  %v898 = vunpack.c.l.b16 %v259
  %v899 = vunpack.c.l.b16 %v260
  %v900 = vunpack.c.l.b16 %v261
  %v901 = vunpack.c.l.b16 %v262
  %v902 = vunpack.c.l.b16 %v263
  %v903 = vunpack.c.l.b16 %v264
  %v904 = vunpack.c.l.b16 %v265
  %v905 = vunpack.c.l.b16 %v266
  %v906 = vunpack.c.l.b16 %v267
  %v907 = vunpack.c.l.b16 %v268
  %v908 = vunpack.c.l.b16 %v269
  %v909 = vunpack.c.l.b16 %v270
  %v910 = vunpack.c.l.b16 %v271
  %v911 = vunpack.c.l.b16 %v272
  %v912 = vunpack.c.l.b16 %v273
  %v913 = vunpack.c.l.b16 %v274
  %v914 = vunpack.c.l.b16 %v275
  %v915 = vunpack.c.l.b16 %v276
  %v916 = vunpack.c.l.b16 %v277
  %v917 = vunpack.c.l.b16 %v278
  %v918 = vunpack.c.l.b16 %v279
  %v919 = vunpack.c.l.b16 %v280
  %v920 = vunpack.c.l.b16 %v281
  %v921 = vunpack.c.l.b16 %v282
  %v922 = vunpack.c.l.b16 %v283
  %v923 = vunpack.c.l.b16 %v284
  %v924 = vunpack.c.l.b16 %v285
  %v925 = vunpack.c.l.b16 %v286
  %v926 = vunpack.c.l.b16 %v287
  %v927 = vunpack.c.l.b16 %v288
  %v928 = vunpack.c.l.b16 %v289
  %v929 = vunpack.c.l.b16 %v290
  %v930 = vunpack.c.l.b16 %v291
  %v931 = vunpack.c.l.b16 %v292
  %v932 = vunpack.c.l.b16 %v293
  %v933 = vunpack.c.l.b16 %v294
  %v934 = vunpack.c.l.b16 %v295
  %v935 = vunpack.c.l.b16 %v296
  %v936 = vunpack.c.l.b16 %v297
  %v937 = vunpack.c.l.b16 %v298
  %v938 = vunpack.c.l.b16 %v299
  %v939 = vunpack.c.l.b16 %v300
  %v940 = vunpack.c.l.b16 %v301
  %v941 = vunpack.c.l.b16 %v302
  %v942 = vunpack.c.l.b16 %v303
  %v943 = vunpack.c.l.b16 %v304
  %v944 = vunpack.c.l.b16 %v305
  %v945 = vunpack.c.l.b16 %v306
  %v946 = vunpack.c.l.b16 %v307
  %v947 = vunpack.c.l.b16 %v308
  %v948 = vunpack.c.l.b16 %v309
  %v949 = vunpack.c.l.b16 %v310
  %v950 = vunpack.c.l.b16 %v311
  %v951 = vunpack.c.l.b16 %v312
  %v952 = vunpack.c.l.b16 %v313
  %v953 = vunpack.c.l.b16 %v314
  %v954 = vunpack.c.l.b16 %v315
  %v955 = vunpack.c.l.b16 %v316
  %v956 = vunpack.c.l.b16 %v317
  %v957 = vunpack.c.l.b16 %v318
  %v958 = vunpack.c.l.b16 %v319
  %v959 = vunpack.c.l.b16 %v320
  %v960 = vunpack.c.l.b16 %v321
  %v961 = vunpack.c.l.b16 %v322
  %v962 = vunpack.c.l.b16 %v323
  %v963 = vunpack.c.l.b16 %v324
  %v964 = vunpack.c.l.b16 %v325
  %v965 = vunpack.c.l.b16 %v326
  %v966 = vunpack.c.l.b16 %v327
  %v967 = vunpack.c.l.b16 %v328
  %v968 = vunpack.c.l.b16 %v329
  %v969 = vunpack.c.l.b16 %v330
  %v970 = vunpack.c.l.b16 %v331
  %v971 = vpack.c.b16 %v684, %v683
  %v972 = vpack.c.b16 %v686, %v685
  %v973 = vpack.c.b16 %v688, %v687
  %v974 = vpack.c.b16 %v690, %v689
  %v975 = vpack.c.b16 %v692, %v691
  %v976 = vpack.c.b16 %v694, %v693
  %v977 = vpack.c.b16 %v696, %v695
  %v978 = vpack.c.b16 %v698, %v697
  %v979 = vpack.c.b16 %v700, %v699
  %v980 = vpack.c.b16 %v702, %v701
  %v981 = vpack.c.b16 %v704, %v703
  %v982 = vpack.c.b16 %v706, %v705
  %v983 = vpack.c.b16 %v708, %v707
  %v984 = vpack.c.b16 %v710, %v709
  %v985 = vpack.c.b16 %v712, %v711
  %v986 = vpack.c.b16 %v714, %v713
  %v987 = vpack.c.b16 %v716, %v715
  %v988 = vpack.c.b16 %v718, %v717
  %v989 = vpack.c.b16 %v720, %v719
  %v990 = vpack.c.b16 %v722, %v721
  %v991 = vpack.c.b16 %v724, %v723
  %v992 = vpack.c.b16 %v726, %v725
  %v993 = vpack.c.b16 %v728, %v727
  %v994 = vpack.c.b16 %v730, %v729
  %v995 = vpack.c.b16 %v732, %v731
  %v996 = vpack.c.b16 %v734, %v733
  %v997 = vpack.c.b16 %v736, %v735
  %v998 = vpack.c.b16 %v738, %v737
  %v999 = vpack.c.b16 %v740, %v739
  %v1000 = vpack.c.b16 %v742, %v741
  %v1001 = vpack.c.b16 %v744, %v743
  %v1002 = vpack.c.b16 %v746, %v745
  %v1003 = vpack.c.b16 %v748, %v747
  %v1004 = vpack.c.b16 %v750, %v749
  %v1005 = vpack.c.b16 %v752, %v751
  %v1006 = vpack.c.b16 %v754, %v753
  %v1007 = vpack.c.b16 %v756, %v755
  %v1008 = vpack.c.b16 %v758, %v757
  %v1009 = vpack.c.b16 %v760, %v759
  %v1010 = vpack.c.b16 %v762, %v761
  %v1011 = vpack.c.b16 %v764, %v763
  %v1012 = vpack.c.b16 %v766, %v765
  %v1013 = vpack.c.b16 %v768, %v767
  %v1014 = vpack.c.b16 %v770, %v769
  %v1015 = vpack.c.b16 %v772, %v771
  %v1016 = vpack.c.b16 %v774, %v773
  %v1017 = vpack.c.b16 %v776, %v775
  %v1018 = vpack.c.b16 %v778, %v777
  %v1019 = vpack.c.b16 %v780, %v779
  %v1020 = vpack.c.b16 %v782, %v781
  %v1021 = vpack.c.b16 %v784, %v783
  %v1022 = vpack.c.b16 %v786, %v785
  %v1023 = vpack.c.b16 %v788, %v787
  %v1024 = vpack.c.b16 %v790, %v789
  %v1025 = vpack.c.b16 %v792, %v791
  %v1026 = vpack.c.b16 %v794, %v793
  %v1027 = vpack.c.b16 %v796, %v795
  %v1028 = vpack.c.b16 %v798, %v797
  %v1029 = vpack.c.b16 %v800, %v799
  %v1030 = vpack.c.b16 %v802, %v801
  %v1031 = vpack.c.b16 %v804, %v803
  %v1032 = vpack.c.b16 %v806, %v805
  %v1033 = vpack.c.b16 %v808, %v807
  %v1034 = vpack.c.b16 %v810, %v809
  %v1035 = vpack.c.b16 %v812, %v811
  %v1036 = vpack.c.b16 %v814, %v813
  %v1037 = vpack.c.b16 %v816, %v815
  %v1038 = vpack.c.b16 %v818, %v817
  %v1039 = vpack.c.b16 %v820, %v819
  %v1040 = vpack.c.b16 %v822, %v821
  %v1041 = vpack.c.b16 %v824, %v823
  %v1042 = vpack.c.b16 %v826, %v825
  %v1043 = vpack.c.b16 %v828, %v827
  %v1044 = vpack.c.b16 %v830, %v829
  %v1045 = vpack.c.b16 %v832, %v831
  %v1046 = vpack.c.b16 %v834, %v833
  %v1047 = vpack.c.b16 %v836, %v835
  %v1048 = vpack.c.b16 %v838, %v837
  %v1049 = vpack.c.b16 %v840, %v839
  %v1050 = vpack.c.b16 %v842, %v841
  %v1051 = vpack.c.b16 %v844, %v843
  %v1052 = vpack.c.b16 %v846, %v845
  %v1053 = vpack.c.b16 %v848, %v847
  %v1054 = vpack.c.b16 %v850, %v849
  %v1055 = vpack.c.b16 %v852, %v851
  %v1056 = vpack.c.b16 %v854, %v853
  %v1057 = vpack.c.b16 %v856, %v855
  %v1058 = vpack.c.b16 %v858, %v857
  %v1059 = vpack.c.b16 %v860, %v859
  %v1060 = vpack.c.b16 %v862, %v861
  %v1061 = vpack.c.b16 %v864, %v863
  %v1062 = vpack.c.b16 %v866, %v865
  %v1063 = vpack.c.b16 %v868, %v867
  %v1064 = vpack.c.b16 %v870, %v869
  %v1065 = vpack.c.b16 %v872, %v871
  %v1066 = vpack.c.b16 %v874, %v873
  %v1067 = vpack.c.b16 %v876, %v875
  %v1068 = vpack.c.b16 %v878, %v877
  %v1069 = vpack.c.b16 %v880, %v879
  %v1070 = vpack.c.b16 %v882, %v881
  %v1071 = vpack.c.b16 %v884, %v883
  %v1072 = vpack.c.b16 %v886, %v885
  %v1073 = vpack.c.b16 %v888, %v887
  %v1074 = vpack.c.b16 %v890, %v889
  %v1075 = vpack.c.b16 %v892, %v891
  %v1076 = vpack.c.b16 %v894, %v893
  %v1077 = vpack.c.b16 %v896, %v895
  %v1078 = vpack.c.b16 %v898, %v897
  %v1079 = vpack.c.b16 %v900, %v899
  %v1080 = vpack.c.b16 %v902, %v901
  %v1081 = vpack.c.b16 %v904, %v903
  %v1082 = vpack.c.b16 %v906, %v905
  %v1083 = vpack.c.b16 %v908, %v907
  %v1084 = vpack.c.b16 %v910, %v909
  %v1085 = vpack.c.b16 %v912, %v911
  %v1086 = vpack.c.b16 %v914, %v913
  %v1087 = vpack.c.b16 %v916, %v915
  %v1088 = vpack.c.b16 %v918, %v917
  %v1089 = vpack.c.b16 %v920, %v919
  %v1090 = vpack.c.b16 %v922, %v921
  %v1091 = vpack.c.b16 %v924, %v923
  %v1092 = vpack.c.b16 %v926, %v925
  %v1093 = vpack.c.b16 %v928, %v927
  %v1094 = vpack.c.b16 %v930, %v929
  %v1095 = vpack.c.b16 %v932, %v931
  %v1096 = vpack.c.b16 %v934, %v933
  %v1097 = vpack.c.b16 %v936, %v935
  %v1098 = vpack.c.b16 %v938, %v937
  %v1099 = vpack.c.b16 %v940, %v939
  %v1100 = vpack.c.b16 %v942, %v941
  %v1101 = vpack.c.b16 %v944, %v943
  %v1102 = vpack.c.b16 %v946, %v945
  %v1103 = vpack.c.b16 %v948, %v947
  %v1104 = vpack.c.b16 %v950, %v949
  %v1105 = vpack.c.b16 %v952, %v951
  %v1106 = vpack.c.b16 %v954, %v953
  %v1107 = vpack.c.b16 %v956, %v955
  %v1108 = vpack.c.b16 %v958, %v957
  %v1109 = vpack.c.b16 %v960, %v959
  %v1110 = vpack.c.b16 %v962, %v961
  %v1111 = vpack.c.b16 %v964, %v963
  %v1112 = vpack.c.b16 %v966, %v965
  %v1113 = vpack.c.b16 %v968, %v967
  %v1114 = vpack.c.b16 %v970, %v969
  %1259 = vmatprep.subr.bf16.mxu0 0
  %1260 = vmatpush1.bf16.msra.mxu0 %v971
  %1261 = vmatprep.subr.bf16.mxu0 0
  %1262 = vmatpush1.bf16.msra.mxu0 %v972
  %1263 = vmatprep.subr.bf16.mxu0 0
  %1264 = vmatpush1.bf16.msra.mxu0 %v973
  %1265 = vmatprep.subr.bf16.mxu0 0
  %1266 = vmatpush1.bf16.msra.mxu0 %v974
  %1267 = vmatprep.subr.bf16.mxu0 0
  %1268 = vmatpush1.bf16.msra.mxu0 %v975
  %1269 = vmatprep.subr.bf16.mxu0 0
  %1270 = vmatpush1.bf16.msra.mxu0 %v976
  %1271 = vmatprep.subr.bf16.mxu0 0
  %1272 = vmatpush1.bf16.msra.mxu0 %v977
  %1273 = vmatprep.subr.bf16.mxu0 0
  %1274 = vmatpush1.bf16.msra.mxu0 %v978
  %1275 = vmatprep.subr.bf16.mxu0 0
  %1276 = vmatpush1.bf16.msra.mxu0 %v979
  %1277 = vmatprep.subr.bf16.mxu0 0
  %1278 = vmatpush1.bf16.msra.mxu0 %v980
  %1279 = vmatprep.subr.bf16.mxu0 0
  %1280 = vmatpush1.bf16.msra.mxu0 %v981
  %1281 = vmatprep.subr.bf16.mxu0 0
  %1282 = vmatpush1.bf16.msra.mxu0 %v982
  %1283 = vmatprep.subr.bf16.mxu0 0
  %1284 = vmatpush1.bf16.msra.mxu0 %v983
  %1285 = vmatprep.subr.bf16.mxu0 0
  %1286 = vmatpush1.bf16.msra.mxu0 %v984
  %1287 = vmatprep.subr.bf16.mxu0 0
  %1288 = vmatpush1.bf16.msra.mxu0 %v985
  %1289 = vmatprep.subr.bf16.mxu0 0
  %1290 = vmatpush1.bf16.msra.mxu0 %v986
  %1291 = vmatprep.mubr.bf16.mxu0 %v360
  %1292 = vmatmul.mubr.bf16.gmra.mrb[0].mxu0 %v359
  %v1293 = vpop.f32.mrb[0].mxu0
  %v1294 = vadd.f32 0.0, %v1293
  %v1295 = vpop.f32.mrb[0].mxu0
  %v1296 = vpop.f32.mrb[0].mxu0
  %v1297 = vpop.f32.mrb[0].mxu0
  %1298 = vdwg.mxu0
  %1299 = vmatprep.subr.bf16.mxu0 0
  %1300 = vmatpush1.bf16.msra.mxu0 %v987
  %1301 = vmatprep.subr.bf16.mxu0 0
  %1302 = vmatpush1.bf16.msra.mxu0 %v988
  %1303 = vmatprep.subr.bf16.mxu0 0
  %1304 = vmatpush1.bf16.msra.mxu0 %v989
  %1305 = vmatprep.subr.bf16.mxu0 0
  %1306 = vmatpush1.bf16.msra.mxu0 %v990
  %1307 = vmatprep.subr.bf16.mxu0 0
  %1308 = vmatpush1.bf16.msra.mxu0 %v991
  %1309 = vmatprep.subr.bf16.mxu0 0
  %1310 = vmatpush1.bf16.msra.mxu0 %v992
  %1311 = vmatprep.subr.bf16.mxu0 0
  %1312 = vmatpush1.bf16.msra.mxu0 %v993
  %1313 = vmatprep.subr.bf16.mxu0 0
  %1314 = vmatpush1.bf16.msra.mxu0 %v994
  %1315 = vmatprep.subr.bf16.mxu0 0
  %1316 = vmatpush1.bf16.msra.mxu0 %v995
  %1317 = vmatprep.subr.bf16.mxu0 0
  %1318 = vmatpush1.bf16.msra.mxu0 %v996
  %1319 = vmatprep.subr.bf16.mxu0 0
  %1320 = vmatpush1.bf16.msra.mxu0 %v997
  %1321 = vmatprep.subr.bf16.mxu0 0
  %1322 = vmatpush1.bf16.msra.mxu0 %v998
  %1323 = vmatprep.subr.bf16.mxu0 0
  %1324 = vmatpush1.bf16.msra.mxu0 %v999
  %1325 = vmatprep.subr.bf16.mxu0 0
  %1326 = vmatpush1.bf16.msra.mxu0 %v1000
  %1327 = vmatprep.subr.bf16.mxu0 0
  %1328 = vmatpush1.bf16.msra.mxu0 %v1001
  %1329 = vmatprep.subr.bf16.mxu0 0
  %1330 = vmatpush1.bf16.msra.mxu0 %v1002
  %1331 = vmatprep.mubr.bf16.mxu0 %v362
  %1332 = vmatmul.mubr.bf16.gmra.mrb[0].mxu0 %v361
  %v1333 = vpop.f32.mrb[0].mxu0
  %v1334 = vadd.f32 %v1294, %v1333
  %v1335 = vpop.f32.mrb[0].mxu0
  %v1336 = vpop.f32.mrb[0].mxu0
  %v1337 = vpop.f32.mrb[0].mxu0
  %1338 = vdwg.mxu0
  %1339 = vmatprep.subr.bf16.mxu0 0
  %1340 = vmatpush1.bf16.msra.mxu0 %v1003
  %1341 = vmatprep.subr.bf16.mxu0 0
  %1342 = vmatpush1.bf16.msra.mxu0 %v1004
  %1343 = vmatprep.subr.bf16.mxu0 0
  %1344 = vmatpush1.bf16.msra.mxu0 %v1005
  %1345 = vmatprep.subr.bf16.mxu0 0
  %1346 = vmatpush1.bf16.msra.mxu0 %v1006
  %1347 = vmatprep.subr.bf16.mxu0 0
  %1348 = vmatpush1.bf16.msra.mxu0 %v1007
  %1349 = vmatprep.subr.bf16.mxu0 0
  %1350 = vmatpush1.bf16.msra.mxu0 %v1008
  %1351 = vmatprep.subr.bf16.mxu0 0
  %1352 = vmatpush1.bf16.msra.mxu0 %v1009
  %1353 = vmatprep.subr.bf16.mxu0 0
  %1354 = vmatpush1.bf16.msra.mxu0 %v1010
  %1355 = vmatprep.subr.bf16.mxu0 0
  %1356 = vmatpush1.bf16.msra.mxu0 %v1011
  %1357 = vmatprep.subr.bf16.mxu0 0
  %1358 = vmatpush1.bf16.msra.mxu0 %v1012
  %1359 = vmatprep.subr.bf16.mxu0 0
  %1360 = vmatpush1.bf16.msra.mxu0 %v1013
  %1361 = vmatprep.subr.bf16.mxu0 0
  %1362 = vmatpush1.bf16.msra.mxu0 %v1014
  %1363 = vmatprep.subr.bf16.mxu0 0
  %1364 = vmatpush1.bf16.msra.mxu0 %v1015
  %1365 = vmatprep.subr.bf16.mxu0 0
  %1366 = vmatpush1.bf16.msra.mxu0 %v1016
  %1367 = vmatprep.subr.bf16.mxu0 0
  %1368 = vmatpush1.bf16.msra.mxu0 %v1017
  %1369 = vmatprep.subr.bf16.mxu0 0
  %1370 = vmatpush1.bf16.msra.mxu0 %v1018
  %1371 = vmatprep.mubr.bf16.mxu0 %v364
  %1372 = vmatmul.mubr.bf16.gmra.mrb[0].mxu0 %v363
  %v1373 = vpop.f32.mrb[0].mxu0
  %v1374 = vadd.f32 %v1334, %v1373
  %v1375 = vpop.f32.mrb[0].mxu0
  %v1376 = vpop.f32.mrb[0].mxu0
  %v1377 = vpop.f32.mrb[0].mxu0
  %1378 = vdwg.mxu0
  %1379 = vmatprep.subr.bf16.mxu0 0
  %1380 = vmatpush1.bf16.msra.mxu0 %v1019
  %1381 = vmatprep.subr.bf16.mxu0 0
  %1382 = vmatpush1.bf16.msra.mxu0 %v1020
  %1383 = vmatprep.subr.bf16.mxu0 0
  %1384 = vmatpush1.bf16.msra.mxu0 %v1021
  %1385 = vmatprep.subr.bf16.mxu0 0
  %1386 = vmatpush1.bf16.msra.mxu0 %v1022
  %1387 = vmatprep.subr.bf16.mxu0 0
  %1388 = vmatpush1.bf16.msra.mxu0 %v1023
  %1389 = vmatprep.subr.bf16.mxu0 0
  %1390 = vmatpush1.bf16.msra.mxu0 %v1024
  %1391 = vmatprep.subr.bf16.mxu0 0
  %1392 = vmatpush1.bf16.msra.mxu0 %v1025
  %1393 = vmatprep.subr.bf16.mxu0 0
  %1394 = vmatpush1.bf16.msra.mxu0 %v1026
  %1395 = vmatprep.subr.bf16.mxu0 0
  %1396 = vmatpush1.bf16.msra.mxu0 %v1027
  %1397 = vmatprep.subr.bf16.mxu0 0
  %1398 = vmatpush1.bf16.msra.mxu0 %v1028
  %1399 = vmatprep.subr.bf16.mxu0 0
  %1400 = vmatpush1.bf16.msra.mxu0 %v1029
  %1401 = vmatprep.subr.bf16.mxu0 0
  %1402 = vmatpush1.bf16.msra.mxu0 %v1030
  %1403 = vmatprep.subr.bf16.mxu0 0
  %1404 = vmatpush1.bf16.msra.mxu0 %v1031
  %1405 = vmatprep.subr.bf16.mxu0 0
  %1406 = vmatpush1.bf16.msra.mxu0 %v1032
  %1407 = vmatprep.subr.bf16.mxu0 0
  %1408 = vmatpush1.bf16.msra.mxu0 %v1033
  %1409 = vmatprep.subr.bf16.mxu0 0
  %1410 = vmatpush1.bf16.msra.mxu0 %v1034
  %1411 = vmatprep.mubr.bf16.mxu0 %v366
  %1412 = vmatmul.mubr.bf16.gmra.mrb[0].mxu0 %v365
  %v1413 = vpop.f32.mrb[0].mxu0
  %v1414 = vadd.f32 %v1374, %v1413
  %v1415 = vpop.f32.mrb[0].mxu0
  %v1416 = vpop.f32.mrb[0].mxu0
  %v1417 = vpop.f32.mrb[0].mxu0
  %1418 = vdwg.mxu0
  %1419 = vmatprep.subr.bf16.mxu0 0
  %1420 = vmatpush1.bf16.msra.mxu0 %v1035
  %1421 = vmatprep.subr.bf16.mxu0 0
  %1422 = vmatpush1.bf16.msra.mxu0 %v1036
  %1423 = vmatprep.subr.bf16.mxu0 0
  %1424 = vmatpush1.bf16.msra.mxu0 %v1037
  %1425 = vmatprep.subr.bf16.mxu0 0
  %1426 = vmatpush1.bf16.msra.mxu0 %v1038
  %1427 = vmatprep.subr.bf16.mxu0 0
  %1428 = vmatpush1.bf16.msra.mxu0 %v1039
  %1429 = vmatprep.subr.bf16.mxu0 0
  %1430 = vmatpush1.bf16.msra.mxu0 %v1040
  %1431 = vmatprep.subr.bf16.mxu0 0
  %1432 = vmatpush1.bf16.msra.mxu0 %v1041
  %1433 = vmatprep.subr.bf16.mxu0 0
  %1434 = vmatpush1.bf16.msra.mxu0 %v1042
  %1435 = vmatprep.subr.bf16.mxu0 0
  %1436 = vmatpush1.bf16.msra.mxu0 %v1043
  %1437 = vmatprep.subr.bf16.mxu0 0
  %1438 = vmatpush1.bf16.msra.mxu0 %v1044
  %1439 = vmatprep.subr.bf16.mxu0 0
  %1440 = vmatpush1.bf16.msra.mxu0 %v1045
  %1441 = vmatprep.subr.bf16.mxu0 0
  %1442 = vmatpush1.bf16.msra.mxu0 %v1046
  %1443 = vmatprep.subr.bf16.mxu0 0
  %1444 = vmatpush1.bf16.msra.mxu0 %v1047
  %1445 = vmatprep.subr.bf16.mxu0 0
  %1446 = vmatpush1.bf16.msra.mxu0 %v1048
  %1447 = vmatprep.subr.bf16.mxu0 0
  %1448 = vmatpush1.bf16.msra.mxu0 %v1049
  %1449 = vmatprep.subr.bf16.mxu0 0
  %1450 = vmatpush1.bf16.msra.mxu0 %v1050
  %1451 = vmatprep.mubr.bf16.mxu0 %v368
  %1452 = vmatmul.mubr.bf16.gmra.mrb[0].mxu0 %v367
  %v1453 = vpop.f32.mrb[0].mxu0
  %v1454 = vadd.f32 %v1414, %v1453
  %v1455 = vpop.f32.mrb[0].mxu0
  %v1456 = vpop.f32.mrb[0].mxu0
  %v1457 = vpop.f32.mrb[0].mxu0
  %1458 = vdwg.mxu0
  %1459 = vmatprep.subr.bf16.mxu0 0
  %1460 = vmatpush1.bf16.msra.mxu0 %v1051
  %1461 = vmatprep.subr.bf16.mxu0 0
  %1462 = vmatpush1.bf16.msra.mxu0 %v1052
  %1463 = vmatprep.subr.bf16.mxu0 0
  %1464 = vmatpush1.bf16.msra.mxu0 %v1053
  %1465 = vmatprep.subr.bf16.mxu0 0
  %1466 = vmatpush1.bf16.msra.mxu0 %v1054
  %1467 = vmatprep.subr.bf16.mxu0 0
  %1468 = vmatpush1.bf16.msra.mxu0 %v1055
  %1469 = vmatprep.subr.bf16.mxu0 0
  %1470 = vmatpush1.bf16.msra.mxu0 %v1056
  %1471 = vmatprep.subr.bf16.mxu0 0
  %1472 = vmatpush1.bf16.msra.mxu0 %v1057
  %1473 = vmatprep.subr.bf16.mxu0 0
  %1474 = vmatpush1.bf16.msra.mxu0 %v1058
  %1475 = vmatprep.subr.bf16.mxu0 0
  %1476 = vmatpush1.bf16.msra.mxu0 %v1059
  %1477 = vmatprep.subr.bf16.mxu0 0
  %1478 = vmatpush1.bf16.msra.mxu0 %v1060
  %1479 = vmatprep.subr.bf16.mxu0 0
  %1480 = vmatpush1.bf16.msra.mxu0 %v1061
  %1481 = vmatprep.subr.bf16.mxu0 0
  %1482 = vmatpush1.bf16.msra.mxu0 %v1062
  %1483 = vmatprep.subr.bf16.mxu0 0
  %1484 = vmatpush1.bf16.msra.mxu0 %v1063
  %1485 = vmatprep.subr.bf16.mxu0 0
  %1486 = vmatpush1.bf16.msra.mxu0 %v1064
  %1487 = vmatprep.subr.bf16.mxu0 0
  %1488 = vmatpush1.bf16.msra.mxu0 %v1065
  %1489 = vmatprep.subr.bf16.mxu0 0
  %1490 = vmatpush1.bf16.msra.mxu0 %v1066
  %1491 = vmatprep.mubr.bf16.mxu0 %v370
  %1492 = vmatmul.mubr.bf16.gmra.mrb[0].mxu0 %v369
  %v1493 = vpop.f32.mrb[0].mxu0
  %v1494 = vadd.f32 %v1454, %v1493
  %v1495 = vpop.f32.mrb[0].mxu0
  %v1496 = vpop.f32.mrb[0].mxu0
  %v1497 = vpop.f32.mrb[0].mxu0
  %1498 = vdwg.mxu0
  %1499 = vmatprep.subr.bf16.mxu0 0
  %1500 = vmatpush1.bf16.msra.mxu0 %v1067
  %1501 = vmatprep.subr.bf16.mxu0 0
  %1502 = vmatpush1.bf16.msra.mxu0 %v1068
  %1503 = vmatprep.subr.bf16.mxu0 0
  %1504 = vmatpush1.bf16.msra.mxu0 %v1069
  %1505 = vmatprep.subr.bf16.mxu0 0
  %1506 = vmatpush1.bf16.msra.mxu0 %v1070
  %1507 = vmatprep.subr.bf16.mxu0 0
  %1508 = vmatpush1.bf16.msra.mxu0 %v1071
  %1509 = vmatprep.subr.bf16.mxu0 0
  %1510 = vmatpush1.bf16.msra.mxu0 %v1072
  %1511 = vmatprep.subr.bf16.mxu0 0
  %1512 = vmatpush1.bf16.msra.mxu0 %v1073
  %1513 = vmatprep.subr.bf16.mxu0 0
  %1514 = vmatpush1.bf16.msra.mxu0 %v1074
  %1515 = vmatprep.subr.bf16.mxu0 0
  %1516 = vmatpush1.bf16.msra.mxu0 %v1075
  %1517 = vmatprep.subr.bf16.mxu0 0
  %1518 = vmatpush1.bf16.msra.mxu0 %v1076
  %1519 = vmatprep.subr.bf16.mxu0 0
  %1520 = vmatpush1.bf16.msra.mxu0 %v1077
  %1521 = vmatprep.subr.bf16.mxu0 0
  %1522 = vmatpush1.bf16.msra.mxu0 %v1078
  %1523 = vmatprep.subr.bf16.mxu0 0
  %1524 = vmatpush1.bf16.msra.mxu0 %v1079
  %1525 = vmatprep.subr.bf16.mxu0 0
  %1526 = vmatpush1.bf16.msra.mxu0 %v1080
  %1527 = vmatprep.subr.bf16.mxu0 0
  %1528 = vmatpush1.bf16.msra.mxu0 %v1081
  %1529 = vmatprep.subr.bf16.mxu0 0
  %1530 = vmatpush1.bf16.msra.mxu0 %v1082
  %1531 = vmatprep.mubr.bf16.mxu0 %v372
  %1532 = vmatmul.mubr.bf16.gmra.mrb[0].mxu0 %v371
  %v1533 = vpop.f32.mrb[0].mxu0
  %v1534 = vadd.f32 %v1494, %v1533
  %v1535 = vpop.f32.mrb[0].mxu0
  %v1536 = vpop.f32.mrb[0].mxu0
  %v1537 = vpop.f32.mrb[0].mxu0
  %1538 = vdwg.mxu0
  %1539 = vmatprep.subr.bf16.mxu0 0
  %1540 = vmatpush1.bf16.msra.mxu0 %v1083
  %1541 = vmatprep.subr.bf16.mxu0 0
  %1542 = vmatpush1.bf16.msra.mxu0 %v1084
  %1543 = vmatprep.subr.bf16.mxu0 0
  %1544 = vmatpush1.bf16.msra.mxu0 %v1085
  %1545 = vmatprep.subr.bf16.mxu0 0
  %1546 = vmatpush1.bf16.msra.mxu0 %v1086
  %1547 = vmatprep.subr.bf16.mxu0 0
  %1548 = vmatpush1.bf16.msra.mxu0 %v1087
  %1549 = vmatprep.subr.bf16.mxu0 0
  %1550 = vmatpush1.bf16.msra.mxu0 %v1088
  %1551 = vmatprep.subr.bf16.mxu0 0
  %1552 = vmatpush1.bf16.msra.mxu0 %v1089
  %1553 = vmatprep.subr.bf16.mxu0 0
  %1554 = vmatpush1.bf16.msra.mxu0 %v1090
  %1555 = vmatprep.subr.bf16.mxu0 0
  %1556 = vmatpush1.bf16.msra.mxu0 %v1091
  %1557 = vmatprep.subr.bf16.mxu0 0
  %1558 = vmatpush1.bf16.msra.mxu0 %v1092
  %1559 = vmatprep.subr.bf16.mxu0 0
  %1560 = vmatpush1.bf16.msra.mxu0 %v1093
  %1561 = vmatprep.subr.bf16.mxu0 0
  %1562 = vmatpush1.bf16.msra.mxu0 %v1094
  %1563 = vmatprep.subr.bf16.mxu0 0
  %1564 = vmatpush1.bf16.msra.mxu0 %v1095
  %1565 = vmatprep.subr.bf16.mxu0 0
  %1566 = vmatpush1.bf16.msra.mxu0 %v1096
  %1567 = vmatprep.subr.bf16.mxu0 0
  %1568 = vmatpush1.bf16.msra.mxu0 %v1097
  %1569 = vmatprep.subr.bf16.mxu0 0
  %1570 = vmatpush1.bf16.msra.mxu0 %v1098
  %1571 = vmatprep.mubr.bf16.mxu0 %v374
  %1572 = vmatmul.mubr.bf16.gmra.mrb[0].mxu0 %v373
  %v1573 = vpop.f32.mrb[0].mxu0
  %v1574 = vadd.f32 %v1534, %v1573
  %v1575 = vpop.f32.mrb[0].mxu0
  %v1576 = vpop.f32.mrb[0].mxu0
  %v1577 = vpop.f32.mrb[0].mxu0
  %1578 = vdwg.mxu0
  %1579 = vmatprep.subr.bf16.mxu0 0
  %1580 = vmatpush1.bf16.msra.mxu0 %v1099
  %1581 = vmatprep.subr.bf16.mxu0 0
  %1582 = vmatpush1.bf16.msra.mxu0 %v1100
  %1583 = vmatprep.subr.bf16.mxu0 0
  %1584 = vmatpush1.bf16.msra.mxu0 %v1101
  %1585 = vmatprep.subr.bf16.mxu0 0
  %1586 = vmatpush1.bf16.msra.mxu0 %v1102
  %1587 = vmatprep.subr.bf16.mxu0 0
  %1588 = vmatpush1.bf16.msra.mxu0 %v1103
  %1589 = vmatprep.subr.bf16.mxu0 0
  %1590 = vmatpush1.bf16.msra.mxu0 %v1104
  %1591 = vmatprep.subr.bf16.mxu0 0
  %1592 = vmatpush1.bf16.msra.mxu0 %v1105
  %1593 = vmatprep.subr.bf16.mxu0 0
  %1594 = vmatpush1.bf16.msra.mxu0 %v1106
  %1595 = vmatprep.subr.bf16.mxu0 0
  %1596 = vmatpush1.bf16.msra.mxu0 %v1107
  %1597 = vmatprep.subr.bf16.mxu0 0
  %1598 = vmatpush1.bf16.msra.mxu0 %v1108
  %1599 = vmatprep.subr.bf16.mxu0 0
  %1600 = vmatpush1.bf16.msra.mxu0 %v1109
  %1601 = vmatprep.subr.bf16.mxu0 0
  %1602 = vmatpush1.bf16.msra.mxu0 %v1110
  %1603 = vmatprep.subr.bf16.mxu0 0
  %1604 = vmatpush1.bf16.msra.mxu0 %v1111
  %1605 = vmatprep.subr.bf16.mxu0 0
  %1606 = vmatpush1.bf16.msra.mxu0 %v1112
  %1607 = vmatprep.subr.bf16.mxu0 0
  %1608 = vmatpush1.bf16.msra.mxu0 %v1113
  %1609 = vmatprep.subr.bf16.mxu0 0
  %1610 = vmatpush1.bf16.msra.mxu0 %v1114
  %1611 = vmatprep.mubr.bf16.mxu0 %v376
  %1612 = vmatmul.mubr.bf16.gmra.mrb[0].mxu0 %v375
  %v1613 = vpop.f32.mrb[0].mxu0
  %v1614 = vadd.f32 %v1574, %v1613
  %v1615 = vpop.f32.mrb[0].mxu0
  %v1616 = vpop.f32.mrb[0].mxu0
  %v1617 = vpop.f32.mrb[0].mxu0
  %1618 = vdwg.mxu0
  %v1619 = vadd.f32 %v34, %v1614
  %1620 = vst [vmem:[#allocation2] sm:$0xff] %v1619
  // Predicated region
  $region34: #{cnn_forward.3} parent=0 // pred_check
    %p1621 = pneg %p29
  $region35: #{cnn_forward.3} parent=0 // pred_check_branch
    %1623 = sbr.rel (%p1621) target = $region37
  $region36: #{cnn_forward.3} parent=0 // pred_region
    %v1624 = vld [vmem:[#allocation2] sm:$0xff]
    %v1625 = vld [vmem:[%s2] sm:$0x1]
    %v1627 = vlaneseq
    %v1628 = vshrl.u32 %v1627, 7
    %v1629 = vsub.s32 0, %v1628
    %v1630 = vrot.slane %v1625, %v1629
    %v1632 = vadd.f32 %v1624, %v1630
    %v1633 = vmax.f32 %v1632, 0.0
    %v1634 = vpack.c.bf16 %v1633, %v1633
    %v1635 = vld [vmem:[%s3] sm:$0xf]
    %v1636 = vld [vmem:[%s3 + $0x4] sm:$0xf]
    %v1637 = vld [vmem:[%s3 + $0x8] sm:$0xf]
    %v1638 = vld [vmem:[%s3 + $0xc] sm:$0xf]
    %v1639 = vld [vmem:[%s3 + $0x10] sm:$0xf]
    %v1640 = vld [vmem:[%s3 + $0x14] sm:$0xf]
    %v1641 = vld [vmem:[%s3 + $0x18] sm:$0xf]
    %v1642 = vld [vmem:[%s3 + $0x1c] sm:$0xf]
    %v1643 = vld [vmem:[%s3 + $0x20] sm:$0xf]
    %v1644 = vld [vmem:[%s3 + $0x24] sm:$0xf]
    %v1645 = vld [vmem:[%s3 + $0x28] sm:$0xf]
    %v1646 = vld [vmem:[%s3 + $0x2c] sm:$0xf]
    %v1647 = vld [vmem:[%s3 + $0x30] sm:$0xf]
    %v1648 = vld [vmem:[%s3 + $0x34] sm:$0xf]
    %v1649 = vld [vmem:[%s3 + $0x38] sm:$0xf]
    %v1650 = vld [vmem:[%s3 + $0x3c] sm:$0xf]
    %v1651 = vld [vmem:[%s4] sm:$0x1]
    %v1653 = vlaneseq
    %v1654 = vshrl.u32 %v1653, 7
    %v1655 = vsub.s32 0, %v1654
    %v1656 = vrot.slane %v1651, %v1655
    %v1674 = vunpack.c.l.b16 %v1635
    %v1675 = vunpack.c.l.b16 %v1636
    %v1676 = vunpack.c.l.b16 %v1637
    %v1677 = vunpack.c.l.b16 %v1638
    %v1678 = vunpack.c.l.b16 %v1639
    %v1679 = vunpack.c.l.b16 %v1640
    %v1680 = vunpack.c.l.b16 %v1641
    %v1681 = vunpack.c.l.b16 %v1642
    %v1682 = vunpack.c.l.b16 %v1643
    %v1683 = vunpack.c.l.b16 %v1644
    %v1684 = vunpack.c.l.b16 %v1645
    %v1685 = vunpack.c.l.b16 %v1646
    %v1686 = vunpack.c.l.b16 %v1647
    %v1687 = vunpack.c.l.b16 %v1648
    %v1688 = vunpack.c.l.b16 %v1649
    %v1689 = vunpack.c.l.b16 %v1650
    %v1690 = vpack.c.b16 %v1675, %v1674
    %v1691 = vpack.c.b16 %v1677, %v1676
    %v1692 = vpack.c.b16 %v1679, %v1678
    %v1693 = vpack.c.b16 %v1681, %v1680
    %v1694 = vpack.c.b16 %v1683, %v1682
    %v1695 = vpack.c.b16 %v1685, %v1684
    %v1696 = vpack.c.b16 %v1687, %v1686
    %v1697 = vpack.c.b16 %v1689, %v1688
    %1706 = vmatprep.subr.bf16.mxu0 0
    %1707 = vmatpush1.bf16.msra.mxu0 %v1690
    %1708 = vmatprep.subr.bf16.mxu0 0
    %1709 = vmatpush1.bf16.msra.mxu0 %v1691
    %1710 = vmatprep.subr.bf16.mxu0 0
    %1711 = vmatpush1.bf16.msra.mxu0 %v1692
    %1712 = vmatprep.subr.bf16.mxu0 0
    %1713 = vmatpush1.bf16.msra.mxu0 %v1693
    %1714 = vmatprep.subr.bf16.mxu0 0
    %1715 = vmatpush1.bf16.msra.mxu0 %v1694
    %1716 = vmatprep.subr.bf16.mxu0 0
    %1717 = vmatpush1.bf16.msra.mxu0 %v1695
    %1718 = vmatprep.subr.bf16.mxu0 0
    %1719 = vmatpush1.bf16.msra.mxu0 %v1696
    %1720 = vmatprep.subr.bf16.mxu0 0
    %1721 = vmatpush1.bf16.msra.mxu0 %v1697
    %1722 = vmatprep.subr.bf16.mxu0 0
    %1723 = vmatpush1.bf16.msra.mxu0 0
    %1724 = vmatprep.subr.bf16.mxu0 0
    %1725 = vmatpush1.bf16.msra.mxu0 0
    %1726 = vmatprep.subr.bf16.mxu0 0
    %1727 = vmatpush1.bf16.msra.mxu0 0
    %1728 = vmatprep.subr.bf16.mxu0 0
    %1729 = vmatpush1.bf16.msra.mxu0 0
    %1730 = vmatprep.subr.bf16.mxu0 0
    %1731 = vmatpush1.bf16.msra.mxu0 0
    %1732 = vmatprep.subr.bf16.mxu0 0
    %1733 = vmatpush1.bf16.msra.mxu0 0
    %1734 = vmatprep.subr.bf16.mxu0 0
    %1735 = vmatpush1.bf16.msra.mxu0 0
    %1736 = vmatprep.subr.bf16.mxu0 0
    %1737 = vmatpush1.bf16.msra.mxu0 0
    %1738 = vmatprep.mubr.bf16.mxu0 0
    %1739 = vmatmul.mubr.bf16.gmra.mrb[0].mxu0 %v1634
    %v1740 = vpop.f32.mrb[0].mxu0
    %v1741 = vadd.f32 %v1656, %v1740
    %v1742 = vpop.f32.mrb[0].mxu0
    %v1743 = vpop.f32.mrb[0].mxu0
    %v1744 = vpop.f32.mrb[0].mxu0
    %1745 = vdwg.mxu0
    %v1746 = vmax.f32 %v1741, 0.0
    %v1747 = vpack.c.bf16 %v1746, %v1746
    %v1748 = vld [vmem:[%s5] sm:$0xf]
    %v1749 = vld [vmem:[%s5 + $0x4] sm:$0xf]
    %v1750 = vld [vmem:[%s5 + $0x8] sm:$0xf]
    %v1751 = vld [vmem:[%s5 + $0xc] sm:$0xf]
    %v1752 = vld [vmem:[%s5 + $0x10] sm:$0xf]
    %v1753 = vld [vmem:[%s5 + $0x14] sm:$0xf]
    %v1754 = vld [vmem:[%s5 + $0x18] sm:$0xf]
    %v1755 = vld [vmem:[%s5 + $0x1c] sm:$0xf]
    %v1756 = vld [vmem:[#allocation3] sm:$0x1]
    %v1758 = vlaneseq
    %v1759 = vshrl.u32 %v1758, 7
    %v1760 = vsub.s32 0, %v1759
    %v1761 = vrot.slane %v1756, %v1760
    %v1771 = vunpack.c.l.b16 %v1748
    %v1772 = vunpack.c.l.b16 %v1749
    %v1773 = vunpack.c.l.b16 %v1750
    %v1774 = vunpack.c.l.b16 %v1751
    %v1775 = vunpack.c.l.b16 %v1752
    %v1776 = vunpack.c.l.b16 %v1753
    %v1777 = vunpack.c.l.b16 %v1754
    %v1778 = vunpack.c.l.b16 %v1755
    %v1779 = vpack.c.b16 %v1772, %v1771
    %v1780 = vpack.c.b16 %v1774, %v1773
    %v1781 = vpack.c.b16 %v1776, %v1775
    %v1782 = vpack.c.b16 %v1778, %v1777
    %vm1787 = vcmask 523264
    %v1789 = vsel %vm1787, %v1747, 0
    %1791 = vmatprep.subr.bf16.mxu0 0
    %1792 = vmatpush1.bf16.msra.mxu0 %v1779
    %1793 = vmatprep.subr.bf16.mxu0 0
    %1794 = vmatpush1.bf16.msra.mxu0 %v1780
    %1795 = vmatprep.subr.bf16.mxu0 0
    %1796 = vmatpush1.bf16.msra.mxu0 %v1781
    %1797 = vmatprep.subr.bf16.mxu0 0
    %1798 = vmatpush1.bf16.msra.mxu0 %v1782
    %1799 = vmatprep.subr.bf16.mxu0 0
    %1800 = vmatpush1.bf16.msra.mxu0 0
    %1801 = vmatprep.subr.bf16.mxu0 0
    %1802 = vmatpush1.bf16.msra.mxu0 0
    %1803 = vmatprep.subr.bf16.mxu0 0
    %1804 = vmatpush1.bf16.msra.mxu0 0
    %1805 = vmatprep.subr.bf16.mxu0 0
    %1806 = vmatpush1.bf16.msra.mxu0 0
    %1807 = vmatprep.subr.bf16.mxu0 0
    %1808 = vmatpush1.bf16.msra.mxu0 0
    %1809 = vmatprep.subr.bf16.mxu0 0
    %1810 = vmatpush1.bf16.msra.mxu0 0
    %1811 = vmatprep.subr.bf16.mxu0 0
    %1812 = vmatpush1.bf16.msra.mxu0 0
    %1813 = vmatprep.subr.bf16.mxu0 0
    %1814 = vmatpush1.bf16.msra.mxu0 0
    %1815 = vmatprep.subr.bf16.mxu0 0
    %1816 = vmatpush1.bf16.msra.mxu0 0
    %1817 = vmatprep.subr.bf16.mxu0 0
    %1818 = vmatpush1.bf16.msra.mxu0 0
    %1819 = vmatprep.subr.bf16.mxu0 0
    %1820 = vmatpush1.bf16.msra.mxu0 0
    %1821 = vmatprep.subr.bf16.mxu0 0
    %1822 = vmatpush1.bf16.msra.mxu0 0
    %1823 = vmatprep.mubr.bf16.mxu0 0
    %1824 = vmatmul.mubr.bf16.gmra.mrb[0].mxu0 %v1789
    %v1825 = vpop.f32.mrb[0].mxu0
    %v1826 = vadd.f32 %v1761, %v1825
    %v1827 = vpop.f32.mrb[0].mxu0
    %v1828 = vpop.f32.mrb[0].mxu0
    %v1829 = vpop.f32.mrb[0].mxu0
    %1830 = vdwg.mxu0
    %vm1831 = vcmask 7168
    %1832 = vst.msk [vmem:[%s7] sm:$0xff] %vm1831, %v1826
  $region37: #{cnn_forward.3} parent=0 // pred_fallthru
    _
  // Predicated region
  $region38: #{cnn_forward.3} parent=0 // pred_check
    _
  $region39: #{cnn_forward.3} parent=0 // pred_check_branch
    %1834 = sbr.rel (0) target = $region41
  $region40: #{cnn_forward.3} parent=0 // pred_region
    _
  $region41: #{cnn_forward.3} parent=0 // pred_fallthru
    _
  // Predicated region
  $region42: #{cnn_forward.3} parent=0 // pred_check
    _
  $region43: #{cnn_forward.3} parent=0 // pred_check_branch
    %1836 = sbr.rel (0) target = $region45
  $region44: #{cnn_forward.3} parent=0 // pred_region
    _
  $region45: #{cnn_forward.3} parent=0 // pred_fallthru
    _

</llo_original>
